<compile_context>
chip_gen: v6e
topology: v6e:2x2x1
jax: 0.10.0
libtpu: 0.0.40
codegen_flags: <defaults>
</compile_context>

<pallas_src>
import functools

import jax
import jax.numpy as jnp
from jax import lax
from jax.experimental import pallas as pl
from jax.experimental.pallas import tpu as pltpu

K = 7                         # kernel_size
DIL = 3                       # dilation
PAD = DIL * (K - 1) // 2      # = 9  -> "same" output size
LPAD = 16                     # sublane-aligned left offset of the interior (>= PAD, mult of 8)
CW0 = LPAD - PAD              # = 7, first scratch column any tap reads
LANES = 128
SUBLANES = 8


def _round_up(x, m):
    return ((x + m - 1) // m) * m


def dwdconv_kernel(x_ref, w_ref, b_ref, o_ref, xp_ref, *, ch):
    # x_ref : (1, H, W, C)          full-height input slab (reused across hb)  [VMEM]
    # w_ref : (K*K, C)              per-lane depthwise taps                    [VMEM]
    # b_ref : (1, C)                per-lane bias                              [VMEM]
    # o_ref : (1, HB, W, C)         output H-tile                              [VMEM]
    # xp_ref: (HB + 2*PAD, Wpad, C) padded scratch tile (H halo + W halo)      [VMEM]
    _, HB, W, C = o_ref.shape
    HBp, Wpad, _ = xp_ref.shape
    RW = W + 2 * PAD            # width of the column range any tap reads

    hb = pl.program_id(2)
    n_hb = pl.num_programs(2)
    h0 = hb * HB

    # ---- Build the padded tile in VMEM -------------------------------------
    # W halo strips: aligned, unmasked zero stores every step (megacore-safe;
    # the strips are never written with data, only read as zero padding).
    xp_ref[:, :LPAD, :] = jnp.zeros((HBp, LPAD, C), xp_ref.dtype)
    xp_ref[:, LPAD + W:, :] = jnp.zeros((HBp, Wpad - LPAD - W, C), xp_ref.dtype)

    # Top H halo rows: real neighbour rows for interior tiles, zeros at the edge.
    @pl.when(hb == 0)
    def _():
        xp_ref[0:PAD, LPAD:LPAD + W, :] = jnp.zeros((PAD, W, C), xp_ref.dtype)

    @pl.when(hb > 0)
    def _():
        xp_ref[0:PAD, LPAD:LPAD + W, :] = x_ref[0, pl.ds(h0 - PAD, PAD), :, :]

    # Bottom H halo rows.
    @pl.when(hb == n_hb - 1)
    def _():
        xp_ref[PAD + HB:, LPAD:LPAD + W, :] = jnp.zeros((PAD, W, C), xp_ref.dtype)

    @pl.when(hb < n_hb - 1)
    def _():
        xp_ref[PAD + HB:, LPAD:LPAD + W, :] = x_ref[0, pl.ds(h0 + HB, PAD), :, :]

    # Interior: destination column offset LPAD is a multiple of 8 -> unmasked stores.
    # TODO(synk): DMA the input rows straight into the scratch interior
    # (memory_space=pl.ANY + pltpu.make_async_copy) to skip this VMEM->VMEM copy.
    xp_ref[PAD:PAD + HB, LPAD:LPAD + W, :] = x_ref[0, pl.ds(h0, HB), :, :]

    # ---- Hoisted per-grid-step constants ------------------------------------
    w_all = w_ref[...].astype(jnp.float32)                     # (K*K, C), ~7 vregs
    bias = b_ref[...].astype(jnp.float32).reshape(1, 1, C)

    n_chunks = HB // ch

    # ---- 49-tap MAC with vreg-resident accumulation per row chunk ----------
    def chunk_body(ci, carry):
        r0 = pl.multiple_of(ci * ch, ch)
        accs = [jnp.zeros((ch, W, C), jnp.float32) for _ in range(2)]
        for kh in range(K):
            # One row band per kh; the 7 kw taps are static sublane-offset
            # slices of this band, so the misaligned access cost is paid 7x
            # per chunk (per kh) instead of 49x (per tap).
            band = xp_ref[pl.ds(r0 + kh * DIL, ch), CW0:CW0 + RW, :]
            for kw in range(K):
                patch = band[:, kw * DIL:kw * DIL + W, :].astype(jnp.float32)
                wv = w_all[kh * K + kw].reshape(1, 1, C)
                accs[kw % 2] = accs[kw % 2] + patch * wv
        res = (accs[0] + accs[1]) + bias
        o_ref[0, pl.ds(r0, ch), :, :] = res.astype(o_ref.dtype)
        return carry

    lax.fori_loop(0, n_chunks, chunk_body, 0)


def _vmem_budget_bytes():
    # Stay well below physical VMEM (64 MiB on v7x, 128 MiB on v5e/v6e).
    try:
        phys = int(pltpu.get_tpu_info().vmem_capacity_bytes)
    except Exception:
        phys = 64 * 1024 * 1024
    return max(phys * 3 // 4, 24 * 1024 * 1024)


def dwdconv(x, weight, bias):
    """Depthwise dilated conv (NCHW in / NCHW out).

    x      : (B, C, H, W)
    weight : (C, 1, K, K)   (groups == C, out_channels == C)
    bias   : (C,)
    returns: (B, C, H, W)
    """
    B, C, H, W = x.shape
    dt = x.dtype
    itemsize = jnp.dtype(dt).itemsize

    # Channels -> lanes, padded to a multiple of 128 so every multiply and
    # store is lane-dense (no masked vst even for tiny C).
    Cp = _round_up(C, LANES)
    cblk = LANES
    n_cblk = Cp // cblk

    x_nhwc = jnp.transpose(x, (0, 2, 3, 1))                    # (B, H, W, C)
    w_flat = weight.reshape(C, K * K)
    b_vec = bias
    if Cp != C:
        x_nhwc = jnp.pad(x_nhwc, ((0, 0), (0, 0), (0, 0), (0, Cp - C)))
        w_flat = jnp.pad(w_flat, ((0, Cp - C), (0, 0)))
        b_vec = jnp.pad(b_vec, (0, Cp - C))
    w_t = jnp.transpose(w_flat)                                # (K*K, Cp)
    b2 = b_vec.reshape(1, Cp)

    Wpad = _round_up(LPAD + W + PAD, SUBLANES)
    budget = _vmem_budget_bytes()

    def footprint(hb):
        blk_in = H * W * cblk * itemsize          # full-H slab (double-buffered)
        blk_out = hb * W * cblk * itemsize
        scr = (hb + 2 * PAD) * Wpad * cblk * itemsize
        misc = (K * K + 1) * cblk * itemsize * 4 + (2 << 20)
        return 2 * blk_in + 2 * blk_out + scr + misc

    # H tiling: largest tile fitting the VMEM budget; tiles (other than the
    # whole plane) must be >= PAD rows so neighbour halos stay in-slab.  Also
    # split H when the rest of the grid has < 2 parallel iterations (keeps
    # both v7x TensorCores busy).
    cands = [d for d in range(1, H + 1) if H % d == 0 and (d == H or d >= PAD)]
    cands.sort(reverse=True)
    HB = next((d for d in cands if footprint(d) <= budget), cands[-1])
    if B * n_cblk < 2:
        split = next((d for d in cands if d < H and footprint(d) <= budget), None)
        if split is not None:
            HB = split
    n_hblk = H // HB

    # Row-chunk size: (band + two f32 accumulators) stays roughly vreg-resident.
    ch_cap = max(1, 64 // max(W, 1))
    CH = max(d for d in range(1, HB + 1) if HB % d == 0 and d <= max(ch_cap, 1))

    vmem_limit = int(min(budget, max(footprint(HB), 16 * 1024 * 1024)))

    cost = pl.CostEstimate(
        flops=int(2 * K * K * B * H * W * Cp),
        transcendentals=0,
        bytes_accessed=int((2 * B * H * W * Cp + (K * K + 1) * Cp) * itemsize))

    kern = functools.partial(dwdconv_kernel, ch=CH)

    out_nhwc = pl.pallas_call(
        kern,
        out_shape=jax.ShapeDtypeStruct((B, H, W, Cp), dt),
        grid=(B, n_cblk, n_hblk),
        in_specs=[
            # Full-H slab, invariant along hb (innermost axis) -> fetched once
            # per (b, cb) and reused by every H tile.
            pl.BlockSpec((1, H, W, cblk), lambda b, cb, hb: (b, 0, 0, cb)),
            pl.BlockSpec((K * K, cblk), lambda b, cb, hb: (0, cb)),
            pl.BlockSpec((1, cblk), lambda b, cb, hb: (0, cb)),
        ],
        out_specs=pl.BlockSpec((1, HB, W, cblk), lambda b, cb, hb: (b, hb, 0, cb)),
        scratch_shapes=[pltpu.VMEM((HB + 2 * PAD, Wpad, cblk), dt)],
        compiler_params=pltpu.CompilerParams(
            dimension_semantics=("parallel", "parallel", "parallel"),
            vmem_limit_bytes=vmem_limit),
        cost_estimate=cost,
    )(x_nhwc, w_t, b2)

    out_nhwc = out_nhwc[..., :C]
    return jnp.transpose(out_nhwc, (0, 3, 1, 2))


if __name__ == "__main__":
    B, C, H, W = 2, 4, 16, 16

    key = jax.random.PRNGKey(0)
    kx, kw, kb = jax.random.split(key, 3)

    x = jax.random.normal(kx, (B, C, H, W), dtype=jnp.float32)

    # Deterministic synthetic parameters (PyTorch-like uniform init scale).
    fan_in = K * K  # per-group fan-in for depthwise conv
    bound = 1.0 / (fan_in ** 0.5)
    weight = jax.random.uniform(kw, (C, 1, K, K),
                                minval=-bound, maxval=bound, dtype=jnp.float32)
    bias = jax.random.uniform(kb, (C,),
                              minval=-bound, maxval=bound, dtype=jnp.float32)

    out = dwdconv(x, weight, bias)
    out = jax.block_until_ready(out)

    # Sanity check against XLA's grouped dilated conv.
    ref = jax.lax.conv_general_dilated(
        x, weight,
        window_strides=(1, 1),
        padding=[(PAD, PAD), (PAD, PAD)],
        rhs_dilation=(DIL, DIL),
        dimension_numbers=("NCHW", "OIHW", "NCHW"),
        feature_group_count=C,
    ) + bias[None, :, None, None]

    assert out.shape == (B, C, H, W)
    assert jnp.allclose(out, ref, atol=1e-4, rtol=1e-4), \
        float(jnp.max(jnp.abs(out - ref)))

    print("KERNEL_OK")
</pallas_src>

<mosaic_0001>
module attributes {stable_mosaic.version = 11 : i64} {
  func.func @dwdconv_kernel(%arg0: i32, %arg1: i32, %arg2: i32, %arg3: memref<1x16x16x128xf32, #tpu.memory_space<vmem>>, %arg4: memref<49x128xf32, #tpu.memory_space<vmem>>, %arg5: memref<1x128xf32, #tpu.memory_space<vmem>>, %arg6: memref<1x16x16x128xf32, #tpu.memory_space<vmem>>, %arg7: memref<34x48x128xf32, #tpu.memory_space<vmem>>) attributes {dimension_semantics = [#tpu.dimension_semantics<parallel>, #tpu.dimension_semantics<parallel>, #tpu.dimension_semantics<parallel>], iteration_bounds = array<i64: 2, 1, 1>, scalar_prefetch = 0 : i64, scratch_operands = 1 : i64, tpu.core_type = #tpu.core_type<tc>, window_params = [{transform_indices = @transform_0, window_bounds = array<i64: 1, 16, 16, 128>}, {transform_indices = @transform_1, window_bounds = array<i64: 49, 128>}, {transform_indices = @transform_2, window_bounds = array<i64: 1, 128>}, {transform_indices = @transform_3, window_bounds = array<i64: 1, 16, 16, 128>}]} {
    %c16_i32 = arith.constant 16 : i32
    %0 = arith.muli %arg2, %c16_i32 : i32
    %cst = arith.constant 0.000000e+00 : f32
    %1 = vector.broadcast %cst : f32 to vector<34x16x128xf32>
    %c0 = arith.constant 0 : index
    %c0_0 = arith.constant 0 : index
    %c0_1 = arith.constant 0 : index
    %2 = vector.load %arg7[%c0, %c0_0, %c0_1] : memref<34x48x128xf32, #tpu.memory_space<vmem>>, vector<34x16x128xf32>
    tpu.vector_store %arg7[%c0, %c0_0, %c0_1], %1 {strides = array<i32>} : memref<34x48x128xf32, #tpu.memory_space<vmem>>, vector<34x16x128xf32>,
    %cst_2 = arith.constant 0.000000e+00 : f32
    %3 = vector.broadcast %cst_2 : f32 to vector<34x16x128xf32>
    %c0_3 = arith.constant 0 : index
    %c32 = arith.constant 32 : index
    %c0_4 = arith.constant 0 : index
    %4 = vector.load %arg7[%c0_3, %c32, %c0_4] : memref<34x48x128xf32, #tpu.memory_space<vmem>>, vector<34x16x128xf32>
    tpu.vector_store %arg7[%c0_3, %c32, %c0_4], %3 {strides = array<i32>} : memref<34x48x128xf32, #tpu.memory_space<vmem>>, vector<34x16x128xf32>,
    %c0_i32 = arith.constant 0 : i32
    %5 = arith.cmpi eq, %arg2, %c0_i32 : i32
    %6 = arith.extui %5 : i1 to i32
    %c0_i32_5 = arith.constant 0 : i32
    %7 = arith.cmpi ne, %6, %c0_i32_5 : i32
    scf.if %7 {
      %cst_22 = arith.constant 0.000000e+00 : f32
      %25 = vector.broadcast %cst_22 : f32 to vector<9x16x128xf32>
      %c0_23 = arith.constant 0 : index
      %c16_24 = arith.constant 16 : index
      %c0_25 = arith.constant 0 : index
      %26 = vector.load %arg7[%c0_23, %c16_24, %c0_25] : memref<34x48x128xf32, #tpu.memory_space<vmem>>, vector<9x16x128xf32>
      tpu.vector_store %arg7[%c0_23, %c16_24, %c0_25], %25 {strides = array<i32>} : memref<34x48x128xf32, #tpu.memory_space<vmem>>, vector<9x16x128xf32>,
    } else {
    }
    %c0_i32_6 = arith.constant 0 : i32
    %8 = arith.cmpi sgt, %arg2, %c0_i32_6 : i32
    %9 = arith.extui %8 : i1 to i32
    %c0_i32_7 = arith.constant 0 : i32
    %10 = arith.cmpi ne, %9, %c0_i32_7 : i32
    scf.if %10 {
      %c9_i32 = arith.constant 9 : i32
      %25 = arith.subi %0, %c9_i32 : i32
      %c0_22 = arith.constant 0 : index
      %26 = arith.index_cast %25 : i32 to index
      %c0_23 = arith.constant 0 : index
      %c0_24 = arith.constant 0 : index
      %27 = vector.load %arg3[%c0_22, %26, %c0_23, %c0_24] : memref<1x16x16x128xf32, #tpu.memory_space<vmem>>, vector<1x9x16x128xf32>
      %28 = vector.shape_cast %27 : vector<1x9x16x128xf32> to vector<9x16x128xf32>
      %c0_25 = arith.constant 0 : index
      %c16_26 = arith.constant 16 : index
      %c0_27 = arith.constant 0 : index
      %29 = vector.load %arg7[%c0_25, %c16_26, %c0_27] : memref<34x48x128xf32, #tpu.memory_space<vmem>>, vector<9x16x128xf32>
      tpu.vector_store %arg7[%c0_25, %c16_26, %c0_27], %28 {strides = array<i32>} : memref<34x48x128xf32, #tpu.memory_space<vmem>>, vector<9x16x128xf32>,
    } else {
    }
    %c0_i32_8 = arith.constant 0 : i32
    %11 = arith.cmpi eq, %arg2, %c0_i32_8 : i32
    %12 = arith.extui %11 : i1 to i32
    %c0_i32_9 = arith.constant 0 : i32
    %13 = arith.cmpi ne, %12, %c0_i32_9 : i32
    scf.if %13 {
      %cst_22 = arith.constant 0.000000e+00 : f32
      %25 = vector.broadcast %cst_22 : f32 to vector<9x16x128xf32>
      %c25 = arith.constant 25 : index
      %c16_23 = arith.constant 16 : index
      %c0_24 = arith.constant 0 : index
      %26 = vector.load %arg7[%c25, %c16_23, %c0_24] : memref<34x48x128xf32, #tpu.memory_space<vmem>>, vector<9x16x128xf32>
      tpu.vector_store %arg7[%c25, %c16_23, %c0_24], %25 {strides = array<i32>} : memref<34x48x128xf32, #tpu.memory_space<vmem>>, vector<9x16x128xf32>,
    } else {
    }
    %c0_i32_10 = arith.constant 0 : i32
    %14 = arith.cmpi slt, %arg2, %c0_i32_10 : i32
    %15 = arith.extui %14 : i1 to i32
    %c0_i32_11 = arith.constant 0 : i32
    %16 = arith.cmpi ne, %15, %c0_i32_11 : i32
    scf.if %16 {
      %c16_i32_22 = arith.constant 16 : i32
      %25 = arith.addi %0, %c16_i32_22 : i32
      %c0_23 = arith.constant 0 : index
      %26 = arith.index_cast %25 : i32 to index
      %c0_24 = arith.constant 0 : index
      %c0_25 = arith.constant 0 : index
      %27 = vector.load %arg3[%c0_23, %26, %c0_24, %c0_25] : memref<1x16x16x128xf32, #tpu.memory_space<vmem>>, vector<1x9x16x128xf32>
      %28 = vector.shape_cast %27 : vector<1x9x16x128xf32> to vector<9x16x128xf32>
      %c25 = arith.constant 25 : index
      %c16_26 = arith.constant 16 : index
      %c0_27 = arith.constant 0 : index
      %29 = vector.load %arg7[%c25, %c16_26, %c0_27] : memref<34x48x128xf32, #tpu.memory_space<vmem>>, vector<9x16x128xf32>
      tpu.vector_store %arg7[%c25, %c16_26, %c0_27], %28 {strides = array<i32>} : memref<34x48x128xf32, #tpu.memory_space<vmem>>, vector<9x16x128xf32>,
    } else {
    }
    %c0_12 = arith.constant 0 : index
    %17 = arith.index_cast %0 : i32 to index
    %c0_13 = arith.constant 0 : index
    %c0_14 = arith.constant 0 : index
    %18 = vector.load %arg3[%c0_12, %17, %c0_13, %c0_14] : memref<1x16x16x128xf32, #tpu.memory_space<vmem>>, vector<1x16x16x128xf32>
    %19 = vector.shape_cast %18 : vector<1x16x16x128xf32> to vector<16x16x128xf32>
    %c9 = arith.constant 9 : index
    %c16 = arith.constant 16 : index
    %c0_15 = arith.constant 0 : index
    %20 = vector.load %arg7[%c9, %c16, %c0_15] : memref<34x48x128xf32, #tpu.memory_space<vmem>>, vector<16x16x128xf32>
    tpu.vector_store %arg7[%c9, %c16, %c0_15], %19 {strides = array<i32>} : memref<34x48x128xf32, #tpu.memory_space<vmem>>, vector<16x16x128xf32>,
    %c0_16 = arith.constant 0 : index
    %c0_17 = arith.constant 0 : index
    %21 = vector.load %arg4[%c0_16, %c0_17] : memref<49x128xf32, #tpu.memory_space<vmem>>, vector<49x128xf32>
    %c0_18 = arith.constant 0 : index
    %c0_19 = arith.constant 0 : index
    %22 = vector.load %arg5[%c0_18, %c0_19] : memref<1x128xf32, #tpu.memory_space<vmem>>, vector<1x128xf32>
    %23 = vector.shape_cast %22 : vector<1x128xf32> to vector<1x1x128xf32>
    %c0_i32_20 = arith.constant 0 : i32
    %c4_i32 = arith.constant 4 : i32
    %24 = arith.addi %c0_i32_20, %c4_i32 : i32
    %c1_i32 = arith.constant 1 : i32
    scf.for %arg8 = %c0_i32_20 to %24 step %c1_i32  : i32 {
      %c4_i32_22 = arith.constant 4 : i32
      %25 = arith.muli %arg8, %c4_i32_22 : i32
      %26 = tpu.assume_multiple %25, 4 : i32
      %cst_23 = arith.constant 0.000000e+00 : f32
      %27 = vector.broadcast %cst_23 : f32 to vector<4x16x128xf32>
      %cst_24 = arith.constant 0.000000e+00 : f32
      %28 = vector.broadcast %cst_24 : f32 to vector<4x16x128xf32>
      %c0_i32_25 = arith.constant 0 : i32
      %29 = arith.addi %26, %c0_i32_25 : i32
      %30 = arith.index_cast %29 : i32 to index
      %c7 = arith.constant 7 : index
      %c0_26 = arith.constant 0 : index
      %31 = vector.load %arg7[%30, %c7, %c0_26] : memref<34x48x128xf32, #tpu.memory_space<vmem>>, vector<4x34x128xf32>
      %32 = vector.extract_strided_slice %31 {offsets = [0, 0, 0], sizes = [4, 16, 128], strides = [1, 1, 1]} : vector<4x34x128xf32> to vector<4x16x128xf32>
      %33 = vector.extract_strided_slice %21 {offsets = [0, 0], sizes = [1, 128], strides = [1, 1]} : vector<49x128xf32> to vector<1x128xf32>
      %34 = vector.shape_cast %33 : vector<1x128xf32> to vector<128xf32>
      %35 = vector.shape_cast %34 : vector<128xf32> to vector<1x1x128xf32>
      %36 = vector.broadcast %35 : vector<1x1x128xf32> to vector<4x16x128xf32>
      %37 = arith.mulf %32, %36 : vector<4x16x128xf32>
      %38 = arith.addf %27, %37 : vector<4x16x128xf32>
      %39 = vector.extract_strided_slice %31 {offsets = [0, 3, 0], sizes = [4, 16, 128], strides = [1, 1, 1]} : vector<4x34x128xf32> to vector<4x16x128xf32>
      %40 = vector.extract_strided_slice %21 {offsets = [1, 0], sizes = [1, 128], strides = [1, 1]} : vector<49x128xf32> to vector<1x128xf32>
      %41 = vector.shape_cast %40 : vector<1x128xf32> to vector<128xf32>
      %42 = vector.shape_cast %41 : vector<128xf32> to vector<1x1x128xf32>
      %43 = vector.broadcast %42 : vector<1x1x128xf32> to vector<4x16x128xf32>
      %44 = arith.mulf %39, %43 : vector<4x16x128xf32>
      %45 = arith.addf %28, %44 : vector<4x16x128xf32>
      %46 = vector.extract_strided_slice %31 {offsets = [0, 6, 0], sizes = [4, 16, 128], strides = [1, 1, 1]} : vector<4x34x128xf32> to vector<4x16x128xf32>
      %47 = vector.extract_strided_slice %21 {offsets = [2, 0], sizes = [1, 128], strides = [1, 1]} : vector<49x128xf32> to vector<1x128xf32>
      %48 = vector.shape_cast %47 : vector<1x128xf32> to vector<128xf32>
      %49 = vector.shape_cast %48 : vector<128xf32> to vector<1x1x128xf32>
      %50 = vector.broadcast %49 : vector<1x1x128xf32> to vector<4x16x128xf32>
      %51 = arith.mulf %46, %50 : vector<4x16x128xf32>
      %52 = arith.addf %38, %51 : vector<4x16x128xf32>
      %53 = vector.extract_strided_slice %31 {offsets = [0, 9, 0], sizes = [4, 16, 128], strides = [1, 1, 1]} : vector<4x34x128xf32> to vector<4x16x128xf32>
      %54 = vector.extract_strided_slice %21 {offsets = [3, 0], sizes = [1, 128], strides = [1, 1]} : vector<49x128xf32> to vector<1x128xf32>
      %55 = vector.shape_cast %54 : vector<1x128xf32> to vector<128xf32>
      %56 = vector.shape_cast %55 : vector<128xf32> to vector<1x1x128xf32>
      %57 = vector.broadcast %56 : vector<1x1x128xf32> to vector<4x16x128xf32>
      %58 = arith.mulf %53, %57 : vector<4x16x128xf32>
      %59 = arith.addf %45, %58 : vector<4x16x128xf32>
      %60 = vector.extract_strided_slice %31 {offsets = [0, 12, 0], sizes = [4, 16, 128], strides = [1, 1, 1]} : vector<4x34x128xf32> to vector<4x16x128xf32>
      %61 = vector.extract_strided_slice %21 {offsets = [4, 0], sizes = [1, 128], strides = [1, 1]} : vector<49x128xf32> to vector<1x128xf32>
      %62 = vector.shape_cast %61 : vector<1x128xf32> to vector<128xf32>
      %63 = vector.shape_cast %62 : vector<128xf32> to vector<1x1x128xf32>
      %64 = vector.broadcast %63 : vector<1x1x128xf32> to vector<4x16x128xf32>
      %65 = arith.mulf %60, %64 : vector<4x16x128xf32>
      %66 = arith.addf %52, %65 : vector<4x16x128xf32>
      %67 = vector.extract_strided_slice %31 {offsets = [0, 15, 0], sizes = [4, 16, 128], strides = [1, 1, 1]} : vector<4x34x128xf32> to vector<4x16x128xf32>
      %68 = vector.extract_strided_slice %21 {offsets = [5, 0], sizes = [1, 128], strides = [1, 1]} : vector<49x128xf32> to vector<1x128xf32>
      %69 = vector.shape_cast %68 : vector<1x128xf32> to vector<128xf32>
      %70 = vector.shape_cast %69 : vector<128xf32> to vector<1x1x128xf32>
      %71 = vector.broadcast %70 : vector<1x1x128xf32> to vector<4x16x128xf32>
      %72 = arith.mulf %67, %71 : vector<4x16x128xf32>
      %73 = arith.addf %59, %72 : vector<4x16x128xf32>
      %74 = vector.extract_strided_slice %31 {offsets = [0, 18, 0], sizes = [4, 16, 128], strides = [1, 1, 1]} : vector<4x34x128xf32> to vector<4x16x128xf32>
      %75 = vector.extract_strided_slice %21 {offsets = [6, 0], sizes = [1, 128], strides = [1, 1]} : vector<49x128xf32> to vector<1x128xf32>
      %76 = vector.shape_cast %75 : vector<1x128xf32> to vector<128xf32>
      %77 = vector.shape_cast %76 : vector<128xf32> to vector<1x1x128xf32>
      %78 = vector.broadcast %77 : vector<1x1x128xf32> to vector<4x16x128xf32>
      %79 = arith.mulf %74, %78 : vector<4x16x128xf32>
      %80 = arith.addf %66, %79 : vector<4x16x128xf32>
      %c3_i32 = arith.constant 3 : i32
      %81 = arith.addi %26, %c3_i32 : i32
      %82 = arith.index_cast %81 : i32 to index
      %c7_27 = arith.constant 7 : index
      %c0_28 = arith.constant 0 : index
      %83 = vector.load %arg7[%82, %c7_27, %c0_28] : memref<34x48x128xf32, #tpu.memory_space<vmem>>, vector<4x34x128xf32>
      %84 = vector.extract_strided_slice %83 {offsets = [0, 0, 0], sizes = [4, 16, 128], strides = [1, 1, 1]} : vector<4x34x128xf32> to vector<4x16x128xf32>
      %85 = vector.extract_strided_slice %21 {offsets = [7, 0], sizes = [1, 128], strides = [1, 1]} : vector<49x128xf32> to vector<1x128xf32>
      %86 = vector.shape_cast %85 : vector<1x128xf32> to vector<128xf32>
      %87 = vector.shape_cast %86 : vector<128xf32> to vector<1x1x128xf32>
      %88 = vector.broadcast %87 : vector<1x1x128xf32> to vector<4x16x128xf32>
      %89 = arith.mulf %84, %88 : vector<4x16x128xf32>
      %90 = arith.addf %80, %89 : vector<4x16x128xf32>
      %91 = vector.extract_strided_slice %83 {offsets = [0, 3, 0], sizes = [4, 16, 128], strides = [1, 1, 1]} : vector<4x34x128xf32> to vector<4x16x128xf32>
      %92 = vector.extract_strided_slice %21 {offsets = [8, 0], sizes = [1, 128], strides = [1, 1]} : vector<49x128xf32> to vector<1x128xf32>
      %93 = vector.shape_cast %92 : vector<1x128xf32> to vector<128xf32>
      %94 = vector.shape_cast %93 : vector<128xf32> to vector<1x1x128xf32>
      %95 = vector.broadcast %94 : vector<1x1x128xf32> to vector<4x16x128xf32>
      %96 = arith.mulf %91, %95 : vector<4x16x128xf32>
      %97 = arith.addf %73, %96 : vector<4x16x128xf32>
      %98 = vector.extract_strided_slice %83 {offsets = [0, 6, 0], sizes = [4, 16, 128], strides = [1, 1, 1]} : vector<4x34x128xf32> to vector<4x16x128xf32>
      %99 = vector.extract_strided_slice %21 {offsets = [9, 0], sizes = [1, 128], strides = [1, 1]} : vector<49x128xf32> to vector<1x128xf32>
      %100 = vector.shape_cast %99 : vector<1x128xf32> to vector<128xf32>
      %101 = vector.shape_cast %100 : vector<128xf32> to vector<1x1x128xf32>
      %102 = vector.broadcast %101 : vector<1x1x128xf32> to vector<4x16x128xf32>
      %103 = arith.mulf %98, %102 : vector<4x16x128xf32>
      %104 = arith.addf %90, %103 : vector<4x16x128xf32>
      %105 = vector.extract_strided_slice %83 {offsets = [0, 9, 0], sizes = [4, 16, 128], strides = [1, 1, 1]} : vector<4x34x128xf32> to vector<4x16x128xf32>
      %106 = vector.extract_strided_slice %21 {offsets = [10, 0], sizes = [1, 128], strides = [1, 1]} : vector<49x128xf32> to vector<1x128xf32>
      %107 = vector.shape_cast %106 : vector<1x128xf32> to vector<128xf32>
      %108 = vector.shape_cast %107 : vector<128xf32> to vector<1x1x128xf32>
      %109 = vector.broadcast %108 : vector<1x1x128xf32> to vector<4x16x128xf32>
      %110 = arith.mulf %105, %109 : vector<4x16x128xf32>
      %111 = arith.addf %97, %110 : vector<4x16x128xf32>
      %112 = vector.extract_strided_slice %83 {offsets = [0, 12, 0], sizes = [4, 16, 128], strides = [1, 1, 1]} : vector<4x34x128xf32> to vector<4x16x128xf32>
      %113 = vector.extract_strided_slice %21 {offsets = [11, 0], sizes = [1, 128], strides = [1, 1]} : vector<49x128xf32> to vector<1x128xf32>
      %114 = vector.shape_cast %113 : vector<1x128xf32> to vector<128xf32>
      %115 = vector.shape_cast %114 : vector<128xf32> to vector<1x1x128xf32>
      %116 = vector.broadcast %115 : vector<1x1x128xf32> to vector<4x16x128xf32>
      %117 = arith.mulf %112, %116 : vector<4x16x128xf32>
      %118 = arith.addf %104, %117 : vector<4x16x128xf32>
      %119 = vector.extract_strided_slice %83 {offsets = [0, 15, 0], sizes = [4, 16, 128], strides = [1, 1, 1]} : vector<4x34x128xf32> to vector<4x16x128xf32>
      %120 = vector.extract_strided_slice %21 {offsets = [12, 0], sizes = [1, 128], strides = [1, 1]} : vector<49x128xf32> to vector<1x128xf32>
      %121 = vector.shape_cast %120 : vector<1x128xf32> to vector<128xf32>
      %122 = vector.shape_cast %121 : vector<128xf32> to vector<1x1x128xf32>
      %123 = vector.broadcast %122 : vector<1x1x128xf32> to vector<4x16x128xf32>
      %124 = arith.mulf %119, %123 : vector<4x16x128xf32>
      %125 = arith.addf %111, %124 : vector<4x16x128xf32>
      %126 = vector.extract_strided_slice %83 {offsets = [0, 18, 0], sizes = [4, 16, 128], strides = [1, 1, 1]} : vector<4x34x128xf32> to vector<4x16x128xf32>
      %127 = vector.extract_strided_slice %21 {offsets = [13, 0], sizes = [1, 128], strides = [1, 1]} : vector<49x128xf32> to vector<1x128xf32>
      %128 = vector.shape_cast %127 : vector<1x128xf32> to vector<128xf32>
      %129 = vector.shape_cast %128 : vector<128xf32> to vector<1x1x128xf32>
      %130 = vector.broadcast %129 : vector<1x1x128xf32> to vector<4x16x128xf32>
      %131 = arith.mulf %126, %130 : vector<4x16x128xf32>
      %132 = arith.addf %118, %131 : vector<4x16x128xf32>
      %c6_i32 = arith.constant 6 : i32
      %133 = arith.addi %26, %c6_i32 : i32
      %134 = arith.index_cast %133 : i32 to index
      %c7_29 = arith.constant 7 : index
      %c0_30 = arith.constant 0 : index
      %135 = vector.load %arg7[%134, %c7_29, %c0_30] : memref<34x48x128xf32, #tpu.memory_space<vmem>>, vector<4x34x128xf32>
      %136 = vector.extract_strided_slice %135 {offsets = [0, 0, 0], sizes = [4, 16, 128], strides = [1, 1, 1]} : vector<4x34x128xf32> to vector<4x16x128xf32>
      %137 = vector.extract_strided_slice %21 {offsets = [14, 0], sizes = [1, 128], strides = [1, 1]} : vector<49x128xf32> to vector<1x128xf32>
      %138 = vector.shape_cast %137 : vector<1x128xf32> to vector<128xf32>
      %139 = vector.shape_cast %138 : vector<128xf32> to vector<1x1x128xf32>
      %140 = vector.broadcast %139 : vector<1x1x128xf32> to vector<4x16x128xf32>
      %141 = arith.mulf %136, %140 : vector<4x16x128xf32>
      %142 = arith.addf %132, %141 : vector<4x16x128xf32>
      %143 = vector.extract_strided_slice %135 {offsets = [0, 3, 0], sizes = [4, 16, 128], strides = [1, 1, 1]} : vector<4x34x128xf32> to vector<4x16x128xf32>
      %144 = vector.extract_strided_slice %21 {offsets = [15, 0], sizes = [1, 128], strides = [1, 1]} : vector<49x128xf32> to vector<1x128xf32>
      %145 = vector.shape_cast %144 : vector<1x128xf32> to vector<128xf32>
      %146 = vector.shape_cast %145 : vector<128xf32> to vector<1x1x128xf32>
      %147 = vector.broadcast %146 : vector<1x1x128xf32> to vector<4x16x128xf32>
      %148 = arith.mulf %143, %147 : vector<4x16x128xf32>
      %149 = arith.addf %125, %148 : vector<4x16x128xf32>
      %150 = vector.extract_strided_slice %135 {offsets = [0, 6, 0], sizes = [4, 16, 128], strides = [1, 1, 1]} : vector<4x34x128xf32> to vector<4x16x128xf32>
      %151 = vector.extract_strided_slice %21 {offsets = [16, 0], sizes = [1, 128], strides = [1, 1]} : vector<49x128xf32> to vector<1x128xf32>
      %152 = vector.shape_cast %151 : vector<1x128xf32> to vector<128xf32>
      %153 = vector.shape_cast %152 : vector<128xf32> to vector<1x1x128xf32>
      %154 = vector.broadcast %153 : vector<1x1x128xf32> to vector<4x16x128xf32>
      %155 = arith.mulf %150, %154 : vector<4x16x128xf32>
      %156 = arith.addf %142, %155 : vector<4x16x128xf32>
      %157 = vector.extract_strided_slice %135 {offsets = [0, 9, 0], sizes = [4, 16, 128], strides = [1, 1, 1]} : vector<4x34x128xf32> to vector<4x16x128xf32>
      %158 = vector.extract_strided_slice %21 {offsets = [17, 0], sizes = [1, 128], strides = [1, 1]} : vector<49x128xf32> to vector<1x128xf32>
      %159 = vector.shape_cast %158 : vector<1x128xf32> to vector<128xf32>
      %160 = vector.shape_cast %159 : vector<128xf32> to vector<1x1x128xf32>
      %161 = vector.broadcast %160 : vector<1x1x128xf32> to vector<4x16x128xf32>
      %162 = arith.mulf %157, %161 : vector<4x16x128xf32>
      %163 = arith.addf %149, %162 : vector<4x16x128xf32>
      %164 = vector.extract_strided_slice %135 {offsets = [0, 12, 0], sizes = [4, 16, 128], strides = [1, 1, 1]} : vector<4x34x128xf32> to vector<4x16x128xf32>
      %165 = vector.extract_strided_slice %21 {offsets = [18, 0], sizes = [1, 128], strides = [1, 1]} : vector<49x128xf32> to vector<1x128xf32>
      %166 = vector.shape_cast %165 : vector<1x128xf32> to vector<128xf32>
      %167 = vector.shape_cast %166 : vector<128xf32> to vector<1x1x128xf32>
      %168 = vector.broadcast %167 : vector<1x1x128xf32> to vector<4x16x128xf32>
      %169 = arith.mulf %164, %168 : vector<4x16x128xf32>
      %170 = arith.addf %156, %169 : vector<4x16x128xf32>
      %171 = vector.extract_strided_slice %135 {offsets = [0, 15, 0], sizes = [4, 16, 128], strides = [1, 1, 1]} : vector<4x34x128xf32> to vector<4x16x128xf32>
      %172 = vector.extract_strided_slice %21 {offsets = [19, 0], sizes = [1, 128], strides = [1, 1]} : vector<49x128xf32> to vector<1x128xf32>
      %173 = vector.shape_cast %172 : vector<1x128xf32> to vector<128xf32>
      %174 = vector.shape_cast %173 : vector<128xf32> to vector<1x1x128xf32>
      %175 = vector.broadcast %174 : vector<1x1x128xf32> to vector<4x16x128xf32>
      %176 = arith.mulf %171, %175 : vector<4x16x128xf32>
      %177 = arith.addf %163, %176 : vector<4x16x128xf32>
      %178 = vector.extract_strided_slice %135 {offsets = [0, 18, 0], sizes = [4, 16, 128], strides = [1, 1, 1]} : vector<4x34x128xf32> to vector<4x16x128xf32>
      %179 = vector.extract_strided_slice %21 {offsets = [20, 0], sizes = [1, 128], strides = [1, 1]} : vector<49x128xf32> to vector<1x128xf32>
      %180 = vector.shape_cast %179 : vector<1x128xf32> to vector<128xf32>
      %181 = vector.shape_cast %180 : vector<128xf32> to vector<1x1x128xf32>
      %182 = vector.broadcast %181 : vector<1x1x128xf32> to vector<4x16x128xf32>
      %183 = arith.mulf %178, %182 : vector<4x16x128xf32>
      %184 = arith.addf %170, %183 : vector<4x16x128xf32>
      %c9_i32 = arith.constant 9 : i32
      %185 = arith.addi %26, %c9_i32 : i32
      %186 = arith.index_cast %185 : i32 to index
      %c7_31 = arith.constant 7 : index
      %c0_32 = arith.constant 0 : index
      %187 = vector.load %arg7[%186, %c7_31, %c0_32] : memref<34x48x128xf32, #tpu.memory_space<vmem>>, vector<4x34x128xf32>
      %188 = vector.extract_strided_slice %187 {offsets = [0, 0, 0], sizes = [4, 16, 128], strides = [1, 1, 1]} : vector<4x34x128xf32> to vector<4x16x128xf32>
      %189 = vector.extract_strided_slice %21 {offsets = [21, 0], sizes = [1, 128], strides = [1, 1]} : vector<49x128xf32> to vector<1x128xf32>
      %190 = vector.shape_cast %189 : vector<1x128xf32> to vector<128xf32>
      %191 = vector.shape_cast %190 : vector<128xf32> to vector<1x1x128xf32>
      %192 = vector.broadcast %191 : vector<1x1x128xf32> to vector<4x16x128xf32>
      %193 = arith.mulf %188, %192 : vector<4x16x128xf32>
      %194 = arith.addf %184, %193 : vector<4x16x128xf32>
      %195 = vector.extract_strided_slice %187 {offsets = [0, 3, 0], sizes = [4, 16, 128], strides = [1, 1, 1]} : vector<4x34x128xf32> to vector<4x16x128xf32>
      %196 = vector.extract_strided_slice %21 {offsets = [22, 0], sizes = [1, 128], strides = [1, 1]} : vector<49x128xf32> to vector<1x128xf32>
      %197 = vector.shape_cast %196 : vector<1x128xf32> to vector<128xf32>
      %198 = vector.shape_cast %197 : vector<128xf32> to vector<1x1x128xf32>
      %199 = vector.broadcast %198 : vector<1x1x128xf32> to vector<4x16x128xf32>
      %200 = arith.mulf %195, %199 : vector<4x16x128xf32>
      %201 = arith.addf %177, %200 : vector<4x16x128xf32>
      %202 = vector.extract_strided_slice %187 {offsets = [0, 6, 0], sizes = [4, 16, 128], strides = [1, 1, 1]} : vector<4x34x128xf32> to vector<4x16x128xf32>
      %203 = vector.extract_strided_slice %21 {offsets = [23, 0], sizes = [1, 128], strides = [1, 1]} : vector<49x128xf32> to vector<1x128xf32>
      %204 = vector.shape_cast %203 : vector<1x128xf32> to vector<128xf32>
      %205 = vector.shape_cast %204 : vector<128xf32> to vector<1x1x128xf32>
      %206 = vector.broadcast %205 : vector<1x1x128xf32> to vector<4x16x128xf32>
      %207 = arith.mulf %202, %206 : vector<4x16x128xf32>
      %208 = arith.addf %194, %207 : vector<4x16x128xf32>
      %209 = vector.extract_strided_slice %187 {offsets = [0, 9, 0], sizes = [4, 16, 128], strides = [1, 1, 1]} : vector<4x34x128xf32> to vector<4x16x128xf32>
      %210 = vector.extract_strided_slice %21 {offsets = [24, 0], sizes = [1, 128], strides = [1, 1]} : vector<49x128xf32> to vector<1x128xf32>
      %211 = vector.shape_cast %210 : vector<1x128xf32> to vector<128xf32>
      %212 = vector.shape_cast %211 : vector<128xf32> to vector<1x1x128xf32>
      %213 = vector.broadcast %212 : vector<1x1x128xf32> to vector<4x16x128xf32>
      %214 = arith.mulf %209, %213 : vector<4x16x128xf32>
      %215 = arith.addf %201, %214 : vector<4x16x128xf32>
      %216 = vector.extract_strided_slice %187 {offsets = [0, 12, 0], sizes = [4, 16, 128], strides = [1, 1, 1]} : vector<4x34x128xf32> to vector<4x16x128xf32>
      %217 = vector.extract_strided_slice %21 {offsets = [25, 0], sizes = [1, 128], strides = [1, 1]} : vector<49x128xf32> to vector<1x128xf32>
      %218 = vector.shape_cast %217 : vector<1x128xf32> to vector<128xf32>
      %219 = vector.shape_cast %218 : vector<128xf32> to vector<1x1x128xf32>
      %220 = vector.broadcast %219 : vector<1x1x128xf32> to vector<4x16x128xf32>
      %221 = arith.mulf %216, %220 : vector<4x16x128xf32>
      %222 = arith.addf %208, %221 : vector<4x16x128xf32>
      %223 = vector.extract_strided_slice %187 {offsets = [0, 15, 0], sizes = [4, 16, 128], strides = [1, 1, 1]} : vector<4x34x128xf32> to vector<4x16x128xf32>
      %224 = vector.extract_strided_slice %21 {offsets = [26, 0], sizes = [1, 128], strides = [1, 1]} : vector<49x128xf32> to vector<1x128xf32>
      %225 = vector.shape_cast %224 : vector<1x128xf32> to vector<128xf32>
      %226 = vector.shape_cast %225 : vector<128xf32> to vector<1x1x128xf32>
      %227 = vector.broadcast %226 : vector<1x1x128xf32> to vector<4x16x128xf32>
      %228 = arith.mulf %223, %227 : vector<4x16x128xf32>
      %229 = arith.addf %215, %228 : vector<4x16x128xf32>
      %230 = vector.extract_strided_slice %187 {offsets = [0, 18, 0], sizes = [4, 16, 128], strides = [1, 1, 1]} : vector<4x34x128xf32> to vector<4x16x128xf32>
      %231 = vector.extract_strided_slice %21 {offsets = [27, 0], sizes = [1, 128], strides = [1, 1]} : vector<49x128xf32> to vector<1x128xf32>
      %232 = vector.shape_cast %231 : vector<1x128xf32> to vector<128xf32>
      %233 = vector.shape_cast %232 : vector<128xf32> to vector<1x1x128xf32>
      %234 = vector.broadcast %233 : vector<1x1x128xf32> to vector<4x16x128xf32>
      %235 = arith.mulf %230, %234 : vector<4x16x128xf32>
      %236 = arith.addf %222, %235 : vector<4x16x128xf32>
      %c12_i32 = arith.constant 12 : i32
      %237 = arith.addi %26, %c12_i32 : i32
      %238 = arith.index_cast %237 : i32 to index
      %c7_33 = arith.constant 7 : index
      %c0_34 = arith.constant 0 : index
      %239 = vector.load %arg7[%238, %c7_33, %c0_34] : memref<34x48x128xf32, #tpu.memory_space<vmem>>, vector<4x34x128xf32>
      %240 = vector.extract_strided_slice %239 {offsets = [0, 0, 0], sizes = [4, 16, 128], strides = [1, 1, 1]} : vector<4x34x128xf32> to vector<4x16x128xf32>
      %241 = vector.extract_strided_slice %21 {offsets = [28, 0], sizes = [1, 128], strides = [1, 1]} : vector<49x128xf32> to vector<1x128xf32>
      %242 = vector.shape_cast %241 : vector<1x128xf32> to vector<128xf32>
      %243 = vector.shape_cast %242 : vector<128xf32> to vector<1x1x128xf32>
      %244 = vector.broadcast %243 : vector<1x1x128xf32> to vector<4x16x128xf32>
      %245 = arith.mulf %240, %244 : vector<4x16x128xf32>
      %246 = arith.addf %236, %245 : vector<4x16x128xf32>
      %247 = vector.extract_strided_slice %239 {offsets = [0, 3, 0], sizes = [4, 16, 128], strides = [1, 1, 1]} : vector<4x34x128xf32> to vector<4x16x128xf32>
      %248 = vector.extract_strided_slice %21 {offsets = [29, 0], sizes = [1, 128], strides = [1, 1]} : vector<49x128xf32> to vector<1x128xf32>
      %249 = vector.shape_cast %248 : vector<1x128xf32> to vector<128xf32>
      %250 = vector.shape_cast %249 : vector<128xf32> to vector<1x1x128xf32>
      %251 = vector.broadcast %250 : vector<1x1x128xf32> to vector<4x16x128xf32>
      %252 = arith.mulf %247, %251 : vector<4x16x128xf32>
      %253 = arith.addf %229, %252 : vector<4x16x128xf32>
      %254 = vector.extract_strided_slice %239 {offsets = [0, 6, 0], sizes = [4, 16, 128], strides = [1, 1, 1]} : vector<4x34x128xf32> to vector<4x16x128xf32>
      %255 = vector.extract_strided_slice %21 {offsets = [30, 0], sizes = [1, 128], strides = [1, 1]} : vector<49x128xf32> to vector<1x128xf32>
      %256 = vector.shape_cast %255 : vector<1x128xf32> to vector<128xf32>
      %257 = vector.shape_cast %256 : vector<128xf32> to vector<1x1x128xf32>
      %258 = vector.broadcast %257 : vector<1x1x128xf32> to vector<4x16x128xf32>
      %259 = arith.mulf %254, %258 : vector<4x16x128xf32>
      %260 = arith.addf %246, %259 : vector<4x16x128xf32>
      %261 = vector.extract_strided_slice %239 {offsets = [0, 9, 0], sizes = [4, 16, 128], strides = [1, 1, 1]} : vector<4x34x128xf32> to vector<4x16x128xf32>
      %262 = vector.extract_strided_slice %21 {offsets = [31, 0], sizes = [1, 128], strides = [1, 1]} : vector<49x128xf32> to vector<1x128xf32>
      %263 = vector.shape_cast %262 : vector<1x128xf32> to vector<128xf32>
      %264 = vector.shape_cast %263 : vector<128xf32> to vector<1x1x128xf32>
      %265 = vector.broadcast %264 : vector<1x1x128xf32> to vector<4x16x128xf32>
      %266 = arith.mulf %261, %265 : vector<4x16x128xf32>
      %267 = arith.addf %253, %266 : vector<4x16x128xf32>
      %268 = vector.extract_strided_slice %239 {offsets = [0, 12, 0], sizes = [4, 16, 128], strides = [1, 1, 1]} : vector<4x34x128xf32> to vector<4x16x128xf32>
      %269 = vector.extract_strided_slice %21 {offsets = [32, 0], sizes = [1, 128], strides = [1, 1]} : vector<49x128xf32> to vector<1x128xf32>
      %270 = vector.shape_cast %269 : vector<1x128xf32> to vector<128xf32>
      %271 = vector.shape_cast %270 : vector<128xf32> to vector<1x1x128xf32>
      %272 = vector.broadcast %271 : vector<1x1x128xf32> to vector<4x16x128xf32>
      %273 = arith.mulf %268, %272 : vector<4x16x128xf32>
      %274 = arith.addf %260, %273 : vector<4x16x128xf32>
      %275 = vector.extract_strided_slice %239 {offsets = [0, 15, 0], sizes = [4, 16, 128], strides = [1, 1, 1]} : vector<4x34x128xf32> to vector<4x16x128xf32>
      %276 = vector.extract_strided_slice %21 {offsets = [33, 0], sizes = [1, 128], strides = [1, 1]} : vector<49x128xf32> to vector<1x128xf32>
      %277 = vector.shape_cast %276 : vector<1x128xf32> to vector<128xf32>
      %278 = vector.shape_cast %277 : vector<128xf32> to vector<1x1x128xf32>
      %279 = vector.broadcast %278 : vector<1x1x128xf32> to vector<4x16x128xf32>
      %280 = arith.mulf %275, %279 : vector<4x16x128xf32>
      %281 = arith.addf %267, %280 : vector<4x16x128xf32>
      %282 = vector.extract_strided_slice %239 {offsets = [0, 18, 0], sizes = [4, 16, 128], strides = [1, 1, 1]} : vector<4x34x128xf32> to vector<4x16x128xf32>
      %283 = vector.extract_strided_slice %21 {offsets = [34, 0], sizes = [1, 128], strides = [1, 1]} : vector<49x128xf32> to vector<1x128xf32>
      %284 = vector.shape_cast %283 : vector<1x128xf32> to vector<128xf32>
      %285 = vector.shape_cast %284 : vector<128xf32> to vector<1x1x128xf32>
      %286 = vector.broadcast %285 : vector<1x1x128xf32> to vector<4x16x128xf32>
      %287 = arith.mulf %282, %286 : vector<4x16x128xf32>
      %288 = arith.addf %274, %287 : vector<4x16x128xf32>
      %c15_i32 = arith.constant 15 : i32
      %289 = arith.addi %26, %c15_i32 : i32
      %290 = arith.index_cast %289 : i32 to index
      %c7_35 = arith.constant 7 : index
      %c0_36 = arith.constant 0 : index
      %291 = vector.load %arg7[%290, %c7_35, %c0_36] : memref<34x48x128xf32, #tpu.memory_space<vmem>>, vector<4x34x128xf32>
      %292 = vector.extract_strided_slice %291 {offsets = [0, 0, 0], sizes = [4, 16, 128], strides = [1, 1, 1]} : vector<4x34x128xf32> to vector<4x16x128xf32>
      %293 = vector.extract_strided_slice %21 {offsets = [35, 0], sizes = [1, 128], strides = [1, 1]} : vector<49x128xf32> to vector<1x128xf32>
      %294 = vector.shape_cast %293 : vector<1x128xf32> to vector<128xf32>
      %295 = vector.shape_cast %294 : vector<128xf32> to vector<1x1x128xf32>
      %296 = vector.broadcast %295 : vector<1x1x128xf32> to vector<4x16x128xf32>
      %297 = arith.mulf %292, %296 : vector<4x16x128xf32>
      %298 = arith.addf %288, %297 : vector<4x16x128xf32>
      %299 = vector.extract_strided_slice %291 {offsets = [0, 3, 0], sizes = [4, 16, 128], strides = [1, 1, 1]} : vector<4x34x128xf32> to vector<4x16x128xf32>
      %300 = vector.extract_strided_slice %21 {offsets = [36, 0], sizes = [1, 128], strides = [1, 1]} : vector<49x128xf32> to vector<1x128xf32>
      %301 = vector.shape_cast %300 : vector<1x128xf32> to vector<128xf32>
      %302 = vector.shape_cast %301 : vector<128xf32> to vector<1x1x128xf32>
      %303 = vector.broadcast %302 : vector<1x1x128xf32> to vector<4x16x128xf32>
      %304 = arith.mulf %299, %303 : vector<4x16x128xf32>
      %305 = arith.addf %281, %304 : vector<4x16x128xf32>
      %306 = vector.extract_strided_slice %291 {offsets = [0, 6, 0], sizes = [4, 16, 128], strides = [1, 1, 1]} : vector<4x34x128xf32> to vector<4x16x128xf32>
      %307 = vector.extract_strided_slice %21 {offsets = [37, 0], sizes = [1, 128], strides = [1, 1]} : vector<49x128xf32> to vector<1x128xf32>
      %308 = vector.shape_cast %307 : vector<1x128xf32> to vector<128xf32>
      %309 = vector.shape_cast %308 : vector<128xf32> to vector<1x1x128xf32>
      %310 = vector.broadcast %309 : vector<1x1x128xf32> to vector<4x16x128xf32>
      %311 = arith.mulf %306, %310 : vector<4x16x128xf32>
      %312 = arith.addf %298, %311 : vector<4x16x128xf32>
      %313 = vector.extract_strided_slice %291 {offsets = [0, 9, 0], sizes = [4, 16, 128], strides = [1, 1, 1]} : vector<4x34x128xf32> to vector<4x16x128xf32>
      %314 = vector.extract_strided_slice %21 {offsets = [38, 0], sizes = [1, 128], strides = [1, 1]} : vector<49x128xf32> to vector<1x128xf32>
      %315 = vector.shape_cast %314 : vector<1x128xf32> to vector<128xf32>
      %316 = vector.shape_cast %315 : vector<128xf32> to vector<1x1x128xf32>
      %317 = vector.broadcast %316 : vector<1x1x128xf32> to vector<4x16x128xf32>
      %318 = arith.mulf %313, %317 : vector<4x16x128xf32>
      %319 = arith.addf %305, %318 : vector<4x16x128xf32>
      %320 = vector.extract_strided_slice %291 {offsets = [0, 12, 0], sizes = [4, 16, 128], strides = [1, 1, 1]} : vector<4x34x128xf32> to vector<4x16x128xf32>
      %321 = vector.extract_strided_slice %21 {offsets = [39, 0], sizes = [1, 128], strides = [1, 1]} : vector<49x128xf32> to vector<1x128xf32>
      %322 = vector.shape_cast %321 : vector<1x128xf32> to vector<128xf32>
      %323 = vector.shape_cast %322 : vector<128xf32> to vector<1x1x128xf32>
      %324 = vector.broadcast %323 : vector<1x1x128xf32> to vector<4x16x128xf32>
      %325 = arith.mulf %320, %324 : vector<4x16x128xf32>
      %326 = arith.addf %312, %325 : vector<4x16x128xf32>
      %327 = vector.extract_strided_slice %291 {offsets = [0, 15, 0], sizes = [4, 16, 128], strides = [1, 1, 1]} : vector<4x34x128xf32> to vector<4x16x128xf32>
      %328 = vector.extract_strided_slice %21 {offsets = [40, 0], sizes = [1, 128], strides = [1, 1]} : vector<49x128xf32> to vector<1x128xf32>
      %329 = vector.shape_cast %328 : vector<1x128xf32> to vector<128xf32>
      %330 = vector.shape_cast %329 : vector<128xf32> to vector<1x1x128xf32>
      %331 = vector.broadcast %330 : vector<1x1x128xf32> to vector<4x16x128xf32>
      %332 = arith.mulf %327, %331 : vector<4x16x128xf32>
      %333 = arith.addf %319, %332 : vector<4x16x128xf32>
      %334 = vector.extract_strided_slice %291 {offsets = [0, 18, 0], sizes = [4, 16, 128], strides = [1, 1, 1]} : vector<4x34x128xf32> to vector<4x16x128xf32>
      %335 = vector.extract_strided_slice %21 {offsets = [41, 0], sizes = [1, 128], strides = [1, 1]} : vector<49x128xf32> to vector<1x128xf32>
      %336 = vector.shape_cast %335 : vector<1x128xf32> to vector<128xf32>
      %337 = vector.shape_cast %336 : vector<128xf32> to vector<1x1x128xf32>
      %338 = vector.broadcast %337 : vector<1x1x128xf32> to vector<4x16x128xf32>
      %339 = arith.mulf %334, %338 : vector<4x16x128xf32>
      %340 = arith.addf %326, %339 : vector<4x16x128xf32>
      %c18_i32 = arith.constant 18 : i32
      %341 = arith.addi %26, %c18_i32 : i32
      %342 = arith.index_cast %341 : i32 to index
      %c7_37 = arith.constant 7 : index
      %c0_38 = arith.constant 0 : index
      %343 = vector.load %arg7[%342, %c7_37, %c0_38] : memref<34x48x128xf32, #tpu.memory_space<vmem>>, vector<4x34x128xf32>
      %344 = vector.extract_strided_slice %343 {offsets = [0, 0, 0], sizes = [4, 16, 128], strides = [1, 1, 1]} : vector<4x34x128xf32> to vector<4x16x128xf32>
      %345 = vector.extract_strided_slice %21 {offsets = [42, 0], sizes = [1, 128], strides = [1, 1]} : vector<49x128xf32> to vector<1x128xf32>
      %346 = vector.shape_cast %345 : vector<1x128xf32> to vector<128xf32>
      %347 = vector.shape_cast %346 : vector<128xf32> to vector<1x1x128xf32>
      %348 = vector.broadcast %347 : vector<1x1x128xf32> to vector<4x16x128xf32>
      %349 = arith.mulf %344, %348 : vector<4x16x128xf32>
      %350 = arith.addf %340, %349 : vector<4x16x128xf32>
      %351 = vector.extract_strided_slice %343 {offsets = [0, 3, 0], sizes = [4, 16, 128], strides = [1, 1, 1]} : vector<4x34x128xf32> to vector<4x16x128xf32>
      %352 = vector.extract_strided_slice %21 {offsets = [43, 0], sizes = [1, 128], strides = [1, 1]} : vector<49x128xf32> to vector<1x128xf32>
      %353 = vector.shape_cast %352 : vector<1x128xf32> to vector<128xf32>
      %354 = vector.shape_cast %353 : vector<128xf32> to vector<1x1x128xf32>
      %355 = vector.broadcast %354 : vector<1x1x128xf32> to vector<4x16x128xf32>
      %356 = arith.mulf %351, %355 : vector<4x16x128xf32>
      %357 = arith.addf %333, %356 : vector<4x16x128xf32>
      %358 = vector.extract_strided_slice %343 {offsets = [0, 6, 0], sizes = [4, 16, 128], strides = [1, 1, 1]} : vector<4x34x128xf32> to vector<4x16x128xf32>
      %359 = vector.extract_strided_slice %21 {offsets = [44, 0], sizes = [1, 128], strides = [1, 1]} : vector<49x128xf32> to vector<1x128xf32>
      %360 = vector.shape_cast %359 : vector<1x128xf32> to vector<128xf32>
      %361 = vector.shape_cast %360 : vector<128xf32> to vector<1x1x128xf32>
      %362 = vector.broadcast %361 : vector<1x1x128xf32> to vector<4x16x128xf32>
      %363 = arith.mulf %358, %362 : vector<4x16x128xf32>
      %364 = arith.addf %350, %363 : vector<4x16x128xf32>
      %365 = vector.extract_strided_slice %343 {offsets = [0, 9, 0], sizes = [4, 16, 128], strides = [1, 1, 1]} : vector<4x34x128xf32> to vector<4x16x128xf32>
      %366 = vector.extract_strided_slice %21 {offsets = [45, 0], sizes = [1, 128], strides = [1, 1]} : vector<49x128xf32> to vector<1x128xf32>
      %367 = vector.shape_cast %366 : vector<1x128xf32> to vector<128xf32>
      %368 = vector.shape_cast %367 : vector<128xf32> to vector<1x1x128xf32>
      %369 = vector.broadcast %368 : vector<1x1x128xf32> to vector<4x16x128xf32>
      %370 = arith.mulf %365, %369 : vector<4x16x128xf32>
      %371 = arith.addf %357, %370 : vector<4x16x128xf32>
      %372 = vector.extract_strided_slice %343 {offsets = [0, 12, 0], sizes = [4, 16, 128], strides = [1, 1, 1]} : vector<4x34x128xf32> to vector<4x16x128xf32>
      %373 = vector.extract_strided_slice %21 {offsets = [46, 0], sizes = [1, 128], strides = [1, 1]} : vector<49x128xf32> to vector<1x128xf32>
      %374 = vector.shape_cast %373 : vector<1x128xf32> to vector<128xf32>
      %375 = vector.shape_cast %374 : vector<128xf32> to vector<1x1x128xf32>
      %376 = vector.broadcast %375 : vector<1x1x128xf32> to vector<4x16x128xf32>
      %377 = arith.mulf %372, %376 : vector<4x16x128xf32>
      %378 = arith.addf %364, %377 : vector<4x16x128xf32>
      %379 = vector.extract_strided_slice %343 {offsets = [0, 15, 0], sizes = [4, 16, 128], strides = [1, 1, 1]} : vector<4x34x128xf32> to vector<4x16x128xf32>
      %380 = vector.extract_strided_slice %21 {offsets = [47, 0], sizes = [1, 128], strides = [1, 1]} : vector<49x128xf32> to vector<1x128xf32>
      %381 = vector.shape_cast %380 : vector<1x128xf32> to vector<128xf32>
      %382 = vector.shape_cast %381 : vector<128xf32> to vector<1x1x128xf32>
      %383 = vector.broadcast %382 : vector<1x1x128xf32> to vector<4x16x128xf32>
      %384 = arith.mulf %379, %383 : vector<4x16x128xf32>
      %385 = arith.addf %371, %384 : vector<4x16x128xf32>
      %386 = vector.extract_strided_slice %343 {offsets = [0, 18, 0], sizes = [4, 16, 128], strides = [1, 1, 1]} : vector<4x34x128xf32> to vector<4x16x128xf32>
      %387 = vector.extract_strided_slice %21 {offsets = [48, 0], sizes = [1, 128], strides = [1, 1]} : vector<49x128xf32> to vector<1x128xf32>
      %388 = vector.shape_cast %387 : vector<1x128xf32> to vector<128xf32>
      %389 = vector.shape_cast %388 : vector<128xf32> to vector<1x1x128xf32>
      %390 = vector.broadcast %389 : vector<1x1x128xf32> to vector<4x16x128xf32>
      %391 = arith.mulf %386, %390 : vector<4x16x128xf32>
      %392 = arith.addf %378, %391 : vector<4x16x128xf32>
      %393 = arith.addf %392, %385 : vector<4x16x128xf32>
      %394 = vector.broadcast %23 : vector<1x1x128xf32> to vector<4x16x128xf32>
      %395 = arith.addf %393, %394 : vector<4x16x128xf32>
      %c0_39 = arith.constant 0 : index
      %396 = arith.index_cast %26 : i32 to index
      %c0_40 = arith.constant 0 : index
      %c0_41 = arith.constant 0 : index
      %397 = vector.load %arg6[%c0_39, %396, %c0_40, %c0_41] : memref<1x16x16x128xf32, #tpu.memory_space<vmem>>, vector<1x4x16x128xf32>
      %398 = vector.shape_cast %397 : vector<1x4x16x128xf32> to vector<4x16x128xf32>
      %399 = vector.shape_cast %395 : vector<4x16x128xf32> to vector<1x4x16x128xf32>
      tpu.vector_store %arg6[%c0_39, %396, %c0_40, %c0_41], %399 {strides = array<i32>} : memref<1x16x16x128xf32, #tpu.memory_space<vmem>>, vector<1x4x16x128xf32>,
    }
    %c4_i32_21 = arith.constant 4 : i32
    return
  }
  func.func @transform_0(%arg0: i32, %arg1: i32, %arg2: i32) -> (i32, i32, i32, i32) {
    %c0_i32 = arith.constant 0 : i32
    %c0_i32_0 = arith.constant 0 : i32
    %c0_i32_1 = arith.constant 0 : i32
    return %arg0, %c0_i32, %c0_i32_0, %arg1 : i32, i32, i32, i32
  }
  func.func @transform_1(%arg0: i32, %arg1: i32, %arg2: i32) -> (i32, i32) {
    %c0_i32 = arith.constant 0 : i32
    %c0_i32_0 = arith.constant 0 : i32
    return %c0_i32, %arg1 : i32, i32
  }
  func.func @transform_2(%arg0: i32, %arg1: i32, %arg2: i32) -> (i32, i32) {
    %c0_i32 = arith.constant 0 : i32
    %c0_i32_0 = arith.constant 0 : i32
    return %c0_i32, %arg1 : i32, i32
  }
  func.func @transform_3(%arg0: i32, %arg1: i32, %arg2: i32) -> (i32, i32, i32, i32) {
    %c0_i32 = arith.constant 0 : i32
    %c0_i32_0 = arith.constant 0 : i32
    return %arg0, %arg2, %c0_i32, %arg1 : i32, i32, i32, i32
  }
}

</mosaic_0001>

<llo_original>
// kernel: tpu_custom_call.1
$region0: #{tpu_custom_call.1}
  #allocation0 [shape = 'u32[]', space=smem, size = 0x4, offset = 0x4, fixed_abs, tag = 'smem constant byte address 0x4 - core index']
  #allocation1 [shape = 'u32[144,128]{1,0:T(1,128)}', space=vmem, size = 0x12000, scoped, tag = 'internal scratch']
  #allocation2 [shape = 'f32[34,48,128]{2,1,0:T(8,128)}', space=vmem, size = 0xcc000, scoped, tag = 'scratch operand']
  %s0 = inlined_call_operand.hbm [shape: f32[2,16,16,128], index: 0, kind: input, shape index: {}]
  %s1 = inlined_call_operand.hbm [shape: f32[49,128], index: 1, kind: input, shape index: {}]
  %s2 = inlined_call_operand.vmem [shape: f32[1,128], index: 2, kind: input, shape index: {}]
  %s3 = inlined_call_operand.hbm [shape: f32[2,16,16,128], index: 3, kind: output, shape index: {}]
  %s4 = sld [smem:[#allocation0]]
  $region76: #{tpu_custom_call.1} parent=0
    _
  %s6 = ssub.s32 1, %s4
  %s7 = scalar_select 0, %s6, %s4
  $region1: #{tpu_custom_call.1} parent=0
    #allocation3 [shape = 'u8[262144]{0}', space=vmem, size = 0x40000, scoped, tag = 'input window, operand 0']
    #allocation4 [shape = 's32[2]{0}', space=sflag, size = 0x8, scoped, tag = 'scoped memory for tpu_custom_call.1']
    #allocation5 [shape = 's32[2]{0}', space=sflag, size = 0x8, scoped, tag = 'scoped memory for tpu_custom_call.1']
    #allocation6 [shape = 'u8[28672]{0}', space=vmem, size = 0x7000, scoped, tag = 'input window, operand 1, single buffered']
    #allocation7 [shape = 's32[1]{0}', space=sflag, size = 0x4, scoped, tag = 'scoped memory for tpu_custom_call.1']
    #allocation8 [shape = 'u8[262144]{0}', space=vmem, size = 0x40000, scoped, tag = 'output window, operand 0']
    %8 = vsyncpa [#allocation4], 0
    %s9 = scalar_lea.sflag [#allocation4], 1
    %10 = vsyncpa %s9, 0
    %11 = vsyncpa [#allocation7], 0
    %12 = vsyncpa [#allocation5], 0
    %s13 = scalar_lea.sflag [#allocation5], 1
    %14 = vsyncpa %s13, 0
    loop: start=0, step=1, limit=4
    $region2: #{tpu_custom_call.1} parent=1 // loop_pre_header
      _
    $region3: #{tpu_custom_call.1} parent=1 // loop_header
      %s16 = sphi 0, %s20
      %p17 = scmp.ge.s32.totalorder %s16, 4
      %s23 = sphi 0, %s42
      %s24 = sphi 0, %s38
      %s25 = sphi 0, %s34
      %s26 = sphi 0, %s23
      %s27 = sphi 0, %s24
      %s28 = sphi 0, %s25
      %s29 = sphi 0, %s26
      %s30 = sphi 0, %s27
      %s31 = sphi 0, %s28
      %s47 = sphi 0, %s49
      %s50 = sphi 0, %s47
      %s51 = sphi 0, %s50
      %s67 = sphi 0, %s51
      %s73 = sphi 0, %s75
      %s76 = sphi 0, %s73
      %s77 = sphi 0, %s76
      %s93 = sphi 0, %s77
      %s99 = sphi 0, %s101
      %s102 = sphi 0, %s99
      %s103 = sphi 0, %s102
      %s119 = sphi 0, %s103
      %s129 = sphi 0, %s131
      %s132 = sphi 0, %s129
      %s133 = sphi 0, %s132
      %s149 = sphi 0, %s133
    $region4: #{tpu_custom_call.1} parent=1 // loop_header_branch
      %19 = sbr.rel (%p17) target = $region8
    $region5: #{tpu_custom_call.1} parent=1 // loop_body
      %s21 = ssub.s32 %s16, 1
      %s22 = ssub.s32 %s16, 2
      %s32 = sadd.s32 1, %s25
      %p33 = scmp.ge.s32.totalorder %s32, 1
      %s34 = scalar_select %p33, 0, %s32
      %s35 = sadd.s32 1, %s24
      %s36 = scalar_select %p33, %s35, %s24
      %p37 = scmp.ge.s32.totalorder %s36, 1
      %s38 = scalar_select %p37, 0, %s36
      %s39 = sadd.s32 1, %s23
      %s40 = scalar_select %p37, %s39, %s23
      %p41 = scmp.ge.s32.totalorder %s40, 2
      %s42 = scalar_select %p41, 0, %s40
      %s43 = ssub.s32 %s23, %s42
      %s44 = ssub.s32 %s24, %s38
      %s45 = sor.u32 %s43, %s44
      %p46 = scmp.eq.s32.totalorder %s45, 0
      %s48 = sadd.s32 %s47, 1
      %s49 = scalar_select %p46, %s47, %s48
      %p52 = pneg %p46
      %p53 = scmp.eq.s32.totalorder %s16, 1
      %p54 = por %p52, %p53
      %p55 = scmp.ne.s32.totalorder %s47, %s50
      %p56 = scmp.eq.s32.totalorder %s16, 0
      %p57 = por %p55, %p56
      %p58 = scmp.ne.s32.totalorder %s47, %s50
      %p59 = scmp.eq.s32.totalorder %s21, 1
      %p60 = por %p58, %p59
      %p61 = scmp.ne.s32.totalorder %s50, %s51
      %p62 = scmp.eq.s32.totalorder %s21, 0
      %p63 = por %p61, %p62
      %p64 = scmp.ne.s32.totalorder %s50, %s51
      %p65 = scmp.eq.s32.totalorder %s22, 1
      %p66 = por %p64, %p65
      %p68 = scmp.ne.s32.totalorder %s51, %s67
      %p69 = scmp.eq.s32.totalorder %s22, 0
      %p70 = por %p68, %p69
      %s71 = ssub.s32 %s24, %s38
      %p72 = scmp.eq.s32.totalorder %s71, 0
      %s74 = sadd.s32 %s73, 1
      %s75 = scalar_select %p72, %s73, %s74
      %p78 = pneg %p72
      %p79 = scmp.eq.s32.totalorder %s16, 1
      %p80 = por %p78, %p79
      %p81 = scmp.ne.s32.totalorder %s73, %s76
      %p82 = scmp.eq.s32.totalorder %s16, 0
      %p83 = por %p81, %p82
      %p84 = scmp.ne.s32.totalorder %s73, %s76
      %p85 = scmp.eq.s32.totalorder %s21, 1
      %p86 = por %p84, %p85
      %p87 = scmp.ne.s32.totalorder %s76, %s77
      %p88 = scmp.eq.s32.totalorder %s21, 0
      %p89 = por %p87, %p88
      %p90 = scmp.ne.s32.totalorder %s76, %s77
      %p91 = scmp.eq.s32.totalorder %s22, 1
      %p92 = por %p90, %p91
      %p94 = scmp.ne.s32.totalorder %s77, %s93
      %p95 = scmp.eq.s32.totalorder %s22, 0
      %p96 = por %p94, %p95
      %s97 = ssub.s32 %s24, %s38
      %p98 = scmp.eq.s32.totalorder %s97, 0
      %s100 = sadd.s32 %s99, 1
      %s101 = scalar_select %p98, %s99, %s100
      %p104 = pneg %p98
      %p105 = scmp.eq.s32.totalorder %s16, 1
      %p106 = por %p104, %p105
      %p107 = scmp.ne.s32.totalorder %s99, %s102
      %p108 = scmp.eq.s32.totalorder %s16, 0
      %p109 = por %p107, %p108
      %p110 = scmp.ne.s32.totalorder %s99, %s102
      %p111 = scmp.eq.s32.totalorder %s21, 1
      %p112 = por %p110, %p111
      %p113 = scmp.ne.s32.totalorder %s102, %s103
      %p114 = scmp.eq.s32.totalorder %s21, 0
      %p115 = por %p113, %p114
      %p116 = scmp.ne.s32.totalorder %s102, %s103
      %p117 = scmp.eq.s32.totalorder %s22, 1
      %p118 = por %p116, %p117
      %p120 = scmp.ne.s32.totalorder %s103, %s119
      %p121 = scmp.eq.s32.totalorder %s22, 0
      %p122 = por %p120, %p121
      %s123 = ssub.s32 %s23, %s42
      %s124 = ssub.s32 %s25, %s34
      %s125 = sor.u32 %s123, %s124
      %s126 = ssub.s32 %s24, %s38
      %s127 = sor.u32 %s125, %s126
      %p128 = scmp.eq.s32.totalorder %s127, 0
      %s130 = sadd.s32 %s129, 1
      %s131 = scalar_select %p128, %s129, %s130
      %p134 = pneg %p128
      %p135 = scmp.eq.s32.totalorder %s16, 1
      %p136 = por %p134, %p135
      %p137 = scmp.ne.s32.totalorder %s129, %s132
      %p138 = scmp.eq.s32.totalorder %s16, 0
      %p139 = por %p137, %p138
      %p140 = scmp.ne.s32.totalorder %s129, %s132
      %p141 = scmp.eq.s32.totalorder %s21, 1
      %p142 = por %p140, %p141
      %p143 = scmp.ne.s32.totalorder %s132, %s133
      %p144 = scmp.eq.s32.totalorder %s21, 0
      %p145 = por %p143, %p144
      %p146 = scmp.ne.s32.totalorder %s132, %s133
      %p147 = scmp.eq.s32.totalorder %s22, 1
      %p148 = por %p146, %p147
      %p150 = scmp.ne.s32.totalorder %s133, %s149
      %p151 = scmp.eq.s32.totalorder %s22, 0
      %p152 = por %p150, %p151
      %p153 = scmp.le.s32.totalorder 1, %s16
      %p154 = scmp.lt.s32.totalorder %s16, 3
      %p155 = pnand %p153, %p154
      %p156 = pneg %p155
      // Predicated region
      $region9: #{tpu_custom_call.1} parent=5 // pred_check
        _
      $region10: #{tpu_custom_call.1} parent=5 // pred_check_branch
        %158 = sbr.rel (%p155) target = $region12
      $region11: #{tpu_custom_call.1} parent=5 // pred_region
        %s159 = ssub.s32 %s16, 1
        // Predicated region
        $region13: #{tpu_custom_call.1} parent=11 // pred_check
          %p160 = pneg %p89
        $region14: #{tpu_custom_call.1} parent=11 // pred_check_branch
          %162 = sbr.rel (%p160) target = $region16
        $region15: #{tpu_custom_call.1} parent=11 // pred_region
          %s164 = ssub.s32 896, 896
          %165 = vsyncadd [#allocation7], %s164
          %s166 = smul.addr %s27, 128
          %s167 = scalar_lea.hbm %s1, %s166
          %s168 = sshll.u32 [#allocation6], 4
          %s169 = int_to_ptr.vmem [resolvable:$true] %s168
          %174 = dma.hbm_to_vmem [thread:$0]  %s167, 896, %s169, [#allocation7], 128, 128, 8
        $region16: #{tpu_custom_call.1} parent=11 // pred_fallthru
          _
        // Predicated region
        $region17: #{tpu_custom_call.1} parent=11 // pred_check
          %p175 = pneg %p115
        $region18: #{tpu_custom_call.1} parent=11 // pred_check_branch
          %177 = sbr.rel (%p175) target = $region20
        $region19: #{tpu_custom_call.1} parent=11 // pred_region
          %p178 = scmp.lt.s32.totalorder %s27, 0
          %s179 = scalar_select %p178, %s27, 0
          %s180 = scalar_lea.vmem %s2, %s179
        $region20: #{tpu_custom_call.1} parent=11 // pred_fallthru
          _
      $region12: #{tpu_custom_call.1} parent=5 // pred_fallthru
        _
      %p181 = scmp.lt.s32.totalorder %s16, 2
      // Predicated region
      $region21: #{tpu_custom_call.1} parent=5 // pred_check
        %p182 = pneg %p181
      $region22: #{tpu_custom_call.1} parent=5 // pred_check_branch
        %184 = sbr.rel (%p182) target = $region24
      $region23: #{tpu_custom_call.1} parent=5 // pred_region
        // Predicated region
        $region25: #{tpu_custom_call.1} parent=23 // pred_check
          %p185 = pneg %p57
        $region26: #{tpu_custom_call.1} parent=23 // pred_check_branch
          %187 = sbr.rel (%p185) target = $region28
        $region27: #{tpu_custom_call.1} parent=23 // pred_region
          %s188 = sand.u32 %s47, 1
          %s189 = scalar_lea.sflag [#allocation4], %s188
          %s190 = sand.u32 %s47, 1
          %s191 = smul.addr %s190, 256
          %s192 = scalar_lea.vmem [#allocation3], %s191
          %s194 = ssub.s32 4096, 4096
          %195 = vsyncadd %s189, %s194
          %s196 = smul.addr %s23, 32
          %s197 = sadd.s32 %s24, %s196
          %s198 = smul.addr %s197, 128
          %s199 = scalar_lea.hbm %s0, %s198
          %s200 = sshll.u32 %s192, 4
          %s201 = int_to_ptr.vmem [resolvable:$true] %s200
          %206 = dma.hbm_to_vmem [thread:$0]  %s199, 4096, %s201, %s189, 128, 128, 8
        $region28: #{tpu_custom_call.1} parent=23 // pred_fallthru
          _
      $region24: #{tpu_custom_call.1} parent=5 // pred_fallthru
        _
      %p207 = scmp.le.s32.totalorder 1, %s16
      %p208 = scmp.lt.s32.totalorder %s16, 3
      %p209 = pnand %p207, %p208
      %p210 = pneg %p209
      // Predicated region
      $region29: #{tpu_custom_call.1} parent=5 // pred_check
        _
      $region30: #{tpu_custom_call.1} parent=5 // pred_check_branch
        %212 = sbr.rel (%p209) target = $region32
      $region31: #{tpu_custom_call.1} parent=5 // pred_region
        %s213 = ssub.s32 %s16, 1
        %s214 = sand.u32 %s50, 1
        %s215 = scalar_lea.sflag [#allocation4], %s214
        %s216 = sand.u32 %s50, 1
        %s217 = smul.addr %s216, 256
        %s218 = scalar_lea.vmem [#allocation3], %s217
        // Predicated region
        $region33: #{tpu_custom_call.1} parent=31 // pred_check
          %p219 = pneg %p63
        $region34: #{tpu_custom_call.1} parent=31 // pred_check_branch
          %221 = sbr.rel (%p219) target = $region36
        $region35: #{tpu_custom_call.1} parent=31 // pred_region
          %222 = dma.done %s215, 4096
        $region36: #{tpu_custom_call.1} parent=31 // pred_fallthru
          _
        // Predicated region
        $region37: #{tpu_custom_call.1} parent=31 // pred_check
          %p223 = pneg %p89
        $region38: #{tpu_custom_call.1} parent=31 // pred_check_branch
          %225 = sbr.rel (%p223) target = $region40
        $region39: #{tpu_custom_call.1} parent=31 // pred_region
          %226 = dma.done [#allocation7], 896
        $region40: #{tpu_custom_call.1} parent=31 // pred_fallthru
          _
        %s227 = sand.u32 %s50, 1
        %s228 = scalar_lea.sflag [#allocation4], %s227
        %s229 = sand.u32 %s50, 1
        %s230 = smul.addr %s229, 256
        %s231 = scalar_lea.vmem [#allocation3], %s230
        %p232 = pneg %p63
        %p233 = pneg %p60
        %p234 = pneg %p89
        %p235 = pneg %p86
        %p236 = scmp.lt.s32.totalorder %s27, 0
        %s237 = scalar_select %p236, %s27, 0
        %s238 = scalar_lea.vmem %s2, %s237
        %p239 = pneg %p115
        %p240 = pneg %p112
        %p241 = pneg %p145
        %p242 = pneg %p142
        %s243 = sand.u32 %s132, 1
        %s244 = scalar_lea.sflag [#allocation5], %s243
        %s245 = sand.u32 %s132, 1
        %s246 = smul.addr %s245, 256
        %s247 = scalar_lea.vmem [#allocation8], %s246
        %p248 = scmp.lt.s32.totalorder %s27, 0
        %s249 = scalar_select %p248, %s27, 0
        %s250 = scalar_lea.vmem %s2, %s249
        %s251 = smul.u32 16, %s28
        %s252 = smul.u32 %s28, 16
        %253 = vst [vmem:[#allocation2] sm:$0xff] 0.0
        %254 = vst [vmem:[#allocation2 + $0x8] sm:$0xff] 0.0
        %255 = vst [vmem:[#allocation2 + $0x30] sm:$0xff] 0.0
        %256 = vst [vmem:[#allocation2 + $0x38] sm:$0xff] 0.0
        %257 = vst [vmem:[#allocation2 + $0x60] sm:$0xff] 0.0
        %258 = vst [vmem:[#allocation2 + $0x68] sm:$0xff] 0.0
        %259 = vst [vmem:[#allocation2 + $0x90] sm:$0xff] 0.0
        %260 = vst [vmem:[#allocation2 + $0x98] sm:$0xff] 0.0
        %261 = vst [vmem:[#allocation2 + $0xc0] sm:$0xff] 0.0
        %262 = vst [vmem:[#allocation2 + $0xc8] sm:$0xff] 0.0
        %263 = vst [vmem:[#allocation2 + $0xf0] sm:$0xff] 0.0
        %264 = vst [vmem:[#allocation2 + $0xf8] sm:$0xff] 0.0
        %265 = vst [vmem:[#allocation2 + $0x120] sm:$0xff] 0.0
        %266 = vst [vmem:[#allocation2 + $0x128] sm:$0xff] 0.0
        %267 = vst [vmem:[#allocation2 + $0x150] sm:$0xff] 0.0
        %268 = vst [vmem:[#allocation2 + $0x158] sm:$0xff] 0.0
        %269 = vst [vmem:[#allocation2 + $0x180] sm:$0xff] 0.0
        %270 = vst [vmem:[#allocation2 + $0x188] sm:$0xff] 0.0
        %271 = vst [vmem:[#allocation2 + $0x1b0] sm:$0xff] 0.0
        %272 = vst [vmem:[#allocation2 + $0x1b8] sm:$0xff] 0.0
        %273 = vst [vmem:[#allocation2 + $0x1e0] sm:$0xff] 0.0
        %274 = vst [vmem:[#allocation2 + $0x1e8] sm:$0xff] 0.0
        %275 = vst [vmem:[#allocation2 + $0x210] sm:$0xff] 0.0
        %276 = vst [vmem:[#allocation2 + $0x218] sm:$0xff] 0.0
        %277 = vst [vmem:[#allocation2 + $0x240] sm:$0xff] 0.0
        %278 = vst [vmem:[#allocation2 + $0x248] sm:$0xff] 0.0
        %279 = vst [vmem:[#allocation2 + $0x270] sm:$0xff] 0.0
        %280 = vst [vmem:[#allocation2 + $0x278] sm:$0xff] 0.0
        %281 = vst [vmem:[#allocation2 + $0x2a0] sm:$0xff] 0.0
        %282 = vst [vmem:[#allocation2 + $0x2a8] sm:$0xff] 0.0
        %283 = vst [vmem:[#allocation2 + $0x2d0] sm:$0xff] 0.0
        %284 = vst [vmem:[#allocation2 + $0x2d8] sm:$0xff] 0.0
        %285 = vst [vmem:[#allocation2 + $0x300] sm:$0xff] 0.0
        %286 = vst [vmem:[#allocation2 + $0x308] sm:$0xff] 0.0
        %287 = vst [vmem:[#allocation2 + $0x330] sm:$0xff] 0.0
        %288 = vst [vmem:[#allocation2 + $0x338] sm:$0xff] 0.0
        %289 = vst [vmem:[#allocation2 + $0x360] sm:$0xff] 0.0
        %290 = vst [vmem:[#allocation2 + $0x368] sm:$0xff] 0.0
        %291 = vst [vmem:[#allocation2 + $0x390] sm:$0xff] 0.0
        %292 = vst [vmem:[#allocation2 + $0x398] sm:$0xff] 0.0
        %293 = vst [vmem:[#allocation2 + $0x3c0] sm:$0xff] 0.0
        %294 = vst [vmem:[#allocation2 + $0x3c8] sm:$0xff] 0.0
        %295 = vst [vmem:[#allocation2 + $0x3f0] sm:$0xff] 0.0
        %296 = vst [vmem:[#allocation2 + $0x3f8] sm:$0xff] 0.0
        %297 = vst [vmem:[#allocation2 + $0x420] sm:$0xff] 0.0
        %298 = vst [vmem:[#allocation2 + $0x428] sm:$0xff] 0.0
        %299 = vst [vmem:[#allocation2 + $0x450] sm:$0xff] 0.0
        %300 = vst [vmem:[#allocation2 + $0x458] sm:$0xff] 0.0
        %301 = vst [vmem:[#allocation2 + $0x480] sm:$0xff] 0.0
        %302 = vst [vmem:[#allocation2 + $0x488] sm:$0xff] 0.0
        %303 = vst [vmem:[#allocation2 + $0x4b0] sm:$0xff] 0.0
        %304 = vst [vmem:[#allocation2 + $0x4b8] sm:$0xff] 0.0
        %305 = vst [vmem:[#allocation2 + $0x4e0] sm:$0xff] 0.0
        %306 = vst [vmem:[#allocation2 + $0x4e8] sm:$0xff] 0.0
        %307 = vst [vmem:[#allocation2 + $0x510] sm:$0xff] 0.0
        %308 = vst [vmem:[#allocation2 + $0x518] sm:$0xff] 0.0
        %309 = vst [vmem:[#allocation2 + $0x540] sm:$0xff] 0.0
        %310 = vst [vmem:[#allocation2 + $0x548] sm:$0xff] 0.0
        %311 = vst [vmem:[#allocation2 + $0x570] sm:$0xff] 0.0
        %312 = vst [vmem:[#allocation2 + $0x578] sm:$0xff] 0.0
        %313 = vst [vmem:[#allocation2 + $0x5a0] sm:$0xff] 0.0
        %314 = vst [vmem:[#allocation2 + $0x5a8] sm:$0xff] 0.0
        %315 = vst [vmem:[#allocation2 + $0x5d0] sm:$0xff] 0.0
        %316 = vst [vmem:[#allocation2 + $0x5d8] sm:$0xff] 0.0
        %317 = vst [vmem:[#allocation2 + $0x600] sm:$0xff] 0.0
        %318 = vst [vmem:[#allocation2 + $0x608] sm:$0xff] 0.0
        %319 = vst [vmem:[#allocation2 + $0x630] sm:$0xff] 0.0
        %320 = vst [vmem:[#allocation2 + $0x638] sm:$0xff] 0.0
        %321 = vst [vmem:[#allocation2 + $0x20] sm:$0xff] 0.0
        %322 = vst [vmem:[#allocation2 + $0x28] sm:$0xff] 0.0
        %323 = vst [vmem:[#allocation2 + $0x50] sm:$0xff] 0.0
        %324 = vst [vmem:[#allocation2 + $0x58] sm:$0xff] 0.0
        %325 = vst [vmem:[#allocation2 + $0x80] sm:$0xff] 0.0
        %326 = vst [vmem:[#allocation2 + $0x88] sm:$0xff] 0.0
        %327 = vst [vmem:[#allocation2 + $0xb0] sm:$0xff] 0.0
        %328 = vst [vmem:[#allocation2 + $0xb8] sm:$0xff] 0.0
        %329 = vst [vmem:[#allocation2 + $0xe0] sm:$0xff] 0.0
        %330 = vst [vmem:[#allocation2 + $0xe8] sm:$0xff] 0.0
        %331 = vst [vmem:[#allocation2 + $0x110] sm:$0xff] 0.0
        %332 = vst [vmem:[#allocation2 + $0x118] sm:$0xff] 0.0
        %333 = vst [vmem:[#allocation2 + $0x140] sm:$0xff] 0.0
        %334 = vst [vmem:[#allocation2 + $0x148] sm:$0xff] 0.0
        %335 = vst [vmem:[#allocation2 + $0x170] sm:$0xff] 0.0
        %336 = vst [vmem:[#allocation2 + $0x178] sm:$0xff] 0.0
        %337 = vst [vmem:[#allocation2 + $0x1a0] sm:$0xff] 0.0
        %338 = vst [vmem:[#allocation2 + $0x1a8] sm:$0xff] 0.0
        %339 = vst [vmem:[#allocation2 + $0x1d0] sm:$0xff] 0.0
        %340 = vst [vmem:[#allocation2 + $0x1d8] sm:$0xff] 0.0
        %341 = vst [vmem:[#allocation2 + $0x200] sm:$0xff] 0.0
        %342 = vst [vmem:[#allocation2 + $0x208] sm:$0xff] 0.0
        %343 = vst [vmem:[#allocation2 + $0x230] sm:$0xff] 0.0
        %344 = vst [vmem:[#allocation2 + $0x238] sm:$0xff] 0.0
        %345 = vst [vmem:[#allocation2 + $0x260] sm:$0xff] 0.0
        %346 = vst [vmem:[#allocation2 + $0x268] sm:$0xff] 0.0
        %347 = vst [vmem:[#allocation2 + $0x290] sm:$0xff] 0.0
        %348 = vst [vmem:[#allocation2 + $0x298] sm:$0xff] 0.0
        %349 = vst [vmem:[#allocation2 + $0x2c0] sm:$0xff] 0.0
        %350 = vst [vmem:[#allocation2 + $0x2c8] sm:$0xff] 0.0
        %351 = vst [vmem:[#allocation2 + $0x2f0] sm:$0xff] 0.0
        %352 = vst [vmem:[#allocation2 + $0x2f8] sm:$0xff] 0.0
        %353 = vst [vmem:[#allocation2 + $0x320] sm:$0xff] 0.0
        %354 = vst [vmem:[#allocation2 + $0x328] sm:$0xff] 0.0
        %355 = vst [vmem:[#allocation2 + $0x350] sm:$0xff] 0.0
        %356 = vst [vmem:[#allocation2 + $0x358] sm:$0xff] 0.0
        %357 = vst [vmem:[#allocation2 + $0x380] sm:$0xff] 0.0
        %358 = vst [vmem:[#allocation2 + $0x388] sm:$0xff] 0.0
        %359 = vst [vmem:[#allocation2 + $0x3b0] sm:$0xff] 0.0
        %360 = vst [vmem:[#allocation2 + $0x3b8] sm:$0xff] 0.0
        %361 = vst [vmem:[#allocation2 + $0x3e0] sm:$0xff] 0.0
        %362 = vst [vmem:[#allocation2 + $0x3e8] sm:$0xff] 0.0
        %363 = vst [vmem:[#allocation2 + $0x410] sm:$0xff] 0.0
        %364 = vst [vmem:[#allocation2 + $0x418] sm:$0xff] 0.0
        %365 = vst [vmem:[#allocation2 + $0x440] sm:$0xff] 0.0
        %366 = vst [vmem:[#allocation2 + $0x448] sm:$0xff] 0.0
        %367 = vst [vmem:[#allocation2 + $0x470] sm:$0xff] 0.0
        %368 = vst [vmem:[#allocation2 + $0x478] sm:$0xff] 0.0
        %369 = vst [vmem:[#allocation2 + $0x4a0] sm:$0xff] 0.0
        %370 = vst [vmem:[#allocation2 + $0x4a8] sm:$0xff] 0.0
        %371 = vst [vmem:[#allocation2 + $0x4d0] sm:$0xff] 0.0
        %372 = vst [vmem:[#allocation2 + $0x4d8] sm:$0xff] 0.0
        %373 = vst [vmem:[#allocation2 + $0x500] sm:$0xff] 0.0
        %374 = vst [vmem:[#allocation2 + $0x508] sm:$0xff] 0.0
        %375 = vst [vmem:[#allocation2 + $0x530] sm:$0xff] 0.0
        %376 = vst [vmem:[#allocation2 + $0x538] sm:$0xff] 0.0
        %377 = vst [vmem:[#allocation2 + $0x560] sm:$0xff] 0.0
        %378 = vst [vmem:[#allocation2 + $0x568] sm:$0xff] 0.0
        %379 = vst [vmem:[#allocation2 + $0x590] sm:$0xff] 0.0
        %380 = vst [vmem:[#allocation2 + $0x598] sm:$0xff] 0.0
        %381 = vst [vmem:[#allocation2 + $0x5c0] sm:$0xff] 0.0
        %382 = vst [vmem:[#allocation2 + $0x5c8] sm:$0xff] 0.0
        %383 = vst [vmem:[#allocation2 + $0x5f0] sm:$0xff] 0.0
        %384 = vst [vmem:[#allocation2 + $0x5f8] sm:$0xff] 0.0
        %385 = vst [vmem:[#allocation2 + $0x620] sm:$0xff] 0.0
        %386 = vst [vmem:[#allocation2 + $0x628] sm:$0xff] 0.0
        %387 = vst [vmem:[#allocation2 + $0x650] sm:$0xff] 0.0
        %388 = vst [vmem:[#allocation2 + $0x658] sm:$0xff] 0.0
        %p389 = scmp.eq.s32.totalorder %s28, 0
        // Predicated region
        $region41: #{tpu_custom_call.1} parent=31 // pred_check
          %p390 = pneg %p389
        $region42: #{tpu_custom_call.1} parent=31 // pred_check_branch
          %392 = sbr.rel (%p390) target = $region44
        $region43: #{tpu_custom_call.1} parent=31 // pred_region
          %393 = vst [vmem:[#allocation2 + $0x10] sm:$0xff] 0.0
          %394 = vst [vmem:[#allocation2 + $0x18] sm:$0xff] 0.0
          %395 = vst [vmem:[#allocation2 + $0x40] sm:$0xff] 0.0
          %396 = vst [vmem:[#allocation2 + $0x48] sm:$0xff] 0.0
          %397 = vst [vmem:[#allocation2 + $0x70] sm:$0xff] 0.0
          %398 = vst [vmem:[#allocation2 + $0x78] sm:$0xff] 0.0
          %399 = vst [vmem:[#allocation2 + $0xa0] sm:$0xff] 0.0
          %400 = vst [vmem:[#allocation2 + $0xa8] sm:$0xff] 0.0
          %401 = vst [vmem:[#allocation2 + $0xd0] sm:$0xff] 0.0
          %402 = vst [vmem:[#allocation2 + $0xd8] sm:$0xff] 0.0
          %403 = vst [vmem:[#allocation2 + $0x100] sm:$0xff] 0.0
          %404 = vst [vmem:[#allocation2 + $0x108] sm:$0xff] 0.0
          %405 = vst [vmem:[#allocation2 + $0x130] sm:$0xff] 0.0
          %406 = vst [vmem:[#allocation2 + $0x138] sm:$0xff] 0.0
          %407 = vst [vmem:[#allocation2 + $0x160] sm:$0xff] 0.0
          %408 = vst [vmem:[#allocation2 + $0x168] sm:$0xff] 0.0
          %409 = vst [vmem:[#allocation2 + $0x190] sm:$0xff] 0.0
          %410 = vst [vmem:[#allocation2 + $0x198] sm:$0xff] 0.0
        $region44: #{tpu_custom_call.1} parent=31 // pred_fallthru
          _
        %p411 = scmp.gt.s32.totalorder %s28, 0
        // Predicated region
        $region45: #{tpu_custom_call.1} parent=31 // pred_check
          %p412 = pneg %p411
        $region46: #{tpu_custom_call.1} parent=31 // pred_check_branch
          %414 = sbr.rel (%p412) target = $region48
        $region47: #{tpu_custom_call.1} parent=31 // pred_region
          %s415 = ssub.s32 %s252, 9
          %s416 = smul.u32 %s415, 16
          %s417 = scalar_lea.vmem %s218, %s416 [#allocation3]
          %v418 = vld [vmem:[%s417] sm:$0xff]
          %v419 = vld [vmem:[%s417 + $0x8] sm:$0xff]
          %v420 = vld [vmem:[%s417 + $0x10] sm:$0xff]
          %v421 = vld [vmem:[%s417 + $0x18] sm:$0xff]
          %v422 = vld [vmem:[%s417 + $0x20] sm:$0xff]
          %v423 = vld [vmem:[%s417 + $0x28] sm:$0xff]
          %v424 = vld [vmem:[%s417 + $0x30] sm:$0xff]
          %v425 = vld [vmem:[%s417 + $0x38] sm:$0xff]
          %v426 = vld [vmem:[%s417 + $0x40] sm:$0xff]
          %v427 = vld [vmem:[%s417 + $0x48] sm:$0xff]
          %v428 = vld [vmem:[%s417 + $0x50] sm:$0xff]
          %v429 = vld [vmem:[%s417 + $0x58] sm:$0xff]
          %v430 = vld [vmem:[%s417 + $0x60] sm:$0xff]
          %v431 = vld [vmem:[%s417 + $0x68] sm:$0xff]
          %v432 = vld [vmem:[%s417 + $0x70] sm:$0xff]
          %v433 = vld [vmem:[%s417 + $0x78] sm:$0xff]
          %v434 = vld [vmem:[%s417 + $0x80] sm:$0xff]
          %v435 = vld [vmem:[%s417 + $0x88] sm:$0xff]
          %436 = vst [vmem:[#allocation2 + $0x10] sm:$0xff] %v418
          %437 = vst [vmem:[#allocation2 + $0x18] sm:$0xff] %v419
          %438 = vst [vmem:[#allocation2 + $0x40] sm:$0xff] %v420
          %439 = vst [vmem:[#allocation2 + $0x48] sm:$0xff] %v421
          %440 = vst [vmem:[#allocation2 + $0x70] sm:$0xff] %v422
          %441 = vst [vmem:[#allocation2 + $0x78] sm:$0xff] %v423
          %442 = vst [vmem:[#allocation2 + $0xa0] sm:$0xff] %v424
          %443 = vst [vmem:[#allocation2 + $0xa8] sm:$0xff] %v425
          %444 = vst [vmem:[#allocation2 + $0xd0] sm:$0xff] %v426
          %445 = vst [vmem:[#allocation2 + $0xd8] sm:$0xff] %v427
          %446 = vst [vmem:[#allocation2 + $0x100] sm:$0xff] %v428
          %447 = vst [vmem:[#allocation2 + $0x108] sm:$0xff] %v429
          %448 = vst [vmem:[#allocation2 + $0x130] sm:$0xff] %v430
          %449 = vst [vmem:[#allocation2 + $0x138] sm:$0xff] %v431
          %450 = vst [vmem:[#allocation2 + $0x160] sm:$0xff] %v432
          %451 = vst [vmem:[#allocation2 + $0x168] sm:$0xff] %v433
          %452 = vst [vmem:[#allocation2 + $0x190] sm:$0xff] %v434
          %453 = vst [vmem:[#allocation2 + $0x198] sm:$0xff] %v435
        $region48: #{tpu_custom_call.1} parent=31 // pred_fallthru
          _
        // Predicated region
        $region49: #{tpu_custom_call.1} parent=31 // pred_check
          %p454 = pneg %p389
        $region50: #{tpu_custom_call.1} parent=31 // pred_check_branch
          %456 = sbr.rel (%p454) target = $region52
        $region51: #{tpu_custom_call.1} parent=31 // pred_region
          %s457 = scalar_lea.vmem [#allocation2], 1200
          %458 = vst [vmem:[%s457 + $0x10] sm:$0xff] 0.0
          %459 = vst [vmem:[%s457 + $0x18] sm:$0xff] 0.0
          %460 = vst [vmem:[%s457 + $0x40] sm:$0xff] 0.0
          %461 = vst [vmem:[%s457 + $0x48] sm:$0xff] 0.0
          %462 = vst [vmem:[%s457 + $0x70] sm:$0xff] 0.0
          %463 = vst [vmem:[%s457 + $0x78] sm:$0xff] 0.0
          %464 = vst [vmem:[%s457 + $0xa0] sm:$0xff] 0.0
          %465 = vst [vmem:[%s457 + $0xa8] sm:$0xff] 0.0
          %466 = vst [vmem:[%s457 + $0xd0] sm:$0xff] 0.0
          %467 = vst [vmem:[%s457 + $0xd8] sm:$0xff] 0.0
          %468 = vst [vmem:[%s457 + $0x100] sm:$0xff] 0.0
          %469 = vst [vmem:[%s457 + $0x108] sm:$0xff] 0.0
          %470 = vst [vmem:[%s457 + $0x130] sm:$0xff] 0.0
          %471 = vst [vmem:[%s457 + $0x138] sm:$0xff] 0.0
          %472 = vst [vmem:[%s457 + $0x160] sm:$0xff] 0.0
          %473 = vst [vmem:[%s457 + $0x168] sm:$0xff] 0.0
          %474 = vst [vmem:[%s457 + $0x190] sm:$0xff] 0.0
          %475 = vst [vmem:[%s457 + $0x198] sm:$0xff] 0.0
        $region52: #{tpu_custom_call.1} parent=31 // pred_fallthru
          _
        %p476 = scmp.lt.s32.totalorder %s28, 0
        // Predicated region
        $region53: #{tpu_custom_call.1} parent=31 // pred_check
          %p477 = pneg %p476
        $region54: #{tpu_custom_call.1} parent=31 // pred_check_branch
          %479 = sbr.rel (%p477) target = $region56
        $region55: #{tpu_custom_call.1} parent=31 // pred_region
          %s480 = sadd.s32 %s252, 16
          %s481 = smul.u32 %s480, 16
          %s482 = scalar_lea.vmem %s218, %s481 [#allocation3]
          %v483 = vld [vmem:[%s482] sm:$0xff]
          %v484 = vld [vmem:[%s482 + $0x8] sm:$0xff]
          %v485 = vld [vmem:[%s482 + $0x10] sm:$0xff]
          %v486 = vld [vmem:[%s482 + $0x18] sm:$0xff]
          %v487 = vld [vmem:[%s482 + $0x20] sm:$0xff]
          %v488 = vld [vmem:[%s482 + $0x28] sm:$0xff]
          %v489 = vld [vmem:[%s482 + $0x30] sm:$0xff]
          %v490 = vld [vmem:[%s482 + $0x38] sm:$0xff]
          %v491 = vld [vmem:[%s482 + $0x40] sm:$0xff]
          %v492 = vld [vmem:[%s482 + $0x48] sm:$0xff]
          %v493 = vld [vmem:[%s482 + $0x50] sm:$0xff]
          %v494 = vld [vmem:[%s482 + $0x58] sm:$0xff]
          %v495 = vld [vmem:[%s482 + $0x60] sm:$0xff]
          %v496 = vld [vmem:[%s482 + $0x68] sm:$0xff]
          %v497 = vld [vmem:[%s482 + $0x70] sm:$0xff]
          %v498 = vld [vmem:[%s482 + $0x78] sm:$0xff]
          %v499 = vld [vmem:[%s482 + $0x80] sm:$0xff]
          %v500 = vld [vmem:[%s482 + $0x88] sm:$0xff]
          %s501 = scalar_lea.vmem [#allocation2], 1200
          %502 = vst [vmem:[%s501 + $0x10] sm:$0xff] %v483
          %503 = vst [vmem:[%s501 + $0x18] sm:$0xff] %v484
          %504 = vst [vmem:[%s501 + $0x40] sm:$0xff] %v485
          %505 = vst [vmem:[%s501 + $0x48] sm:$0xff] %v486
          %506 = vst [vmem:[%s501 + $0x70] sm:$0xff] %v487
          %507 = vst [vmem:[%s501 + $0x78] sm:$0xff] %v488
          %508 = vst [vmem:[%s501 + $0xa0] sm:$0xff] %v489
          %509 = vst [vmem:[%s501 + $0xa8] sm:$0xff] %v490
          %510 = vst [vmem:[%s501 + $0xd0] sm:$0xff] %v491
          %511 = vst [vmem:[%s501 + $0xd8] sm:$0xff] %v492
          %512 = vst [vmem:[%s501 + $0x100] sm:$0xff] %v493
          %513 = vst [vmem:[%s501 + $0x108] sm:$0xff] %v494
          %514 = vst [vmem:[%s501 + $0x130] sm:$0xff] %v495
          %515 = vst [vmem:[%s501 + $0x138] sm:$0xff] %v496
          %516 = vst [vmem:[%s501 + $0x160] sm:$0xff] %v497
          %517 = vst [vmem:[%s501 + $0x168] sm:$0xff] %v498
          %518 = vst [vmem:[%s501 + $0x190] sm:$0xff] %v499
          %519 = vst [vmem:[%s501 + $0x198] sm:$0xff] %v500
        $region56: #{tpu_custom_call.1} parent=31 // pred_fallthru
          _
        %s520 = smul.u32 %s252, 16
        %s521 = scalar_lea.vmem %s218, %s520 [#allocation3]
        %v522 = vld [vmem:[%s521] sm:$0xff]
        %v523 = vld [vmem:[%s521 + $0x8] sm:$0xff]
        %v524 = vld [vmem:[%s521 + $0x10] sm:$0xff]
        %v525 = vld [vmem:[%s521 + $0x18] sm:$0xff]
        %v526 = vld [vmem:[%s521 + $0x20] sm:$0xff]
        %v527 = vld [vmem:[%s521 + $0x28] sm:$0xff]
        %v528 = vld [vmem:[%s521 + $0x30] sm:$0xff]
        %v529 = vld [vmem:[%s521 + $0x38] sm:$0xff]
        %v530 = vld [vmem:[%s521 + $0x40] sm:$0xff]
        %v531 = vld [vmem:[%s521 + $0x48] sm:$0xff]
        %v532 = vld [vmem:[%s521 + $0x50] sm:$0xff]
        %v533 = vld [vmem:[%s521 + $0x58] sm:$0xff]
        %v534 = vld [vmem:[%s521 + $0x60] sm:$0xff]
        %v535 = vld [vmem:[%s521 + $0x68] sm:$0xff]
        %v536 = vld [vmem:[%s521 + $0x70] sm:$0xff]
        %v537 = vld [vmem:[%s521 + $0x78] sm:$0xff]
        %v538 = vld [vmem:[%s521 + $0x80] sm:$0xff]
        %v539 = vld [vmem:[%s521 + $0x88] sm:$0xff]
        %v540 = vld [vmem:[%s521 + $0x90] sm:$0xff]
        %v541 = vld [vmem:[%s521 + $0x98] sm:$0xff]
        %v542 = vld [vmem:[%s521 + $0xa0] sm:$0xff]
        %v543 = vld [vmem:[%s521 + $0xa8] sm:$0xff]
        %v544 = vld [vmem:[%s521 + $0xb0] sm:$0xff]
        %v545 = vld [vmem:[%s521 + $0xb8] sm:$0xff]
        %v546 = vld [vmem:[%s521 + $0xc0] sm:$0xff]
        %v547 = vld [vmem:[%s521 + $0xc8] sm:$0xff]
        %v548 = vld [vmem:[%s521 + $0xd0] sm:$0xff]
        %v549 = vld [vmem:[%s521 + $0xd8] sm:$0xff]
        %v550 = vld [vmem:[%s521 + $0xe0] sm:$0xff]
        %v551 = vld [vmem:[%s521 + $0xe8] sm:$0xff]
        %v552 = vld [vmem:[%s521 + $0xf0] sm:$0xff]
        %v553 = vld [vmem:[%s521 + $0xf8] sm:$0xff]
        %s554 = scalar_lea.vmem [#allocation2], 432
        %555 = vst [vmem:[%s554 + $0x10] sm:$0xff] %v522
        %556 = vst [vmem:[%s554 + $0x18] sm:$0xff] %v523
        %557 = vst [vmem:[%s554 + $0x40] sm:$0xff] %v524
        %558 = vst [vmem:[%s554 + $0x48] sm:$0xff] %v525
        %559 = vst [vmem:[%s554 + $0x70] sm:$0xff] %v526
        %560 = vst [vmem:[%s554 + $0x78] sm:$0xff] %v527
        %561 = vst [vmem:[%s554 + $0xa0] sm:$0xff] %v528
        %562 = vst [vmem:[%s554 + $0xa8] sm:$0xff] %v529
        %563 = vst [vmem:[%s554 + $0xd0] sm:$0xff] %v530
        %564 = vst [vmem:[%s554 + $0xd8] sm:$0xff] %v531
        %565 = vst [vmem:[%s554 + $0x100] sm:$0xff] %v532
        %566 = vst [vmem:[%s554 + $0x108] sm:$0xff] %v533
        %567 = vst [vmem:[%s554 + $0x130] sm:$0xff] %v534
        %568 = vst [vmem:[%s554 + $0x138] sm:$0xff] %v535
        %569 = vst [vmem:[%s554 + $0x160] sm:$0xff] %v536
        %570 = vst [vmem:[%s554 + $0x168] sm:$0xff] %v537
        %571 = vst [vmem:[%s554 + $0x190] sm:$0xff] %v538
        %572 = vst [vmem:[%s554 + $0x198] sm:$0xff] %v539
        %573 = vst [vmem:[%s554 + $0x1c0] sm:$0xff] %v540
        %574 = vst [vmem:[%s554 + $0x1c8] sm:$0xff] %v541
        %575 = vst [vmem:[%s554 + $0x1f0] sm:$0xff] %v542
        %576 = vst [vmem:[%s554 + $0x1f8] sm:$0xff] %v543
        %577 = vst [vmem:[%s554 + $0x220] sm:$0xff] %v544
        %578 = vst [vmem:[%s554 + $0x228] sm:$0xff] %v545
        %579 = vst [vmem:[%s554 + $0x250] sm:$0xff] %v546
        %580 = vst [vmem:[%s554 + $0x258] sm:$0xff] %v547
        %581 = vst [vmem:[%s554 + $0x280] sm:$0xff] %v548
        %582 = vst [vmem:[%s554 + $0x288] sm:$0xff] %v549
        %583 = vst [vmem:[%s554 + $0x2b0] sm:$0xff] %v550
        %584 = vst [vmem:[%s554 + $0x2b8] sm:$0xff] %v551
        %585 = vst [vmem:[%s554 + $0x2e0] sm:$0xff] %v552
        %586 = vst [vmem:[%s554 + $0x2e8] sm:$0xff] %v553
        %v587 = vld [vmem:[#allocation6] sm:$0xff]
        %v588 = vld [vmem:[#allocation6 + $0x8] sm:$0xff]
        %v589 = vld [vmem:[#allocation6 + $0x10] sm:$0xff]
        %v590 = vld [vmem:[#allocation6 + $0x18] sm:$0xff]
        %v591 = vld [vmem:[#allocation6 + $0x20] sm:$0xff]
        %v592 = vld [vmem:[#allocation6 + $0x28] sm:$0xff]
        %v593 = vld [vmem:[#allocation6 + $0x30] sm:$0x1]
        %v594 = vld [vmem:[%s250] sm:$0x1]
        loop: start=0, step=1, limit=4
        $region57: #{tpu_custom_call.1} parent=31 // loop_pre_header
          _
        $region58: #{tpu_custom_call.1} parent=31 // loop_header
          %s596 = sphi 0, %s600
          %p597 = scmp.ge.s32.totalorder %s596, 4
        $region59: #{tpu_custom_call.1} parent=31 // loop_header_branch
          %599 = sbr.rel (%p597) target = $region63
        $region60: #{tpu_custom_call.1} parent=31 // loop_body
          %s601 = smul.u32 %s596, 4
          %s602 = smul.u32 %s601, 48
          %s603 = scalar_lea.vmem [#allocation2], %s602
          %v604 = vld [vmem:[%s603 + $0x7] sm:$0xff]
          %v605 = vld [vmem:[%s603 + $0xf] sm:$0xff]
          %v606 = vld [vmem:[%s603 + $0x17] sm:$0xff]
          %v607 = vld [vmem:[%s603 + $0x1f] sm:$0xff]
          %v608 = vld [vmem:[%s603 + $0x27] sm:$0x3]
          %v609 = vld [vmem:[%s603 + $0x37] sm:$0xff]
          %v610 = vld [vmem:[%s603 + $0x3f] sm:$0xff]
          %v611 = vld [vmem:[%s603 + $0x47] sm:$0xff]
          %v612 = vld [vmem:[%s603 + $0x4f] sm:$0xff]
          %v613 = vld [vmem:[%s603 + $0x57] sm:$0x3]
          %v614 = vld [vmem:[%s603 + $0x67] sm:$0xff]
          %v615 = vld [vmem:[%s603 + $0x6f] sm:$0xff]
          %v616 = vld [vmem:[%s603 + $0x77] sm:$0xff]
          %v617 = vld [vmem:[%s603 + $0x7f] sm:$0xff]
          %v618 = vld [vmem:[%s603 + $0x87] sm:$0x3]
          %v619 = vld [vmem:[%s603 + $0x97] sm:$0xff]
          %v620 = vld [vmem:[%s603 + $0x9f] sm:$0xff]
          %v621 = vld [vmem:[%s603 + $0xa7] sm:$0xff]
          %v622 = vld [vmem:[%s603 + $0xaf] sm:$0xff]
          %v623 = vld [vmem:[%s603 + $0xb7] sm:$0x3]
          %v624 = vlaneseq
          %v625 = vshrl.u32 %v624, 7
          %v626 = vsub.s32 0, %v625
          %v627 = vrot.slane %v587, %v626
          %v628 = vmul.f32 %v604, %v627
          %v629 = vmul.f32 %v605, %v627
          %v630 = vmul.f32 %v609, %v627
          %v631 = vmul.f32 %v610, %v627
          %v632 = vmul.f32 %v614, %v627
          %v633 = vmul.f32 %v615, %v627
          %v634 = vmul.f32 %v619, %v627
          %v635 = vmul.f32 %v620, %v627
          %v636 = vadd.f32 %v628, 0.0
          %v637 = vadd.f32 %v629, 0.0
          %v638 = vadd.f32 %v630, 0.0
          %v639 = vadd.f32 %v631, 0.0
          %v640 = vadd.f32 %v632, 0.0
          %v641 = vadd.f32 %v633, 0.0
          %v642 = vadd.f32 %v634, 0.0
          %v643 = vadd.f32 %v635, 0.0
          %v644 = vlaneseq
          %v645 = vshrl.u32 %v644, 7
          %v646 = vsub.s32 1, %v645
          %v647 = vrot.slane %v587, %v646
          %v648 = vmul.f32 %v604, %v647
          %v649 = vmul.f32 %v605, %v647
          %v650 = vmul.f32 %v606, %v647
          %v651 = vmul.f32 %v609, %v647
          %v652 = vmul.f32 %v610, %v647
          %v653 = vmul.f32 %v611, %v647
          %v654 = vmul.f32 %v614, %v647
          %v655 = vmul.f32 %v615, %v647
          %v656 = vmul.f32 %v616, %v647
          %v657 = vmul.f32 %v619, %v647
          %v658 = vmul.f32 %v620, %v647
          %v659 = vmul.f32 %v621, %v647
          %v660 = vadd.f32 %v648, 0.0
          %v661 = vadd.f32 %v649, 0.0
          %v662 = vadd.f32 %v650, 0.0
          %v663 = vadd.f32 %v651, 0.0
          %v664 = vadd.f32 %v652, 0.0
          %v665 = vadd.f32 %v653, 0.0
          %v666 = vadd.f32 %v654, 0.0
          %v667 = vadd.f32 %v655, 0.0
          %v668 = vadd.f32 %v656, 0.0
          %v669 = vadd.f32 %v657, 0.0
          %v670 = vadd.f32 %v658, 0.0
          %v671 = vadd.f32 %v659, 0.0
          %v672 = vlaneseq
          %v673 = vshrl.u32 %v672, 7
          %v674 = vsub.s32 2, %v673
          %v675 = vrot.slane %v587, %v674
          %v676 = vmul.f32 %v604, %v675
          %v677 = vmul.f32 %v605, %v675
          %v678 = vmul.f32 %v606, %v675
          %v679 = vmul.f32 %v609, %v675
          %v680 = vmul.f32 %v610, %v675
          %v681 = vmul.f32 %v611, %v675
          %v682 = vmul.f32 %v614, %v675
          %v683 = vmul.f32 %v615, %v675
          %v684 = vmul.f32 %v616, %v675
          %v685 = vmul.f32 %v619, %v675
          %v686 = vmul.f32 %v620, %v675
          %v687 = vmul.f32 %v621, %v675
          %vm700 = vcmask 1041408
          %v701 = vrot.slane %v676, 6
          %v702 = vrot.slane %v677, 6
          %v703 = vsel %vm700, %v701, %v702
          %v704 = vrot.slane %v678, 6
          %v705 = vsel %vm700, %v702, %v704
          %v706 = vrot.slane %v679, 6
          %v707 = vrot.slane %v680, 6
          %v708 = vsel %vm700, %v706, %v707
          %v709 = vrot.slane %v681, 6
          %v710 = vsel %vm700, %v707, %v709
          %v711 = vrot.slane %v682, 6
          %v712 = vrot.slane %v683, 6
          %v713 = vsel %vm700, %v711, %v712
          %v714 = vrot.slane %v684, 6
          %v715 = vsel %vm700, %v712, %v714
          %v716 = vrot.slane %v685, 6
          %v717 = vrot.slane %v686, 6
          %v718 = vsel %vm700, %v716, %v717
          %v719 = vrot.slane %v687, 6
          %v720 = vsel %vm700, %v717, %v719
          %v729 = vadd.f32 %v636, %v703
          %v730 = vadd.f32 %v637, %v705
          %v731 = vadd.f32 %v638, %v708
          %v732 = vadd.f32 %v639, %v710
          %v733 = vadd.f32 %v640, %v713
          %v734 = vadd.f32 %v641, %v715
          %v735 = vadd.f32 %v642, %v718
          %v736 = vadd.f32 %v643, %v720
          %v737 = vlaneseq
          %v738 = vshrl.u32 %v737, 7
          %v739 = vsub.s32 3, %v738
          %v740 = vrot.slane %v587, %v739
          %v741 = vmul.f32 %v605, %v740
          %v742 = vmul.f32 %v606, %v740
          %v743 = vmul.f32 %v607, %v740
          %v744 = vmul.f32 %v610, %v740
          %v745 = vmul.f32 %v611, %v740
          %v746 = vmul.f32 %v612, %v740
          %v747 = vmul.f32 %v615, %v740
          %v748 = vmul.f32 %v616, %v740
          %v749 = vmul.f32 %v617, %v740
          %v750 = vmul.f32 %v620, %v740
          %v751 = vmul.f32 %v621, %v740
          %v752 = vmul.f32 %v622, %v740
          %v765 = vrot.slane %v741, 6
          %v766 = vrot.slane %v742, 6
          %v767 = vsel %vm700, %v765, %v766
          %v768 = vrot.slane %v743, 6
          %v769 = vsel %vm700, %v766, %v768
          %v770 = vrot.slane %v744, 6
          %v771 = vrot.slane %v745, 6
          %v772 = vsel %vm700, %v770, %v771
          %v773 = vrot.slane %v746, 6
          %v774 = vsel %vm700, %v771, %v773
          %v775 = vrot.slane %v747, 6
          %v776 = vrot.slane %v748, 6
          %v777 = vsel %vm700, %v775, %v776
          %v778 = vrot.slane %v749, 6
          %v779 = vsel %vm700, %v776, %v778
          %v780 = vrot.slane %v750, 6
          %v781 = vrot.slane %v751, 6
          %v782 = vsel %vm700, %v780, %v781
          %v783 = vrot.slane %v752, 6
          %v784 = vsel %vm700, %v781, %v783
          %v797 = vadd.f32 %v660, %v765
          %v798 = vadd.f32 %v661, %v767
          %v799 = vadd.f32 %v662, %v769
          %v800 = vadd.f32 %v663, %v770
          %v801 = vadd.f32 %v664, %v772
          %v802 = vadd.f32 %v665, %v774
          %v803 = vadd.f32 %v666, %v775
          %v804 = vadd.f32 %v667, %v777
          %v805 = vadd.f32 %v668, %v779
          %v806 = vadd.f32 %v669, %v780
          %v807 = vadd.f32 %v670, %v782
          %v808 = vadd.f32 %v671, %v784
          %v809 = vlaneseq
          %v810 = vshrl.u32 %v809, 7
          %v811 = vsub.s32 4, %v810
          %v812 = vrot.slane %v587, %v811
          %v813 = vmul.f32 %v605, %v812
          %v814 = vmul.f32 %v606, %v812
          %v815 = vmul.f32 %v607, %v812
          %v816 = vmul.f32 %v610, %v812
          %v817 = vmul.f32 %v611, %v812
          %v818 = vmul.f32 %v612, %v812
          %v819 = vmul.f32 %v615, %v812
          %v820 = vmul.f32 %v616, %v812
          %v821 = vmul.f32 %v617, %v812
          %v822 = vmul.f32 %v620, %v812
          %v823 = vmul.f32 %v621, %v812
          %v824 = vmul.f32 %v622, %v812
          %vm837 = vcmask 1043456
          %v838 = vrot.slane %v813, 4
          %v839 = vrot.slane %v814, 4
          %v840 = vsel %vm837, %v838, %v839
          %v841 = vrot.slane %v815, 4
          %v842 = vsel %vm837, %v839, %v841
          %v843 = vrot.slane %v816, 4
          %v844 = vrot.slane %v817, 4
          %v845 = vsel %vm837, %v843, %v844
          %v846 = vrot.slane %v818, 4
          %v847 = vsel %vm837, %v844, %v846
          %v848 = vrot.slane %v819, 4
          %v849 = vrot.slane %v820, 4
          %v850 = vsel %vm837, %v848, %v849
          %v851 = vrot.slane %v821, 4
          %v852 = vsel %vm837, %v849, %v851
          %v853 = vrot.slane %v822, 4
          %v854 = vrot.slane %v823, 4
          %v855 = vsel %vm837, %v853, %v854
          %v856 = vrot.slane %v824, 4
          %v857 = vsel %vm837, %v854, %v856
          %v866 = vadd.f32 %v729, %v840
          %v867 = vadd.f32 %v730, %v842
          %v868 = vadd.f32 %v731, %v845
          %v869 = vadd.f32 %v732, %v847
          %v870 = vadd.f32 %v733, %v850
          %v871 = vadd.f32 %v734, %v852
          %v872 = vadd.f32 %v735, %v855
          %v873 = vadd.f32 %v736, %v857
          %v874 = vlaneseq
          %v875 = vshrl.u32 %v874, 7
          %v876 = vsub.s32 5, %v875
          %v877 = vrot.slane %v587, %v876
          %v878 = vmul.f32 %v605, %v877
          %v879 = vmul.f32 %v606, %v877
          %v880 = vmul.f32 %v607, %v877
          %v881 = vmul.f32 %v610, %v877
          %v882 = vmul.f32 %v611, %v877
          %v883 = vmul.f32 %v612, %v877
          %v884 = vmul.f32 %v615, %v877
          %v885 = vmul.f32 %v616, %v877
          %v886 = vmul.f32 %v617, %v877
          %v887 = vmul.f32 %v620, %v877
          %v888 = vmul.f32 %v621, %v877
          %v889 = vmul.f32 %v622, %v877
          %v902 = vrot.slane %v878, 4
          %v903 = vrot.slane %v879, 4
          %v904 = vsel %vm837, %v902, %v903
          %v905 = vrot.slane %v880, 4
          %v906 = vsel %vm837, %v903, %v905
          %v907 = vrot.slane %v881, 4
          %v908 = vrot.slane %v882, 4
          %v909 = vsel %vm837, %v907, %v908
          %v910 = vrot.slane %v883, 4
          %v911 = vsel %vm837, %v908, %v910
          %v912 = vrot.slane %v884, 4
          %v913 = vrot.slane %v885, 4
          %v914 = vsel %vm837, %v912, %v913
          %v915 = vrot.slane %v886, 4
          %v916 = vsel %vm837, %v913, %v915
          %v917 = vrot.slane %v887, 4
          %v918 = vrot.slane %v888, 4
          %v919 = vsel %vm837, %v917, %v918
          %v920 = vrot.slane %v889, 4
          %v921 = vsel %vm837, %v918, %v920
          %v934 = vadd.f32 %v797, %v904
          %v935 = vadd.f32 %v798, %v906
          %v936 = vadd.f32 %v799, %v905
          %v937 = vadd.f32 %v800, %v909
          %v938 = vadd.f32 %v801, %v911
          %v939 = vadd.f32 %v802, %v910
          %v940 = vadd.f32 %v803, %v914
          %v941 = vadd.f32 %v804, %v916
          %v942 = vadd.f32 %v805, %v915
          %v943 = vadd.f32 %v806, %v919
          %v944 = vadd.f32 %v807, %v921
          %v945 = vadd.f32 %v808, %v920
          %v946 = vlaneseq
          %v947 = vshrl.u32 %v946, 7
          %v948 = vsub.s32 6, %v947
          %v949 = vrot.slane %v587, %v948
          %v950 = vmul.f32 %v606, %v949
          %v951 = vmul.f32 %v607, %v949
          %v952 = vmul.f32 %v608, %v949
          %v953 = vmul.f32 %v611, %v949
          %v954 = vmul.f32 %v612, %v949
          %v955 = vmul.f32 %v613, %v949
          %v956 = vmul.f32 %v616, %v949
          %v957 = vmul.f32 %v617, %v949
          %v958 = vmul.f32 %v618, %v949
          %v959 = vmul.f32 %v621, %v949
          %v960 = vmul.f32 %v622, %v949
          %v961 = vmul.f32 %v623, %v949
          %vm974 = vcmask 1045504
          %v975 = vrot.slane %v950, 2
          %v976 = vrot.slane %v951, 2
          %v977 = vsel %vm974, %v975, %v976
          %v978 = vrot.slane %v952, 2
          %v979 = vsel %vm974, %v976, %v978
          %v980 = vrot.slane %v953, 2
          %v981 = vrot.slane %v954, 2
          %v982 = vsel %vm974, %v980, %v981
          %v983 = vrot.slane %v955, 2
          %v984 = vsel %vm974, %v981, %v983
          %v985 = vrot.slane %v956, 2
          %v986 = vrot.slane %v957, 2
          %v987 = vsel %vm974, %v985, %v986
          %v988 = vrot.slane %v958, 2
          %v989 = vsel %vm974, %v986, %v988
          %v990 = vrot.slane %v959, 2
          %v991 = vrot.slane %v960, 2
          %v992 = vsel %vm974, %v990, %v991
          %v993 = vrot.slane %v961, 2
          %v994 = vsel %vm974, %v991, %v993
          %v1003 = vadd.f32 %v866, %v977
          %v1004 = vadd.f32 %v867, %v979
          %v1005 = vadd.f32 %v868, %v982
          %v1006 = vadd.f32 %v869, %v984
          %v1007 = vadd.f32 %v870, %v987
          %v1008 = vadd.f32 %v871, %v989
          %v1009 = vadd.f32 %v872, %v992
          %v1010 = vadd.f32 %v873, %v994
          %s1011 = sadd.s32 %s601, 3
          %s1012 = smul.u32 %s1011, 48
          %s1013 = scalar_lea.vmem [#allocation2], %s1012
          %v1014 = vld [vmem:[%s1013 + $0x7] sm:$0xff]
          %v1015 = vld [vmem:[%s1013 + $0xf] sm:$0xff]
          %v1016 = vld [vmem:[%s1013 + $0x17] sm:$0xff]
          %v1017 = vld [vmem:[%s1013 + $0x1f] sm:$0xff]
          %v1018 = vld [vmem:[%s1013 + $0x27] sm:$0x3]
          %v1019 = vld [vmem:[%s1013 + $0x37] sm:$0xff]
          %v1020 = vld [vmem:[%s1013 + $0x3f] sm:$0xff]
          %v1021 = vld [vmem:[%s1013 + $0x47] sm:$0xff]
          %v1022 = vld [vmem:[%s1013 + $0x4f] sm:$0xff]
          %v1023 = vld [vmem:[%s1013 + $0x57] sm:$0x3]
          %v1024 = vld [vmem:[%s1013 + $0x67] sm:$0xff]
          %v1025 = vld [vmem:[%s1013 + $0x6f] sm:$0xff]
          %v1026 = vld [vmem:[%s1013 + $0x77] sm:$0xff]
          %v1027 = vld [vmem:[%s1013 + $0x7f] sm:$0xff]
          %v1028 = vld [vmem:[%s1013 + $0x87] sm:$0x3]
          %v1029 = vld [vmem:[%s1013 + $0x97] sm:$0xff]
          %v1030 = vld [vmem:[%s1013 + $0x9f] sm:$0xff]
          %v1031 = vld [vmem:[%s1013 + $0xa7] sm:$0xff]
          %v1032 = vld [vmem:[%s1013 + $0xaf] sm:$0xff]
          %v1033 = vld [vmem:[%s1013 + $0xb7] sm:$0x3]
          %v1034 = vlaneseq
          %v1035 = vshrl.u32 %v1034, 7
          %v1036 = vsub.s32 7, %v1035
          %v1037 = vrot.slane %v587, %v1036
          %v1038 = vmul.f32 %v1014, %v1037
          %v1039 = vmul.f32 %v1015, %v1037
          %v1040 = vmul.f32 %v1019, %v1037
          %v1041 = vmul.f32 %v1020, %v1037
          %v1042 = vmul.f32 %v1024, %v1037
          %v1043 = vmul.f32 %v1025, %v1037
          %v1044 = vmul.f32 %v1029, %v1037
          %v1045 = vmul.f32 %v1030, %v1037
          %v1046 = vadd.f32 %v1003, %v1038
          %v1047 = vadd.f32 %v1004, %v1039
          %v1048 = vadd.f32 %v1005, %v1040
          %v1049 = vadd.f32 %v1006, %v1041
          %v1050 = vadd.f32 %v1007, %v1042
          %v1051 = vadd.f32 %v1008, %v1043
          %v1052 = vadd.f32 %v1009, %v1044
          %v1053 = vadd.f32 %v1010, %v1045
          %v1054 = vlaneseq
          %v1055 = vshrl.u32 %v1054, 7
          %v1056 = vsub.s32 0, %v1055
          %v1057 = vrot.slane %v588, %v1056
          %v1058 = vmul.f32 %v1014, %v1057
          %v1059 = vmul.f32 %v1015, %v1057
          %v1060 = vmul.f32 %v1016, %v1057
          %v1061 = vmul.f32 %v1019, %v1057
          %v1062 = vmul.f32 %v1020, %v1057
          %v1063 = vmul.f32 %v1021, %v1057
          %v1064 = vmul.f32 %v1024, %v1057
          %v1065 = vmul.f32 %v1025, %v1057
          %v1066 = vmul.f32 %v1026, %v1057
          %v1067 = vmul.f32 %v1029, %v1057
          %v1068 = vmul.f32 %v1030, %v1057
          %v1069 = vmul.f32 %v1031, %v1057
          %v1070 = vadd.f32 %v934, %v1058
          %v1071 = vadd.f32 %v935, %v1059
          %v1072 = vadd.f32 %v936, %v1060
          %v1073 = vadd.f32 %v937, %v1061
          %v1074 = vadd.f32 %v938, %v1062
          %v1075 = vadd.f32 %v939, %v1063
          %v1076 = vadd.f32 %v940, %v1064
          %v1077 = vadd.f32 %v941, %v1065
          %v1078 = vadd.f32 %v942, %v1066
          %v1079 = vadd.f32 %v943, %v1067
          %v1080 = vadd.f32 %v944, %v1068
          %v1081 = vadd.f32 %v945, %v1069
          %v1082 = vlaneseq
          %v1083 = vshrl.u32 %v1082, 7
          %v1084 = vsub.s32 1, %v1083
          %v1085 = vrot.slane %v588, %v1084
          %v1086 = vmul.f32 %v1014, %v1085
          %v1087 = vmul.f32 %v1015, %v1085
          %v1088 = vmul.f32 %v1016, %v1085
          %v1089 = vmul.f32 %v1019, %v1085
          %v1090 = vmul.f32 %v1020, %v1085
          %v1091 = vmul.f32 %v1021, %v1085
          %v1092 = vmul.f32 %v1024, %v1085
          %v1093 = vmul.f32 %v1025, %v1085
          %v1094 = vmul.f32 %v1026, %v1085
          %v1095 = vmul.f32 %v1029, %v1085
          %v1096 = vmul.f32 %v1030, %v1085
          %v1097 = vmul.f32 %v1031, %v1085
          %v1110 = vrot.slane %v1086, 6
          %v1111 = vrot.slane %v1087, 6
          %v1112 = vsel %vm700, %v1110, %v1111
          %v1113 = vrot.slane %v1088, 6
          %v1114 = vsel %vm700, %v1111, %v1113
          %v1115 = vrot.slane %v1089, 6
          %v1116 = vrot.slane %v1090, 6
          %v1117 = vsel %vm700, %v1115, %v1116
          %v1118 = vrot.slane %v1091, 6
          %v1119 = vsel %vm700, %v1116, %v1118
          %v1120 = vrot.slane %v1092, 6
          %v1121 = vrot.slane %v1093, 6
          %v1122 = vsel %vm700, %v1120, %v1121
          %v1123 = vrot.slane %v1094, 6
          %v1124 = vsel %vm700, %v1121, %v1123
          %v1125 = vrot.slane %v1095, 6
          %v1126 = vrot.slane %v1096, 6
          %v1127 = vsel %vm700, %v1125, %v1126
          %v1128 = vrot.slane %v1097, 6
          %v1129 = vsel %vm700, %v1126, %v1128
          %v1138 = vadd.f32 %v1046, %v1112
          %v1139 = vadd.f32 %v1047, %v1114
          %v1140 = vadd.f32 %v1048, %v1117
          %v1141 = vadd.f32 %v1049, %v1119
          %v1142 = vadd.f32 %v1050, %v1122
          %v1143 = vadd.f32 %v1051, %v1124
          %v1144 = vadd.f32 %v1052, %v1127
          %v1145 = vadd.f32 %v1053, %v1129
          %v1146 = vlaneseq
          %v1147 = vshrl.u32 %v1146, 7
          %v1148 = vsub.s32 2, %v1147
          %v1149 = vrot.slane %v588, %v1148
          %v1150 = vmul.f32 %v1015, %v1149
          %v1151 = vmul.f32 %v1016, %v1149
          %v1152 = vmul.f32 %v1017, %v1149
          %v1153 = vmul.f32 %v1020, %v1149
          %v1154 = vmul.f32 %v1021, %v1149
          %v1155 = vmul.f32 %v1022, %v1149
          %v1156 = vmul.f32 %v1025, %v1149
          %v1157 = vmul.f32 %v1026, %v1149
          %v1158 = vmul.f32 %v1027, %v1149
          %v1159 = vmul.f32 %v1030, %v1149
          %v1160 = vmul.f32 %v1031, %v1149
          %v1161 = vmul.f32 %v1032, %v1149
          %v1174 = vrot.slane %v1150, 6
          %v1175 = vrot.slane %v1151, 6
          %v1176 = vsel %vm700, %v1174, %v1175
          %v1177 = vrot.slane %v1152, 6
          %v1178 = vsel %vm700, %v1175, %v1177
          %v1179 = vrot.slane %v1153, 6
          %v1180 = vrot.slane %v1154, 6
          %v1181 = vsel %vm700, %v1179, %v1180
          %v1182 = vrot.slane %v1155, 6
          %v1183 = vsel %vm700, %v1180, %v1182
          %v1184 = vrot.slane %v1156, 6
          %v1185 = vrot.slane %v1157, 6
          %v1186 = vsel %vm700, %v1184, %v1185
          %v1187 = vrot.slane %v1158, 6
          %v1188 = vsel %vm700, %v1185, %v1187
          %v1189 = vrot.slane %v1159, 6
          %v1190 = vrot.slane %v1160, 6
          %v1191 = vsel %vm700, %v1189, %v1190
          %v1192 = vrot.slane %v1161, 6
          %v1193 = vsel %vm700, %v1190, %v1192
          %v1206 = vadd.f32 %v1070, %v1174
          %v1207 = vadd.f32 %v1071, %v1176
          %v1208 = vadd.f32 %v1072, %v1178
          %v1209 = vadd.f32 %v1073, %v1179
          %v1210 = vadd.f32 %v1074, %v1181
          %v1211 = vadd.f32 %v1075, %v1183
          %v1212 = vadd.f32 %v1076, %v1184
          %v1213 = vadd.f32 %v1077, %v1186
          %v1214 = vadd.f32 %v1078, %v1188
          %v1215 = vadd.f32 %v1079, %v1189
          %v1216 = vadd.f32 %v1080, %v1191
          %v1217 = vadd.f32 %v1081, %v1193
          %v1218 = vlaneseq
          %v1219 = vshrl.u32 %v1218, 7
          %v1220 = vsub.s32 3, %v1219
          %v1221 = vrot.slane %v588, %v1220
          %v1222 = vmul.f32 %v1015, %v1221
          %v1223 = vmul.f32 %v1016, %v1221
          %v1224 = vmul.f32 %v1017, %v1221
          %v1225 = vmul.f32 %v1020, %v1221
          %v1226 = vmul.f32 %v1021, %v1221
          %v1227 = vmul.f32 %v1022, %v1221
          %v1228 = vmul.f32 %v1025, %v1221
          %v1229 = vmul.f32 %v1026, %v1221
          %v1230 = vmul.f32 %v1027, %v1221
          %v1231 = vmul.f32 %v1030, %v1221
          %v1232 = vmul.f32 %v1031, %v1221
          %v1233 = vmul.f32 %v1032, %v1221
          %v1246 = vrot.slane %v1222, 4
          %v1247 = vrot.slane %v1223, 4
          %v1248 = vsel %vm837, %v1246, %v1247
          %v1249 = vrot.slane %v1224, 4
          %v1250 = vsel %vm837, %v1247, %v1249
          %v1251 = vrot.slane %v1225, 4
          %v1252 = vrot.slane %v1226, 4
          %v1253 = vsel %vm837, %v1251, %v1252
          %v1254 = vrot.slane %v1227, 4
          %v1255 = vsel %vm837, %v1252, %v1254
          %v1256 = vrot.slane %v1228, 4
          %v1257 = vrot.slane %v1229, 4
          %v1258 = vsel %vm837, %v1256, %v1257
          %v1259 = vrot.slane %v1230, 4
          %v1260 = vsel %vm837, %v1257, %v1259
          %v1261 = vrot.slane %v1231, 4
          %v1262 = vrot.slane %v1232, 4
          %v1263 = vsel %vm837, %v1261, %v1262
          %v1264 = vrot.slane %v1233, 4
          %v1265 = vsel %vm837, %v1262, %v1264
          %v1274 = vadd.f32 %v1138, %v1248
          %v1275 = vadd.f32 %v1139, %v1250
          %v1276 = vadd.f32 %v1140, %v1253
          %v1277 = vadd.f32 %v1141, %v1255
          %v1278 = vadd.f32 %v1142, %v1258
          %v1279 = vadd.f32 %v1143, %v1260
          %v1280 = vadd.f32 %v1144, %v1263
          %v1281 = vadd.f32 %v1145, %v1265
          %v1282 = vlaneseq
          %v1283 = vshrl.u32 %v1282, 7
          %v1284 = vsub.s32 4, %v1283
          %v1285 = vrot.slane %v588, %v1284
          %v1286 = vmul.f32 %v1015, %v1285
          %v1287 = vmul.f32 %v1016, %v1285
          %v1288 = vmul.f32 %v1017, %v1285
          %v1289 = vmul.f32 %v1020, %v1285
          %v1290 = vmul.f32 %v1021, %v1285
          %v1291 = vmul.f32 %v1022, %v1285
          %v1292 = vmul.f32 %v1025, %v1285
          %v1293 = vmul.f32 %v1026, %v1285
          %v1294 = vmul.f32 %v1027, %v1285
          %v1295 = vmul.f32 %v1030, %v1285
          %v1296 = vmul.f32 %v1031, %v1285
          %v1297 = vmul.f32 %v1032, %v1285
          %v1310 = vrot.slane %v1286, 4
          %v1311 = vrot.slane %v1287, 4
          %v1312 = vsel %vm837, %v1310, %v1311
          %v1313 = vrot.slane %v1288, 4
          %v1314 = vsel %vm837, %v1311, %v1313
          %v1315 = vrot.slane %v1289, 4
          %v1316 = vrot.slane %v1290, 4
          %v1317 = vsel %vm837, %v1315, %v1316
          %v1318 = vrot.slane %v1291, 4
          %v1319 = vsel %vm837, %v1316, %v1318
          %v1320 = vrot.slane %v1292, 4
          %v1321 = vrot.slane %v1293, 4
          %v1322 = vsel %vm837, %v1320, %v1321
          %v1323 = vrot.slane %v1294, 4
          %v1324 = vsel %vm837, %v1321, %v1323
          %v1325 = vrot.slane %v1295, 4
          %v1326 = vrot.slane %v1296, 4
          %v1327 = vsel %vm837, %v1325, %v1326
          %v1328 = vrot.slane %v1297, 4
          %v1329 = vsel %vm837, %v1326, %v1328
          %v1342 = vadd.f32 %v1206, %v1312
          %v1343 = vadd.f32 %v1207, %v1314
          %v1344 = vadd.f32 %v1208, %v1313
          %v1345 = vadd.f32 %v1209, %v1317
          %v1346 = vadd.f32 %v1210, %v1319
          %v1347 = vadd.f32 %v1211, %v1318
          %v1348 = vadd.f32 %v1212, %v1322
          %v1349 = vadd.f32 %v1213, %v1324
          %v1350 = vadd.f32 %v1214, %v1323
          %v1351 = vadd.f32 %v1215, %v1327
          %v1352 = vadd.f32 %v1216, %v1329
          %v1353 = vadd.f32 %v1217, %v1328
          %v1354 = vlaneseq
          %v1355 = vshrl.u32 %v1354, 7
          %v1356 = vsub.s32 5, %v1355
          %v1357 = vrot.slane %v588, %v1356
          %v1358 = vmul.f32 %v1016, %v1357
          %v1359 = vmul.f32 %v1017, %v1357
          %v1360 = vmul.f32 %v1018, %v1357
          %v1361 = vmul.f32 %v1021, %v1357
          %v1362 = vmul.f32 %v1022, %v1357
          %v1363 = vmul.f32 %v1023, %v1357
          %v1364 = vmul.f32 %v1026, %v1357
          %v1365 = vmul.f32 %v1027, %v1357
          %v1366 = vmul.f32 %v1028, %v1357
          %v1367 = vmul.f32 %v1031, %v1357
          %v1368 = vmul.f32 %v1032, %v1357
          %v1369 = vmul.f32 %v1033, %v1357
          %v1382 = vrot.slane %v1358, 2
          %v1383 = vrot.slane %v1359, 2
          %v1384 = vsel %vm974, %v1382, %v1383
          %v1385 = vrot.slane %v1360, 2
          %v1386 = vsel %vm974, %v1383, %v1385
          %v1387 = vrot.slane %v1361, 2
          %v1388 = vrot.slane %v1362, 2
          %v1389 = vsel %vm974, %v1387, %v1388
          %v1390 = vrot.slane %v1363, 2
          %v1391 = vsel %vm974, %v1388, %v1390
          %v1392 = vrot.slane %v1364, 2
          %v1393 = vrot.slane %v1365, 2
          %v1394 = vsel %vm974, %v1392, %v1393
          %v1395 = vrot.slane %v1366, 2
          %v1396 = vsel %vm974, %v1393, %v1395
          %v1397 = vrot.slane %v1367, 2
          %v1398 = vrot.slane %v1368, 2
          %v1399 = vsel %vm974, %v1397, %v1398
          %v1400 = vrot.slane %v1369, 2
          %v1401 = vsel %vm974, %v1398, %v1400
          %v1410 = vadd.f32 %v1274, %v1384
          %v1411 = vadd.f32 %v1275, %v1386
          %v1412 = vadd.f32 %v1276, %v1389
          %v1413 = vadd.f32 %v1277, %v1391
          %v1414 = vadd.f32 %v1278, %v1394
          %v1415 = vadd.f32 %v1279, %v1396
          %v1416 = vadd.f32 %v1280, %v1399
          %v1417 = vadd.f32 %v1281, %v1401
          %s1418 = sadd.s32 %s601, 6
          %s1419 = smul.u32 %s1418, 48
          %s1420 = scalar_lea.vmem [#allocation2], %s1419
          %v1421 = vld [vmem:[%s1420 + $0x7] sm:$0xff]
          %v1422 = vld [vmem:[%s1420 + $0xf] sm:$0xff]
          %v1423 = vld [vmem:[%s1420 + $0x17] sm:$0xff]
          %v1424 = vld [vmem:[%s1420 + $0x1f] sm:$0xff]
          %v1425 = vld [vmem:[%s1420 + $0x27] sm:$0x3]
          %v1426 = vld [vmem:[%s1420 + $0x37] sm:$0xff]
          %v1427 = vld [vmem:[%s1420 + $0x3f] sm:$0xff]
          %v1428 = vld [vmem:[%s1420 + $0x47] sm:$0xff]
          %v1429 = vld [vmem:[%s1420 + $0x4f] sm:$0xff]
          %v1430 = vld [vmem:[%s1420 + $0x57] sm:$0x3]
          %v1431 = vld [vmem:[%s1420 + $0x67] sm:$0xff]
          %v1432 = vld [vmem:[%s1420 + $0x6f] sm:$0xff]
          %v1433 = vld [vmem:[%s1420 + $0x77] sm:$0xff]
          %v1434 = vld [vmem:[%s1420 + $0x7f] sm:$0xff]
          %v1435 = vld [vmem:[%s1420 + $0x87] sm:$0x3]
          %v1436 = vld [vmem:[%s1420 + $0x97] sm:$0xff]
          %v1437 = vld [vmem:[%s1420 + $0x9f] sm:$0xff]
          %v1438 = vld [vmem:[%s1420 + $0xa7] sm:$0xff]
          %v1439 = vld [vmem:[%s1420 + $0xaf] sm:$0xff]
          %v1440 = vld [vmem:[%s1420 + $0xb7] sm:$0x3]
          %v1441 = vlaneseq
          %v1442 = vshrl.u32 %v1441, 7
          %v1443 = vsub.s32 6, %v1442
          %v1444 = vrot.slane %v588, %v1443
          %v1445 = vmul.f32 %v1421, %v1444
          %v1446 = vmul.f32 %v1422, %v1444
          %v1447 = vmul.f32 %v1426, %v1444
          %v1448 = vmul.f32 %v1427, %v1444
          %v1449 = vmul.f32 %v1431, %v1444
          %v1450 = vmul.f32 %v1432, %v1444
          %v1451 = vmul.f32 %v1436, %v1444
          %v1452 = vmul.f32 %v1437, %v1444
          %v1453 = vadd.f32 %v1410, %v1445
          %v1454 = vadd.f32 %v1411, %v1446
          %v1455 = vadd.f32 %v1412, %v1447
          %v1456 = vadd.f32 %v1413, %v1448
          %v1457 = vadd.f32 %v1414, %v1449
          %v1458 = vadd.f32 %v1415, %v1450
          %v1459 = vadd.f32 %v1416, %v1451
          %v1460 = vadd.f32 %v1417, %v1452
          %v1461 = vlaneseq
          %v1462 = vshrl.u32 %v1461, 7
          %v1463 = vsub.s32 7, %v1462
          %v1464 = vrot.slane %v588, %v1463
          %v1465 = vmul.f32 %v1421, %v1464
          %v1466 = vmul.f32 %v1422, %v1464
          %v1467 = vmul.f32 %v1423, %v1464
          %v1468 = vmul.f32 %v1426, %v1464
          %v1469 = vmul.f32 %v1427, %v1464
          %v1470 = vmul.f32 %v1428, %v1464
          %v1471 = vmul.f32 %v1431, %v1464
          %v1472 = vmul.f32 %v1432, %v1464
          %v1473 = vmul.f32 %v1433, %v1464
          %v1474 = vmul.f32 %v1436, %v1464
          %v1475 = vmul.f32 %v1437, %v1464
          %v1476 = vmul.f32 %v1438, %v1464
          %v1477 = vadd.f32 %v1342, %v1465
          %v1478 = vadd.f32 %v1343, %v1466
          %v1479 = vadd.f32 %v1344, %v1467
          %v1480 = vadd.f32 %v1345, %v1468
          %v1481 = vadd.f32 %v1346, %v1469
          %v1482 = vadd.f32 %v1347, %v1470
          %v1483 = vadd.f32 %v1348, %v1471
          %v1484 = vadd.f32 %v1349, %v1472
          %v1485 = vadd.f32 %v1350, %v1473
          %v1486 = vadd.f32 %v1351, %v1474
          %v1487 = vadd.f32 %v1352, %v1475
          %v1488 = vadd.f32 %v1353, %v1476
          %v1489 = vlaneseq
          %v1490 = vshrl.u32 %v1489, 7
          %v1491 = vsub.s32 0, %v1490
          %v1492 = vrot.slane %v589, %v1491
          %v1493 = vmul.f32 %v1421, %v1492
          %v1494 = vmul.f32 %v1422, %v1492
          %v1495 = vmul.f32 %v1423, %v1492
          %v1496 = vmul.f32 %v1426, %v1492
          %v1497 = vmul.f32 %v1427, %v1492
          %v1498 = vmul.f32 %v1428, %v1492
          %v1499 = vmul.f32 %v1431, %v1492
          %v1500 = vmul.f32 %v1432, %v1492
          %v1501 = vmul.f32 %v1433, %v1492
          %v1502 = vmul.f32 %v1436, %v1492
          %v1503 = vmul.f32 %v1437, %v1492
          %v1504 = vmul.f32 %v1438, %v1492
          %v1517 = vrot.slane %v1493, 6
          %v1518 = vrot.slane %v1494, 6
          %v1519 = vsel %vm700, %v1517, %v1518
          %v1520 = vrot.slane %v1495, 6
          %v1521 = vsel %vm700, %v1518, %v1520
          %v1522 = vrot.slane %v1496, 6
          %v1523 = vrot.slane %v1497, 6
          %v1524 = vsel %vm700, %v1522, %v1523
          %v1525 = vrot.slane %v1498, 6
          %v1526 = vsel %vm700, %v1523, %v1525
          %v1527 = vrot.slane %v1499, 6
          %v1528 = vrot.slane %v1500, 6
          %v1529 = vsel %vm700, %v1527, %v1528
          %v1530 = vrot.slane %v1501, 6
          %v1531 = vsel %vm700, %v1528, %v1530
          %v1532 = vrot.slane %v1502, 6
          %v1533 = vrot.slane %v1503, 6
          %v1534 = vsel %vm700, %v1532, %v1533
          %v1535 = vrot.slane %v1504, 6
          %v1536 = vsel %vm700, %v1533, %v1535
          %v1545 = vadd.f32 %v1453, %v1519
          %v1546 = vadd.f32 %v1454, %v1521
          %v1547 = vadd.f32 %v1455, %v1524
          %v1548 = vadd.f32 %v1456, %v1526
          %v1549 = vadd.f32 %v1457, %v1529
          %v1550 = vadd.f32 %v1458, %v1531
          %v1551 = vadd.f32 %v1459, %v1534
          %v1552 = vadd.f32 %v1460, %v1536
          %v1553 = vlaneseq
          %v1554 = vshrl.u32 %v1553, 7
          %v1555 = vsub.s32 1, %v1554
          %v1556 = vrot.slane %v589, %v1555
          %v1557 = vmul.f32 %v1422, %v1556
          %v1558 = vmul.f32 %v1423, %v1556
          %v1559 = vmul.f32 %v1424, %v1556
          %v1560 = vmul.f32 %v1427, %v1556
          %v1561 = vmul.f32 %v1428, %v1556
          %v1562 = vmul.f32 %v1429, %v1556
          %v1563 = vmul.f32 %v1432, %v1556
          %v1564 = vmul.f32 %v1433, %v1556
          %v1565 = vmul.f32 %v1434, %v1556
          %v1566 = vmul.f32 %v1437, %v1556
          %v1567 = vmul.f32 %v1438, %v1556
          %v1568 = vmul.f32 %v1439, %v1556
          %v1581 = vrot.slane %v1557, 6
          %v1582 = vrot.slane %v1558, 6
          %v1583 = vsel %vm700, %v1581, %v1582
          %v1584 = vrot.slane %v1559, 6
          %v1585 = vsel %vm700, %v1582, %v1584
          %v1586 = vrot.slane %v1560, 6
          %v1587 = vrot.slane %v1561, 6
          %v1588 = vsel %vm700, %v1586, %v1587
          %v1589 = vrot.slane %v1562, 6
          %v1590 = vsel %vm700, %v1587, %v1589
          %v1591 = vrot.slane %v1563, 6
          %v1592 = vrot.slane %v1564, 6
          %v1593 = vsel %vm700, %v1591, %v1592
          %v1594 = vrot.slane %v1565, 6
          %v1595 = vsel %vm700, %v1592, %v1594
          %v1596 = vrot.slane %v1566, 6
          %v1597 = vrot.slane %v1567, 6
          %v1598 = vsel %vm700, %v1596, %v1597
          %v1599 = vrot.slane %v1568, 6
          %v1600 = vsel %vm700, %v1597, %v1599
          %v1613 = vadd.f32 %v1477, %v1581
          %v1614 = vadd.f32 %v1478, %v1583
          %v1615 = vadd.f32 %v1479, %v1585
          %v1616 = vadd.f32 %v1480, %v1586
          %v1617 = vadd.f32 %v1481, %v1588
          %v1618 = vadd.f32 %v1482, %v1590
          %v1619 = vadd.f32 %v1483, %v1591
          %v1620 = vadd.f32 %v1484, %v1593
          %v1621 = vadd.f32 %v1485, %v1595
          %v1622 = vadd.f32 %v1486, %v1596
          %v1623 = vadd.f32 %v1487, %v1598
          %v1624 = vadd.f32 %v1488, %v1600
          %v1625 = vlaneseq
          %v1626 = vshrl.u32 %v1625, 7
          %v1627 = vsub.s32 2, %v1626
          %v1628 = vrot.slane %v589, %v1627
          %v1629 = vmul.f32 %v1422, %v1628
          %v1630 = vmul.f32 %v1423, %v1628
          %v1631 = vmul.f32 %v1424, %v1628
          %v1632 = vmul.f32 %v1427, %v1628
          %v1633 = vmul.f32 %v1428, %v1628
          %v1634 = vmul.f32 %v1429, %v1628
          %v1635 = vmul.f32 %v1432, %v1628
          %v1636 = vmul.f32 %v1433, %v1628
          %v1637 = vmul.f32 %v1434, %v1628
          %v1638 = vmul.f32 %v1437, %v1628
          %v1639 = vmul.f32 %v1438, %v1628
          %v1640 = vmul.f32 %v1439, %v1628
          %v1653 = vrot.slane %v1629, 4
          %v1654 = vrot.slane %v1630, 4
          %v1655 = vsel %vm837, %v1653, %v1654
          %v1656 = vrot.slane %v1631, 4
          %v1657 = vsel %vm837, %v1654, %v1656
          %v1658 = vrot.slane %v1632, 4
          %v1659 = vrot.slane %v1633, 4
          %v1660 = vsel %vm837, %v1658, %v1659
          %v1661 = vrot.slane %v1634, 4
          %v1662 = vsel %vm837, %v1659, %v1661
          %v1663 = vrot.slane %v1635, 4
          %v1664 = vrot.slane %v1636, 4
          %v1665 = vsel %vm837, %v1663, %v1664
          %v1666 = vrot.slane %v1637, 4
          %v1667 = vsel %vm837, %v1664, %v1666
          %v1668 = vrot.slane %v1638, 4
          %v1669 = vrot.slane %v1639, 4
          %v1670 = vsel %vm837, %v1668, %v1669
          %v1671 = vrot.slane %v1640, 4
          %v1672 = vsel %vm837, %v1669, %v1671
          %v1681 = vadd.f32 %v1545, %v1655
          %v1682 = vadd.f32 %v1546, %v1657
          %v1683 = vadd.f32 %v1547, %v1660
          %v1684 = vadd.f32 %v1548, %v1662
          %v1685 = vadd.f32 %v1549, %v1665
          %v1686 = vadd.f32 %v1550, %v1667
          %v1687 = vadd.f32 %v1551, %v1670
          %v1688 = vadd.f32 %v1552, %v1672
          %v1689 = vlaneseq
          %v1690 = vshrl.u32 %v1689, 7
          %v1691 = vsub.s32 3, %v1690
          %v1692 = vrot.slane %v589, %v1691
          %v1693 = vmul.f32 %v1422, %v1692
          %v1694 = vmul.f32 %v1423, %v1692
          %v1695 = vmul.f32 %v1424, %v1692
          %v1696 = vmul.f32 %v1427, %v1692
          %v1697 = vmul.f32 %v1428, %v1692
          %v1698 = vmul.f32 %v1429, %v1692
          %v1699 = vmul.f32 %v1432, %v1692
          %v1700 = vmul.f32 %v1433, %v1692
          %v1701 = vmul.f32 %v1434, %v1692
          %v1702 = vmul.f32 %v1437, %v1692
          %v1703 = vmul.f32 %v1438, %v1692
          %v1704 = vmul.f32 %v1439, %v1692
          %v1717 = vrot.slane %v1693, 4
          %v1718 = vrot.slane %v1694, 4
          %v1719 = vsel %vm837, %v1717, %v1718
          %v1720 = vrot.slane %v1695, 4
          %v1721 = vsel %vm837, %v1718, %v1720
          %v1722 = vrot.slane %v1696, 4
          %v1723 = vrot.slane %v1697, 4
          %v1724 = vsel %vm837, %v1722, %v1723
          %v1725 = vrot.slane %v1698, 4
          %v1726 = vsel %vm837, %v1723, %v1725
          %v1727 = vrot.slane %v1699, 4
          %v1728 = vrot.slane %v1700, 4
          %v1729 = vsel %vm837, %v1727, %v1728
          %v1730 = vrot.slane %v1701, 4
          %v1731 = vsel %vm837, %v1728, %v1730
          %v1732 = vrot.slane %v1702, 4
          %v1733 = vrot.slane %v1703, 4
          %v1734 = vsel %vm837, %v1732, %v1733
          %v1735 = vrot.slane %v1704, 4
          %v1736 = vsel %vm837, %v1733, %v1735
          %v1749 = vadd.f32 %v1613, %v1719
          %v1750 = vadd.f32 %v1614, %v1721
          %v1751 = vadd.f32 %v1615, %v1720
          %v1752 = vadd.f32 %v1616, %v1724
          %v1753 = vadd.f32 %v1617, %v1726
          %v1754 = vadd.f32 %v1618, %v1725
          %v1755 = vadd.f32 %v1619, %v1729
          %v1756 = vadd.f32 %v1620, %v1731
          %v1757 = vadd.f32 %v1621, %v1730
          %v1758 = vadd.f32 %v1622, %v1734
          %v1759 = vadd.f32 %v1623, %v1736
          %v1760 = vadd.f32 %v1624, %v1735
          %v1761 = vlaneseq
          %v1762 = vshrl.u32 %v1761, 7
          %v1763 = vsub.s32 4, %v1762
          %v1764 = vrot.slane %v589, %v1763
          %v1765 = vmul.f32 %v1423, %v1764
          %v1766 = vmul.f32 %v1424, %v1764
          %v1767 = vmul.f32 %v1425, %v1764
          %v1768 = vmul.f32 %v1428, %v1764
          %v1769 = vmul.f32 %v1429, %v1764
          %v1770 = vmul.f32 %v1430, %v1764
          %v1771 = vmul.f32 %v1433, %v1764
          %v1772 = vmul.f32 %v1434, %v1764
          %v1773 = vmul.f32 %v1435, %v1764
          %v1774 = vmul.f32 %v1438, %v1764
          %v1775 = vmul.f32 %v1439, %v1764
          %v1776 = vmul.f32 %v1440, %v1764
          %v1789 = vrot.slane %v1765, 2
          %v1790 = vrot.slane %v1766, 2
          %v1791 = vsel %vm974, %v1789, %v1790
          %v1792 = vrot.slane %v1767, 2
          %v1793 = vsel %vm974, %v1790, %v1792
          %v1794 = vrot.slane %v1768, 2
          %v1795 = vrot.slane %v1769, 2
          %v1796 = vsel %vm974, %v1794, %v1795
          %v1797 = vrot.slane %v1770, 2
          %v1798 = vsel %vm974, %v1795, %v1797
          %v1799 = vrot.slane %v1771, 2
          %v1800 = vrot.slane %v1772, 2
          %v1801 = vsel %vm974, %v1799, %v1800
          %v1802 = vrot.slane %v1773, 2
          %v1803 = vsel %vm974, %v1800, %v1802
          %v1804 = vrot.slane %v1774, 2
          %v1805 = vrot.slane %v1775, 2
          %v1806 = vsel %vm974, %v1804, %v1805
          %v1807 = vrot.slane %v1776, 2
          %v1808 = vsel %vm974, %v1805, %v1807
          %v1817 = vadd.f32 %v1681, %v1791
          %v1818 = vadd.f32 %v1682, %v1793
          %v1819 = vadd.f32 %v1683, %v1796
          %v1820 = vadd.f32 %v1684, %v1798
          %v1821 = vadd.f32 %v1685, %v1801
          %v1822 = vadd.f32 %v1686, %v1803
          %v1823 = vadd.f32 %v1687, %v1806
          %v1824 = vadd.f32 %v1688, %v1808
          %s1825 = sadd.s32 %s601, 9
          %s1826 = smul.u32 %s1825, 48
          %s1827 = scalar_lea.vmem [#allocation2], %s1826
          %v1828 = vld [vmem:[%s1827 + $0x7] sm:$0xff]
          %v1829 = vld [vmem:[%s1827 + $0xf] sm:$0xff]
          %v1830 = vld [vmem:[%s1827 + $0x17] sm:$0xff]
          %v1831 = vld [vmem:[%s1827 + $0x1f] sm:$0xff]
          %v1832 = vld [vmem:[%s1827 + $0x27] sm:$0x3]
          %v1833 = vld [vmem:[%s1827 + $0x37] sm:$0xff]
          %v1834 = vld [vmem:[%s1827 + $0x3f] sm:$0xff]
          %v1835 = vld [vmem:[%s1827 + $0x47] sm:$0xff]
          %v1836 = vld [vmem:[%s1827 + $0x4f] sm:$0xff]
          %v1837 = vld [vmem:[%s1827 + $0x57] sm:$0x3]
          %v1838 = vld [vmem:[%s1827 + $0x67] sm:$0xff]
          %v1839 = vld [vmem:[%s1827 + $0x6f] sm:$0xff]
          %v1840 = vld [vmem:[%s1827 + $0x77] sm:$0xff]
          %v1841 = vld [vmem:[%s1827 + $0x7f] sm:$0xff]
          %v1842 = vld [vmem:[%s1827 + $0x87] sm:$0x3]
          %v1843 = vld [vmem:[%s1827 + $0x97] sm:$0xff]
          %v1844 = vld [vmem:[%s1827 + $0x9f] sm:$0xff]
          %v1845 = vld [vmem:[%s1827 + $0xa7] sm:$0xff]
          %v1846 = vld [vmem:[%s1827 + $0xaf] sm:$0xff]
          %v1847 = vld [vmem:[%s1827 + $0xb7] sm:$0x3]
          %v1848 = vlaneseq
          %v1849 = vshrl.u32 %v1848, 7
          %v1850 = vsub.s32 5, %v1849
          %v1851 = vrot.slane %v589, %v1850
          %v1852 = vmul.f32 %v1828, %v1851
          %v1853 = vmul.f32 %v1829, %v1851
          %v1854 = vmul.f32 %v1833, %v1851
          %v1855 = vmul.f32 %v1834, %v1851
          %v1856 = vmul.f32 %v1838, %v1851
          %v1857 = vmul.f32 %v1839, %v1851
          %v1858 = vmul.f32 %v1843, %v1851
          %v1859 = vmul.f32 %v1844, %v1851
          %v1860 = vadd.f32 %v1817, %v1852
          %v1861 = vadd.f32 %v1818, %v1853
          %v1862 = vadd.f32 %v1819, %v1854
          %v1863 = vadd.f32 %v1820, %v1855
          %v1864 = vadd.f32 %v1821, %v1856
          %v1865 = vadd.f32 %v1822, %v1857
          %v1866 = vadd.f32 %v1823, %v1858
          %v1867 = vadd.f32 %v1824, %v1859
          %v1868 = vlaneseq
          %v1869 = vshrl.u32 %v1868, 7
          %v1870 = vsub.s32 6, %v1869
          %v1871 = vrot.slane %v589, %v1870
          %v1872 = vmul.f32 %v1828, %v1871
          %v1873 = vmul.f32 %v1829, %v1871
          %v1874 = vmul.f32 %v1830, %v1871
          %v1875 = vmul.f32 %v1833, %v1871
          %v1876 = vmul.f32 %v1834, %v1871
          %v1877 = vmul.f32 %v1835, %v1871
          %v1878 = vmul.f32 %v1838, %v1871
          %v1879 = vmul.f32 %v1839, %v1871
          %v1880 = vmul.f32 %v1840, %v1871
          %v1881 = vmul.f32 %v1843, %v1871
          %v1882 = vmul.f32 %v1844, %v1871
          %v1883 = vmul.f32 %v1845, %v1871
          %v1884 = vadd.f32 %v1749, %v1872
          %v1885 = vadd.f32 %v1750, %v1873
          %v1886 = vadd.f32 %v1751, %v1874
          %v1887 = vadd.f32 %v1752, %v1875
          %v1888 = vadd.f32 %v1753, %v1876
          %v1889 = vadd.f32 %v1754, %v1877
          %v1890 = vadd.f32 %v1755, %v1878
          %v1891 = vadd.f32 %v1756, %v1879
          %v1892 = vadd.f32 %v1757, %v1880
          %v1893 = vadd.f32 %v1758, %v1881
          %v1894 = vadd.f32 %v1759, %v1882
          %v1895 = vadd.f32 %v1760, %v1883
          %v1896 = vlaneseq
          %v1897 = vshrl.u32 %v1896, 7
          %v1898 = vsub.s32 7, %v1897
          %v1899 = vrot.slane %v589, %v1898
          %v1900 = vmul.f32 %v1828, %v1899
          %v1901 = vmul.f32 %v1829, %v1899
          %v1902 = vmul.f32 %v1830, %v1899
          %v1903 = vmul.f32 %v1833, %v1899
          %v1904 = vmul.f32 %v1834, %v1899
          %v1905 = vmul.f32 %v1835, %v1899
          %v1906 = vmul.f32 %v1838, %v1899
          %v1907 = vmul.f32 %v1839, %v1899
          %v1908 = vmul.f32 %v1840, %v1899
          %v1909 = vmul.f32 %v1843, %v1899
          %v1910 = vmul.f32 %v1844, %v1899
          %v1911 = vmul.f32 %v1845, %v1899
          %v1924 = vrot.slane %v1900, 6
          %v1925 = vrot.slane %v1901, 6
          %v1926 = vsel %vm700, %v1924, %v1925
          %v1927 = vrot.slane %v1902, 6
          %v1928 = vsel %vm700, %v1925, %v1927
          %v1929 = vrot.slane %v1903, 6
          %v1930 = vrot.slane %v1904, 6
          %v1931 = vsel %vm700, %v1929, %v1930
          %v1932 = vrot.slane %v1905, 6
          %v1933 = vsel %vm700, %v1930, %v1932
          %v1934 = vrot.slane %v1906, 6
          %v1935 = vrot.slane %v1907, 6
          %v1936 = vsel %vm700, %v1934, %v1935
          %v1937 = vrot.slane %v1908, 6
          %v1938 = vsel %vm700, %v1935, %v1937
          %v1939 = vrot.slane %v1909, 6
          %v1940 = vrot.slane %v1910, 6
          %v1941 = vsel %vm700, %v1939, %v1940
          %v1942 = vrot.slane %v1911, 6
          %v1943 = vsel %vm700, %v1940, %v1942
          %v1952 = vadd.f32 %v1860, %v1926
          %v1953 = vadd.f32 %v1861, %v1928
          %v1954 = vadd.f32 %v1862, %v1931
          %v1955 = vadd.f32 %v1863, %v1933
          %v1956 = vadd.f32 %v1864, %v1936
          %v1957 = vadd.f32 %v1865, %v1938
          %v1958 = vadd.f32 %v1866, %v1941
          %v1959 = vadd.f32 %v1867, %v1943
          %v1960 = vlaneseq
          %v1961 = vshrl.u32 %v1960, 7
          %v1962 = vsub.s32 0, %v1961
          %v1963 = vrot.slane %v590, %v1962
          %v1964 = vmul.f32 %v1829, %v1963
          %v1965 = vmul.f32 %v1830, %v1963
          %v1966 = vmul.f32 %v1831, %v1963
          %v1967 = vmul.f32 %v1834, %v1963
          %v1968 = vmul.f32 %v1835, %v1963
          %v1969 = vmul.f32 %v1836, %v1963
          %v1970 = vmul.f32 %v1839, %v1963
          %v1971 = vmul.f32 %v1840, %v1963
          %v1972 = vmul.f32 %v1841, %v1963
          %v1973 = vmul.f32 %v1844, %v1963
          %v1974 = vmul.f32 %v1845, %v1963
          %v1975 = vmul.f32 %v1846, %v1963
          %v1988 = vrot.slane %v1964, 6
          %v1989 = vrot.slane %v1965, 6
          %v1990 = vsel %vm700, %v1988, %v1989
          %v1991 = vrot.slane %v1966, 6
          %v1992 = vsel %vm700, %v1989, %v1991
          %v1993 = vrot.slane %v1967, 6
          %v1994 = vrot.slane %v1968, 6
          %v1995 = vsel %vm700, %v1993, %v1994
          %v1996 = vrot.slane %v1969, 6
          %v1997 = vsel %vm700, %v1994, %v1996
          %v1998 = vrot.slane %v1970, 6
          %v1999 = vrot.slane %v1971, 6
          %v2000 = vsel %vm700, %v1998, %v1999
          %v2001 = vrot.slane %v1972, 6
          %v2002 = vsel %vm700, %v1999, %v2001
          %v2003 = vrot.slane %v1973, 6
          %v2004 = vrot.slane %v1974, 6
          %v2005 = vsel %vm700, %v2003, %v2004
          %v2006 = vrot.slane %v1975, 6
          %v2007 = vsel %vm700, %v2004, %v2006
          %v2020 = vadd.f32 %v1884, %v1988
          %v2021 = vadd.f32 %v1885, %v1990
          %v2022 = vadd.f32 %v1886, %v1992
          %v2023 = vadd.f32 %v1887, %v1993
          %v2024 = vadd.f32 %v1888, %v1995
          %v2025 = vadd.f32 %v1889, %v1997
          %v2026 = vadd.f32 %v1890, %v1998
          %v2027 = vadd.f32 %v1891, %v2000
          %v2028 = vadd.f32 %v1892, %v2002
          %v2029 = vadd.f32 %v1893, %v2003
          %v2030 = vadd.f32 %v1894, %v2005
          %v2031 = vadd.f32 %v1895, %v2007
          %v2032 = vlaneseq
          %v2033 = vshrl.u32 %v2032, 7
          %v2034 = vsub.s32 1, %v2033
          %v2035 = vrot.slane %v590, %v2034
          %v2036 = vmul.f32 %v1829, %v2035
          %v2037 = vmul.f32 %v1830, %v2035
          %v2038 = vmul.f32 %v1831, %v2035
          %v2039 = vmul.f32 %v1834, %v2035
          %v2040 = vmul.f32 %v1835, %v2035
          %v2041 = vmul.f32 %v1836, %v2035
          %v2042 = vmul.f32 %v1839, %v2035
          %v2043 = vmul.f32 %v1840, %v2035
          %v2044 = vmul.f32 %v1841, %v2035
          %v2045 = vmul.f32 %v1844, %v2035
          %v2046 = vmul.f32 %v1845, %v2035
          %v2047 = vmul.f32 %v1846, %v2035
          %v2060 = vrot.slane %v2036, 4
          %v2061 = vrot.slane %v2037, 4
          %v2062 = vsel %vm837, %v2060, %v2061
          %v2063 = vrot.slane %v2038, 4
          %v2064 = vsel %vm837, %v2061, %v2063
          %v2065 = vrot.slane %v2039, 4
          %v2066 = vrot.slane %v2040, 4
          %v2067 = vsel %vm837, %v2065, %v2066
          %v2068 = vrot.slane %v2041, 4
          %v2069 = vsel %vm837, %v2066, %v2068
          %v2070 = vrot.slane %v2042, 4
          %v2071 = vrot.slane %v2043, 4
          %v2072 = vsel %vm837, %v2070, %v2071
          %v2073 = vrot.slane %v2044, 4
          %v2074 = vsel %vm837, %v2071, %v2073
          %v2075 = vrot.slane %v2045, 4
          %v2076 = vrot.slane %v2046, 4
          %v2077 = vsel %vm837, %v2075, %v2076
          %v2078 = vrot.slane %v2047, 4
          %v2079 = vsel %vm837, %v2076, %v2078
          %v2088 = vadd.f32 %v1952, %v2062
          %v2089 = vadd.f32 %v1953, %v2064
          %v2090 = vadd.f32 %v1954, %v2067
          %v2091 = vadd.f32 %v1955, %v2069
          %v2092 = vadd.f32 %v1956, %v2072
          %v2093 = vadd.f32 %v1957, %v2074
          %v2094 = vadd.f32 %v1958, %v2077
          %v2095 = vadd.f32 %v1959, %v2079
          %v2096 = vlaneseq
          %v2097 = vshrl.u32 %v2096, 7
          %v2098 = vsub.s32 2, %v2097
          %v2099 = vrot.slane %v590, %v2098
          %v2100 = vmul.f32 %v1829, %v2099
          %v2101 = vmul.f32 %v1830, %v2099
          %v2102 = vmul.f32 %v1831, %v2099
          %v2103 = vmul.f32 %v1834, %v2099
          %v2104 = vmul.f32 %v1835, %v2099
          %v2105 = vmul.f32 %v1836, %v2099
          %v2106 = vmul.f32 %v1839, %v2099
          %v2107 = vmul.f32 %v1840, %v2099
          %v2108 = vmul.f32 %v1841, %v2099
          %v2109 = vmul.f32 %v1844, %v2099
          %v2110 = vmul.f32 %v1845, %v2099
          %v2111 = vmul.f32 %v1846, %v2099
          %v2124 = vrot.slane %v2100, 4
          %v2125 = vrot.slane %v2101, 4
          %v2126 = vsel %vm837, %v2124, %v2125
          %v2127 = vrot.slane %v2102, 4
          %v2128 = vsel %vm837, %v2125, %v2127
          %v2129 = vrot.slane %v2103, 4
          %v2130 = vrot.slane %v2104, 4
          %v2131 = vsel %vm837, %v2129, %v2130
          %v2132 = vrot.slane %v2105, 4
          %v2133 = vsel %vm837, %v2130, %v2132
          %v2134 = vrot.slane %v2106, 4
          %v2135 = vrot.slane %v2107, 4
          %v2136 = vsel %vm837, %v2134, %v2135
          %v2137 = vrot.slane %v2108, 4
          %v2138 = vsel %vm837, %v2135, %v2137
          %v2139 = vrot.slane %v2109, 4
          %v2140 = vrot.slane %v2110, 4
          %v2141 = vsel %vm837, %v2139, %v2140
          %v2142 = vrot.slane %v2111, 4
          %v2143 = vsel %vm837, %v2140, %v2142
          %v2156 = vadd.f32 %v2020, %v2126
          %v2157 = vadd.f32 %v2021, %v2128
          %v2158 = vadd.f32 %v2022, %v2127
          %v2159 = vadd.f32 %v2023, %v2131
          %v2160 = vadd.f32 %v2024, %v2133
          %v2161 = vadd.f32 %v2025, %v2132
          %v2162 = vadd.f32 %v2026, %v2136
          %v2163 = vadd.f32 %v2027, %v2138
          %v2164 = vadd.f32 %v2028, %v2137
          %v2165 = vadd.f32 %v2029, %v2141
          %v2166 = vadd.f32 %v2030, %v2143
          %v2167 = vadd.f32 %v2031, %v2142
          %v2168 = vlaneseq
          %v2169 = vshrl.u32 %v2168, 7
          %v2170 = vsub.s32 3, %v2169
          %v2171 = vrot.slane %v590, %v2170
          %v2172 = vmul.f32 %v1830, %v2171
          %v2173 = vmul.f32 %v1831, %v2171
          %v2174 = vmul.f32 %v1832, %v2171
          %v2175 = vmul.f32 %v1835, %v2171
          %v2176 = vmul.f32 %v1836, %v2171
          %v2177 = vmul.f32 %v1837, %v2171
          %v2178 = vmul.f32 %v1840, %v2171
          %v2179 = vmul.f32 %v1841, %v2171
          %v2180 = vmul.f32 %v1842, %v2171
          %v2181 = vmul.f32 %v1845, %v2171
          %v2182 = vmul.f32 %v1846, %v2171
          %v2183 = vmul.f32 %v1847, %v2171
          %v2196 = vrot.slane %v2172, 2
          %v2197 = vrot.slane %v2173, 2
          %v2198 = vsel %vm974, %v2196, %v2197
          %v2199 = vrot.slane %v2174, 2
          %v2200 = vsel %vm974, %v2197, %v2199
          %v2201 = vrot.slane %v2175, 2
          %v2202 = vrot.slane %v2176, 2
          %v2203 = vsel %vm974, %v2201, %v2202
          %v2204 = vrot.slane %v2177, 2
          %v2205 = vsel %vm974, %v2202, %v2204
          %v2206 = vrot.slane %v2178, 2
          %v2207 = vrot.slane %v2179, 2
          %v2208 = vsel %vm974, %v2206, %v2207
          %v2209 = vrot.slane %v2180, 2
          %v2210 = vsel %vm974, %v2207, %v2209
          %v2211 = vrot.slane %v2181, 2
          %v2212 = vrot.slane %v2182, 2
          %v2213 = vsel %vm974, %v2211, %v2212
          %v2214 = vrot.slane %v2183, 2
          %v2215 = vsel %vm974, %v2212, %v2214
          %v2224 = vadd.f32 %v2088, %v2198
          %v2225 = vadd.f32 %v2089, %v2200
          %v2226 = vadd.f32 %v2090, %v2203
          %v2227 = vadd.f32 %v2091, %v2205
          %v2228 = vadd.f32 %v2092, %v2208
          %v2229 = vadd.f32 %v2093, %v2210
          %v2230 = vadd.f32 %v2094, %v2213
          %v2231 = vadd.f32 %v2095, %v2215
          %s2232 = sadd.s32 %s601, 12
          %s2233 = smul.u32 %s2232, 48
          %s2234 = scalar_lea.vmem [#allocation2], %s2233
          %v2235 = vld [vmem:[%s2234 + $0x7] sm:$0xff]
          %v2236 = vld [vmem:[%s2234 + $0xf] sm:$0xff]
          %v2237 = vld [vmem:[%s2234 + $0x17] sm:$0xff]
          %v2238 = vld [vmem:[%s2234 + $0x1f] sm:$0xff]
          %v2239 = vld [vmem:[%s2234 + $0x27] sm:$0x3]
          %v2240 = vld [vmem:[%s2234 + $0x37] sm:$0xff]
          %v2241 = vld [vmem:[%s2234 + $0x3f] sm:$0xff]
          %v2242 = vld [vmem:[%s2234 + $0x47] sm:$0xff]
          %v2243 = vld [vmem:[%s2234 + $0x4f] sm:$0xff]
          %v2244 = vld [vmem:[%s2234 + $0x57] sm:$0x3]
          %v2245 = vld [vmem:[%s2234 + $0x67] sm:$0xff]
          %v2246 = vld [vmem:[%s2234 + $0x6f] sm:$0xff]
          %v2247 = vld [vmem:[%s2234 + $0x77] sm:$0xff]
          %v2248 = vld [vmem:[%s2234 + $0x7f] sm:$0xff]
          %v2249 = vld [vmem:[%s2234 + $0x87] sm:$0x3]
          %v2250 = vld [vmem:[%s2234 + $0x97] sm:$0xff]
          %v2251 = vld [vmem:[%s2234 + $0x9f] sm:$0xff]
          %v2252 = vld [vmem:[%s2234 + $0xa7] sm:$0xff]
          %v2253 = vld [vmem:[%s2234 + $0xaf] sm:$0xff]
          %v2254 = vld [vmem:[%s2234 + $0xb7] sm:$0x3]
          %v2255 = vlaneseq
          %v2256 = vshrl.u32 %v2255, 7
          %v2257 = vsub.s32 4, %v2256
          %v2258 = vrot.slane %v590, %v2257
          %v2259 = vmul.f32 %v2235, %v2258
          %v2260 = vmul.f32 %v2236, %v2258
          %v2261 = vmul.f32 %v2240, %v2258
          %v2262 = vmul.f32 %v2241, %v2258
          %v2263 = vmul.f32 %v2245, %v2258
          %v2264 = vmul.f32 %v2246, %v2258
          %v2265 = vmul.f32 %v2250, %v2258
          %v2266 = vmul.f32 %v2251, %v2258
          %v2267 = vadd.f32 %v2224, %v2259
          %v2268 = vadd.f32 %v2225, %v2260
          %v2269 = vadd.f32 %v2226, %v2261
          %v2270 = vadd.f32 %v2227, %v2262
          %v2271 = vadd.f32 %v2228, %v2263
          %v2272 = vadd.f32 %v2229, %v2264
          %v2273 = vadd.f32 %v2230, %v2265
          %v2274 = vadd.f32 %v2231, %v2266
          %v2275 = vlaneseq
          %v2276 = vshrl.u32 %v2275, 7
          %v2277 = vsub.s32 5, %v2276
          %v2278 = vrot.slane %v590, %v2277
          %v2279 = vmul.f32 %v2235, %v2278
          %v2280 = vmul.f32 %v2236, %v2278
          %v2281 = vmul.f32 %v2237, %v2278
          %v2282 = vmul.f32 %v2240, %v2278
          %v2283 = vmul.f32 %v2241, %v2278
          %v2284 = vmul.f32 %v2242, %v2278
          %v2285 = vmul.f32 %v2245, %v2278
          %v2286 = vmul.f32 %v2246, %v2278
          %v2287 = vmul.f32 %v2247, %v2278
          %v2288 = vmul.f32 %v2250, %v2278
          %v2289 = vmul.f32 %v2251, %v2278
          %v2290 = vmul.f32 %v2252, %v2278
          %v2291 = vadd.f32 %v2156, %v2279
          %v2292 = vadd.f32 %v2157, %v2280
          %v2293 = vadd.f32 %v2158, %v2281
          %v2294 = vadd.f32 %v2159, %v2282
          %v2295 = vadd.f32 %v2160, %v2283
          %v2296 = vadd.f32 %v2161, %v2284
          %v2297 = vadd.f32 %v2162, %v2285
          %v2298 = vadd.f32 %v2163, %v2286
          %v2299 = vadd.f32 %v2164, %v2287
          %v2300 = vadd.f32 %v2165, %v2288
          %v2301 = vadd.f32 %v2166, %v2289
          %v2302 = vadd.f32 %v2167, %v2290
          %v2303 = vlaneseq
          %v2304 = vshrl.u32 %v2303, 7
          %v2305 = vsub.s32 6, %v2304
          %v2306 = vrot.slane %v590, %v2305
          %v2307 = vmul.f32 %v2235, %v2306
          %v2308 = vmul.f32 %v2236, %v2306
          %v2309 = vmul.f32 %v2237, %v2306
          %v2310 = vmul.f32 %v2240, %v2306
          %v2311 = vmul.f32 %v2241, %v2306
          %v2312 = vmul.f32 %v2242, %v2306
          %v2313 = vmul.f32 %v2245, %v2306
          %v2314 = vmul.f32 %v2246, %v2306
          %v2315 = vmul.f32 %v2247, %v2306
          %v2316 = vmul.f32 %v2250, %v2306
          %v2317 = vmul.f32 %v2251, %v2306
          %v2318 = vmul.f32 %v2252, %v2306
          %v2331 = vrot.slane %v2307, 6
          %v2332 = vrot.slane %v2308, 6
          %v2333 = vsel %vm700, %v2331, %v2332
          %v2334 = vrot.slane %v2309, 6
          %v2335 = vsel %vm700, %v2332, %v2334
          %v2336 = vrot.slane %v2310, 6
          %v2337 = vrot.slane %v2311, 6
          %v2338 = vsel %vm700, %v2336, %v2337
          %v2339 = vrot.slane %v2312, 6
          %v2340 = vsel %vm700, %v2337, %v2339
          %v2341 = vrot.slane %v2313, 6
          %v2342 = vrot.slane %v2314, 6
          %v2343 = vsel %vm700, %v2341, %v2342
          %v2344 = vrot.slane %v2315, 6
          %v2345 = vsel %vm700, %v2342, %v2344
          %v2346 = vrot.slane %v2316, 6
          %v2347 = vrot.slane %v2317, 6
          %v2348 = vsel %vm700, %v2346, %v2347
          %v2349 = vrot.slane %v2318, 6
          %v2350 = vsel %vm700, %v2347, %v2349
          %v2359 = vadd.f32 %v2267, %v2333
          %v2360 = vadd.f32 %v2268, %v2335
          %v2361 = vadd.f32 %v2269, %v2338
          %v2362 = vadd.f32 %v2270, %v2340
          %v2363 = vadd.f32 %v2271, %v2343
          %v2364 = vadd.f32 %v2272, %v2345
          %v2365 = vadd.f32 %v2273, %v2348
          %v2366 = vadd.f32 %v2274, %v2350
          %v2367 = vlaneseq
          %v2368 = vshrl.u32 %v2367, 7
          %v2369 = vsub.s32 7, %v2368
          %v2370 = vrot.slane %v590, %v2369
          %v2371 = vmul.f32 %v2236, %v2370
          %v2372 = vmul.f32 %v2237, %v2370
          %v2373 = vmul.f32 %v2238, %v2370
          %v2374 = vmul.f32 %v2241, %v2370
          %v2375 = vmul.f32 %v2242, %v2370
          %v2376 = vmul.f32 %v2243, %v2370
          %v2377 = vmul.f32 %v2246, %v2370
          %v2378 = vmul.f32 %v2247, %v2370
          %v2379 = vmul.f32 %v2248, %v2370
          %v2380 = vmul.f32 %v2251, %v2370
          %v2381 = vmul.f32 %v2252, %v2370
          %v2382 = vmul.f32 %v2253, %v2370
          %v2395 = vrot.slane %v2371, 6
          %v2396 = vrot.slane %v2372, 6
          %v2397 = vsel %vm700, %v2395, %v2396
          %v2398 = vrot.slane %v2373, 6
          %v2399 = vsel %vm700, %v2396, %v2398
          %v2400 = vrot.slane %v2374, 6
          %v2401 = vrot.slane %v2375, 6
          %v2402 = vsel %vm700, %v2400, %v2401
          %v2403 = vrot.slane %v2376, 6
          %v2404 = vsel %vm700, %v2401, %v2403
          %v2405 = vrot.slane %v2377, 6
          %v2406 = vrot.slane %v2378, 6
          %v2407 = vsel %vm700, %v2405, %v2406
          %v2408 = vrot.slane %v2379, 6
          %v2409 = vsel %vm700, %v2406, %v2408
          %v2410 = vrot.slane %v2380, 6
          %v2411 = vrot.slane %v2381, 6
          %v2412 = vsel %vm700, %v2410, %v2411
          %v2413 = vrot.slane %v2382, 6
          %v2414 = vsel %vm700, %v2411, %v2413
          %v2427 = vadd.f32 %v2291, %v2395
          %v2428 = vadd.f32 %v2292, %v2397
          %v2429 = vadd.f32 %v2293, %v2399
          %v2430 = vadd.f32 %v2294, %v2400
          %v2431 = vadd.f32 %v2295, %v2402
          %v2432 = vadd.f32 %v2296, %v2404
          %v2433 = vadd.f32 %v2297, %v2405
          %v2434 = vadd.f32 %v2298, %v2407
          %v2435 = vadd.f32 %v2299, %v2409
          %v2436 = vadd.f32 %v2300, %v2410
          %v2437 = vadd.f32 %v2301, %v2412
          %v2438 = vadd.f32 %v2302, %v2414
          %v2439 = vlaneseq
          %v2440 = vshrl.u32 %v2439, 7
          %v2441 = vsub.s32 0, %v2440
          %v2442 = vrot.slane %v591, %v2441
          %v2443 = vmul.f32 %v2236, %v2442
          %v2444 = vmul.f32 %v2237, %v2442
          %v2445 = vmul.f32 %v2238, %v2442
          %v2446 = vmul.f32 %v2241, %v2442
          %v2447 = vmul.f32 %v2242, %v2442
          %v2448 = vmul.f32 %v2243, %v2442
          %v2449 = vmul.f32 %v2246, %v2442
          %v2450 = vmul.f32 %v2247, %v2442
          %v2451 = vmul.f32 %v2248, %v2442
          %v2452 = vmul.f32 %v2251, %v2442
          %v2453 = vmul.f32 %v2252, %v2442
          %v2454 = vmul.f32 %v2253, %v2442
          %v2467 = vrot.slane %v2443, 4
          %v2468 = vrot.slane %v2444, 4
          %v2469 = vsel %vm837, %v2467, %v2468
          %v2470 = vrot.slane %v2445, 4
          %v2471 = vsel %vm837, %v2468, %v2470
          %v2472 = vrot.slane %v2446, 4
          %v2473 = vrot.slane %v2447, 4
          %v2474 = vsel %vm837, %v2472, %v2473
          %v2475 = vrot.slane %v2448, 4
          %v2476 = vsel %vm837, %v2473, %v2475
          %v2477 = vrot.slane %v2449, 4
          %v2478 = vrot.slane %v2450, 4
          %v2479 = vsel %vm837, %v2477, %v2478
          %v2480 = vrot.slane %v2451, 4
          %v2481 = vsel %vm837, %v2478, %v2480
          %v2482 = vrot.slane %v2452, 4
          %v2483 = vrot.slane %v2453, 4
          %v2484 = vsel %vm837, %v2482, %v2483
          %v2485 = vrot.slane %v2454, 4
          %v2486 = vsel %vm837, %v2483, %v2485
          %v2495 = vadd.f32 %v2359, %v2469
          %v2496 = vadd.f32 %v2360, %v2471
          %v2497 = vadd.f32 %v2361, %v2474
          %v2498 = vadd.f32 %v2362, %v2476
          %v2499 = vadd.f32 %v2363, %v2479
          %v2500 = vadd.f32 %v2364, %v2481
          %v2501 = vadd.f32 %v2365, %v2484
          %v2502 = vadd.f32 %v2366, %v2486
          %v2503 = vlaneseq
          %v2504 = vshrl.u32 %v2503, 7
          %v2505 = vsub.s32 1, %v2504
          %v2506 = vrot.slane %v591, %v2505
          %v2507 = vmul.f32 %v2236, %v2506
          %v2508 = vmul.f32 %v2237, %v2506
          %v2509 = vmul.f32 %v2238, %v2506
          %v2510 = vmul.f32 %v2241, %v2506
          %v2511 = vmul.f32 %v2242, %v2506
          %v2512 = vmul.f32 %v2243, %v2506
          %v2513 = vmul.f32 %v2246, %v2506
          %v2514 = vmul.f32 %v2247, %v2506
          %v2515 = vmul.f32 %v2248, %v2506
          %v2516 = vmul.f32 %v2251, %v2506
          %v2517 = vmul.f32 %v2252, %v2506
          %v2518 = vmul.f32 %v2253, %v2506
          %v2531 = vrot.slane %v2507, 4
          %v2532 = vrot.slane %v2508, 4
          %v2533 = vsel %vm837, %v2531, %v2532
          %v2534 = vrot.slane %v2509, 4
          %v2535 = vsel %vm837, %v2532, %v2534
          %v2536 = vrot.slane %v2510, 4
          %v2537 = vrot.slane %v2511, 4
          %v2538 = vsel %vm837, %v2536, %v2537
          %v2539 = vrot.slane %v2512, 4
          %v2540 = vsel %vm837, %v2537, %v2539
          %v2541 = vrot.slane %v2513, 4
          %v2542 = vrot.slane %v2514, 4
          %v2543 = vsel %vm837, %v2541, %v2542
          %v2544 = vrot.slane %v2515, 4
          %v2545 = vsel %vm837, %v2542, %v2544
          %v2546 = vrot.slane %v2516, 4
          %v2547 = vrot.slane %v2517, 4
          %v2548 = vsel %vm837, %v2546, %v2547
          %v2549 = vrot.slane %v2518, 4
          %v2550 = vsel %vm837, %v2547, %v2549
          %v2563 = vadd.f32 %v2427, %v2533
          %v2564 = vadd.f32 %v2428, %v2535
          %v2565 = vadd.f32 %v2429, %v2534
          %v2566 = vadd.f32 %v2430, %v2538
          %v2567 = vadd.f32 %v2431, %v2540
          %v2568 = vadd.f32 %v2432, %v2539
          %v2569 = vadd.f32 %v2433, %v2543
          %v2570 = vadd.f32 %v2434, %v2545
          %v2571 = vadd.f32 %v2435, %v2544
          %v2572 = vadd.f32 %v2436, %v2548
          %v2573 = vadd.f32 %v2437, %v2550
          %v2574 = vadd.f32 %v2438, %v2549
          %v2575 = vlaneseq
          %v2576 = vshrl.u32 %v2575, 7
          %v2577 = vsub.s32 2, %v2576
          %v2578 = vrot.slane %v591, %v2577
          %v2579 = vmul.f32 %v2237, %v2578
          %v2580 = vmul.f32 %v2238, %v2578
          %v2581 = vmul.f32 %v2239, %v2578
          %v2582 = vmul.f32 %v2242, %v2578
          %v2583 = vmul.f32 %v2243, %v2578
          %v2584 = vmul.f32 %v2244, %v2578
          %v2585 = vmul.f32 %v2247, %v2578
          %v2586 = vmul.f32 %v2248, %v2578
          %v2587 = vmul.f32 %v2249, %v2578
          %v2588 = vmul.f32 %v2252, %v2578
          %v2589 = vmul.f32 %v2253, %v2578
          %v2590 = vmul.f32 %v2254, %v2578
          %v2603 = vrot.slane %v2579, 2
          %v2604 = vrot.slane %v2580, 2
          %v2605 = vsel %vm974, %v2603, %v2604
          %v2606 = vrot.slane %v2581, 2
          %v2607 = vsel %vm974, %v2604, %v2606
          %v2608 = vrot.slane %v2582, 2
          %v2609 = vrot.slane %v2583, 2
          %v2610 = vsel %vm974, %v2608, %v2609
          %v2611 = vrot.slane %v2584, 2
          %v2612 = vsel %vm974, %v2609, %v2611
          %v2613 = vrot.slane %v2585, 2
          %v2614 = vrot.slane %v2586, 2
          %v2615 = vsel %vm974, %v2613, %v2614
          %v2616 = vrot.slane %v2587, 2
          %v2617 = vsel %vm974, %v2614, %v2616
          %v2618 = vrot.slane %v2588, 2
          %v2619 = vrot.slane %v2589, 2
          %v2620 = vsel %vm974, %v2618, %v2619
          %v2621 = vrot.slane %v2590, 2
          %v2622 = vsel %vm974, %v2619, %v2621
          %v2631 = vadd.f32 %v2495, %v2605
          %v2632 = vadd.f32 %v2496, %v2607
          %v2633 = vadd.f32 %v2497, %v2610
          %v2634 = vadd.f32 %v2498, %v2612
          %v2635 = vadd.f32 %v2499, %v2615
          %v2636 = vadd.f32 %v2500, %v2617
          %v2637 = vadd.f32 %v2501, %v2620
          %v2638 = vadd.f32 %v2502, %v2622
          %s2639 = sadd.s32 %s601, 15
          %s2640 = smul.u32 %s2639, 48
          %s2641 = scalar_lea.vmem [#allocation2], %s2640
          %v2642 = vld [vmem:[%s2641 + $0x7] sm:$0xff]
          %v2643 = vld [vmem:[%s2641 + $0xf] sm:$0xff]
          %v2644 = vld [vmem:[%s2641 + $0x17] sm:$0xff]
          %v2645 = vld [vmem:[%s2641 + $0x1f] sm:$0xff]
          %v2646 = vld [vmem:[%s2641 + $0x27] sm:$0x3]
          %v2647 = vld [vmem:[%s2641 + $0x37] sm:$0xff]
          %v2648 = vld [vmem:[%s2641 + $0x3f] sm:$0xff]
          %v2649 = vld [vmem:[%s2641 + $0x47] sm:$0xff]
          %v2650 = vld [vmem:[%s2641 + $0x4f] sm:$0xff]
          %v2651 = vld [vmem:[%s2641 + $0x57] sm:$0x3]
          %v2652 = vld [vmem:[%s2641 + $0x67] sm:$0xff]
          %v2653 = vld [vmem:[%s2641 + $0x6f] sm:$0xff]
          %v2654 = vld [vmem:[%s2641 + $0x77] sm:$0xff]
          %v2655 = vld [vmem:[%s2641 + $0x7f] sm:$0xff]
          %v2656 = vld [vmem:[%s2641 + $0x87] sm:$0x3]
          %v2657 = vld [vmem:[%s2641 + $0x97] sm:$0xff]
          %v2658 = vld [vmem:[%s2641 + $0x9f] sm:$0xff]
          %v2659 = vld [vmem:[%s2641 + $0xa7] sm:$0xff]
          %v2660 = vld [vmem:[%s2641 + $0xaf] sm:$0xff]
          %v2661 = vld [vmem:[%s2641 + $0xb7] sm:$0x3]
          %v2662 = vlaneseq
          %v2663 = vshrl.u32 %v2662, 7
          %v2664 = vsub.s32 3, %v2663
          %v2665 = vrot.slane %v591, %v2664
          %v2666 = vmul.f32 %v2642, %v2665
          %v2667 = vmul.f32 %v2643, %v2665
          %v2668 = vmul.f32 %v2647, %v2665
          %v2669 = vmul.f32 %v2648, %v2665
          %v2670 = vmul.f32 %v2652, %v2665
          %v2671 = vmul.f32 %v2653, %v2665
          %v2672 = vmul.f32 %v2657, %v2665
          %v2673 = vmul.f32 %v2658, %v2665
          %v2674 = vadd.f32 %v2631, %v2666
          %v2675 = vadd.f32 %v2632, %v2667
          %v2676 = vadd.f32 %v2633, %v2668
          %v2677 = vadd.f32 %v2634, %v2669
          %v2678 = vadd.f32 %v2635, %v2670
          %v2679 = vadd.f32 %v2636, %v2671
          %v2680 = vadd.f32 %v2637, %v2672
          %v2681 = vadd.f32 %v2638, %v2673
          %v2682 = vlaneseq
          %v2683 = vshrl.u32 %v2682, 7
          %v2684 = vsub.s32 4, %v2683
          %v2685 = vrot.slane %v591, %v2684
          %v2686 = vmul.f32 %v2642, %v2685
          %v2687 = vmul.f32 %v2643, %v2685
          %v2688 = vmul.f32 %v2644, %v2685
          %v2689 = vmul.f32 %v2647, %v2685
          %v2690 = vmul.f32 %v2648, %v2685
          %v2691 = vmul.f32 %v2649, %v2685
          %v2692 = vmul.f32 %v2652, %v2685
          %v2693 = vmul.f32 %v2653, %v2685
          %v2694 = vmul.f32 %v2654, %v2685
          %v2695 = vmul.f32 %v2657, %v2685
          %v2696 = vmul.f32 %v2658, %v2685
          %v2697 = vmul.f32 %v2659, %v2685
          %v2698 = vadd.f32 %v2563, %v2686
          %v2699 = vadd.f32 %v2564, %v2687
          %v2700 = vadd.f32 %v2565, %v2688
          %v2701 = vadd.f32 %v2566, %v2689
          %v2702 = vadd.f32 %v2567, %v2690
          %v2703 = vadd.f32 %v2568, %v2691
          %v2704 = vadd.f32 %v2569, %v2692
          %v2705 = vadd.f32 %v2570, %v2693
          %v2706 = vadd.f32 %v2571, %v2694
          %v2707 = vadd.f32 %v2572, %v2695
          %v2708 = vadd.f32 %v2573, %v2696
          %v2709 = vadd.f32 %v2574, %v2697
          %v2710 = vlaneseq
          %v2711 = vshrl.u32 %v2710, 7
          %v2712 = vsub.s32 5, %v2711
          %v2713 = vrot.slane %v591, %v2712
          %v2714 = vmul.f32 %v2642, %v2713
          %v2715 = vmul.f32 %v2643, %v2713
          %v2716 = vmul.f32 %v2644, %v2713
          %v2717 = vmul.f32 %v2647, %v2713
          %v2718 = vmul.f32 %v2648, %v2713
          %v2719 = vmul.f32 %v2649, %v2713
          %v2720 = vmul.f32 %v2652, %v2713
          %v2721 = vmul.f32 %v2653, %v2713
          %v2722 = vmul.f32 %v2654, %v2713
          %v2723 = vmul.f32 %v2657, %v2713
          %v2724 = vmul.f32 %v2658, %v2713
          %v2725 = vmul.f32 %v2659, %v2713
          %v2738 = vrot.slane %v2714, 6
          %v2739 = vrot.slane %v2715, 6
          %v2740 = vsel %vm700, %v2738, %v2739
          %v2741 = vrot.slane %v2716, 6
          %v2742 = vsel %vm700, %v2739, %v2741
          %v2743 = vrot.slane %v2717, 6
          %v2744 = vrot.slane %v2718, 6
          %v2745 = vsel %vm700, %v2743, %v2744
          %v2746 = vrot.slane %v2719, 6
          %v2747 = vsel %vm700, %v2744, %v2746
          %v2748 = vrot.slane %v2720, 6
          %v2749 = vrot.slane %v2721, 6
          %v2750 = vsel %vm700, %v2748, %v2749
          %v2751 = vrot.slane %v2722, 6
          %v2752 = vsel %vm700, %v2749, %v2751
          %v2753 = vrot.slane %v2723, 6
          %v2754 = vrot.slane %v2724, 6
          %v2755 = vsel %vm700, %v2753, %v2754
          %v2756 = vrot.slane %v2725, 6
          %v2757 = vsel %vm700, %v2754, %v2756
          %v2766 = vadd.f32 %v2674, %v2740
          %v2767 = vadd.f32 %v2675, %v2742
          %v2768 = vadd.f32 %v2676, %v2745
          %v2769 = vadd.f32 %v2677, %v2747
          %v2770 = vadd.f32 %v2678, %v2750
          %v2771 = vadd.f32 %v2679, %v2752
          %v2772 = vadd.f32 %v2680, %v2755
          %v2773 = vadd.f32 %v2681, %v2757
          %v2774 = vlaneseq
          %v2775 = vshrl.u32 %v2774, 7
          %v2776 = vsub.s32 6, %v2775
          %v2777 = vrot.slane %v591, %v2776
          %v2778 = vmul.f32 %v2643, %v2777
          %v2779 = vmul.f32 %v2644, %v2777
          %v2780 = vmul.f32 %v2645, %v2777
          %v2781 = vmul.f32 %v2648, %v2777
          %v2782 = vmul.f32 %v2649, %v2777
          %v2783 = vmul.f32 %v2650, %v2777
          %v2784 = vmul.f32 %v2653, %v2777
          %v2785 = vmul.f32 %v2654, %v2777
          %v2786 = vmul.f32 %v2655, %v2777
          %v2787 = vmul.f32 %v2658, %v2777
          %v2788 = vmul.f32 %v2659, %v2777
          %v2789 = vmul.f32 %v2660, %v2777
          %v2802 = vrot.slane %v2778, 6
          %v2803 = vrot.slane %v2779, 6
          %v2804 = vsel %vm700, %v2802, %v2803
          %v2805 = vrot.slane %v2780, 6
          %v2806 = vsel %vm700, %v2803, %v2805
          %v2807 = vrot.slane %v2781, 6
          %v2808 = vrot.slane %v2782, 6
          %v2809 = vsel %vm700, %v2807, %v2808
          %v2810 = vrot.slane %v2783, 6
          %v2811 = vsel %vm700, %v2808, %v2810
          %v2812 = vrot.slane %v2784, 6
          %v2813 = vrot.slane %v2785, 6
          %v2814 = vsel %vm700, %v2812, %v2813
          %v2815 = vrot.slane %v2786, 6
          %v2816 = vsel %vm700, %v2813, %v2815
          %v2817 = vrot.slane %v2787, 6
          %v2818 = vrot.slane %v2788, 6
          %v2819 = vsel %vm700, %v2817, %v2818
          %v2820 = vrot.slane %v2789, 6
          %v2821 = vsel %vm700, %v2818, %v2820
          %v2834 = vadd.f32 %v2698, %v2802
          %v2835 = vadd.f32 %v2699, %v2804
          %v2836 = vadd.f32 %v2700, %v2806
          %v2837 = vadd.f32 %v2701, %v2807
          %v2838 = vadd.f32 %v2702, %v2809
          %v2839 = vadd.f32 %v2703, %v2811
          %v2840 = vadd.f32 %v2704, %v2812
          %v2841 = vadd.f32 %v2705, %v2814
          %v2842 = vadd.f32 %v2706, %v2816
          %v2843 = vadd.f32 %v2707, %v2817
          %v2844 = vadd.f32 %v2708, %v2819
          %v2845 = vadd.f32 %v2709, %v2821
          %v2846 = vlaneseq
          %v2847 = vshrl.u32 %v2846, 7
          %v2848 = vsub.s32 7, %v2847
          %v2849 = vrot.slane %v591, %v2848
          %v2850 = vmul.f32 %v2643, %v2849
          %v2851 = vmul.f32 %v2644, %v2849
          %v2852 = vmul.f32 %v2645, %v2849
          %v2853 = vmul.f32 %v2648, %v2849
          %v2854 = vmul.f32 %v2649, %v2849
          %v2855 = vmul.f32 %v2650, %v2849
          %v2856 = vmul.f32 %v2653, %v2849
          %v2857 = vmul.f32 %v2654, %v2849
          %v2858 = vmul.f32 %v2655, %v2849
          %v2859 = vmul.f32 %v2658, %v2849
          %v2860 = vmul.f32 %v2659, %v2849
          %v2861 = vmul.f32 %v2660, %v2849
          %v2874 = vrot.slane %v2850, 4
          %v2875 = vrot.slane %v2851, 4
          %v2876 = vsel %vm837, %v2874, %v2875
          %v2877 = vrot.slane %v2852, 4
          %v2878 = vsel %vm837, %v2875, %v2877
          %v2879 = vrot.slane %v2853, 4
          %v2880 = vrot.slane %v2854, 4
          %v2881 = vsel %vm837, %v2879, %v2880
          %v2882 = vrot.slane %v2855, 4
          %v2883 = vsel %vm837, %v2880, %v2882
          %v2884 = vrot.slane %v2856, 4
          %v2885 = vrot.slane %v2857, 4
          %v2886 = vsel %vm837, %v2884, %v2885
          %v2887 = vrot.slane %v2858, 4
          %v2888 = vsel %vm837, %v2885, %v2887
          %v2889 = vrot.slane %v2859, 4
          %v2890 = vrot.slane %v2860, 4
          %v2891 = vsel %vm837, %v2889, %v2890
          %v2892 = vrot.slane %v2861, 4
          %v2893 = vsel %vm837, %v2890, %v2892
          %v2902 = vadd.f32 %v2766, %v2876
          %v2903 = vadd.f32 %v2767, %v2878
          %v2904 = vadd.f32 %v2768, %v2881
          %v2905 = vadd.f32 %v2769, %v2883
          %v2906 = vadd.f32 %v2770, %v2886
          %v2907 = vadd.f32 %v2771, %v2888
          %v2908 = vadd.f32 %v2772, %v2891
          %v2909 = vadd.f32 %v2773, %v2893
          %v2910 = vlaneseq
          %v2911 = vshrl.u32 %v2910, 7
          %v2912 = vsub.s32 0, %v2911
          %v2913 = vrot.slane %v592, %v2912
          %v2914 = vmul.f32 %v2643, %v2913
          %v2915 = vmul.f32 %v2644, %v2913
          %v2916 = vmul.f32 %v2645, %v2913
          %v2917 = vmul.f32 %v2648, %v2913
          %v2918 = vmul.f32 %v2649, %v2913
          %v2919 = vmul.f32 %v2650, %v2913
          %v2920 = vmul.f32 %v2653, %v2913
          %v2921 = vmul.f32 %v2654, %v2913
          %v2922 = vmul.f32 %v2655, %v2913
          %v2923 = vmul.f32 %v2658, %v2913
          %v2924 = vmul.f32 %v2659, %v2913
          %v2925 = vmul.f32 %v2660, %v2913
          %v2938 = vrot.slane %v2914, 4
          %v2939 = vrot.slane %v2915, 4
          %v2940 = vsel %vm837, %v2938, %v2939
          %v2941 = vrot.slane %v2916, 4
          %v2942 = vsel %vm837, %v2939, %v2941
          %v2943 = vrot.slane %v2917, 4
          %v2944 = vrot.slane %v2918, 4
          %v2945 = vsel %vm837, %v2943, %v2944
          %v2946 = vrot.slane %v2919, 4
          %v2947 = vsel %vm837, %v2944, %v2946
          %v2948 = vrot.slane %v2920, 4
          %v2949 = vrot.slane %v2921, 4
          %v2950 = vsel %vm837, %v2948, %v2949
          %v2951 = vrot.slane %v2922, 4
          %v2952 = vsel %vm837, %v2949, %v2951
          %v2953 = vrot.slane %v2923, 4
          %v2954 = vrot.slane %v2924, 4
          %v2955 = vsel %vm837, %v2953, %v2954
          %v2956 = vrot.slane %v2925, 4
          %v2957 = vsel %vm837, %v2954, %v2956
          %v2970 = vadd.f32 %v2834, %v2940
          %v2971 = vadd.f32 %v2835, %v2942
          %v2972 = vadd.f32 %v2836, %v2941
          %v2973 = vadd.f32 %v2837, %v2945
          %v2974 = vadd.f32 %v2838, %v2947
          %v2975 = vadd.f32 %v2839, %v2946
          %v2976 = vadd.f32 %v2840, %v2950
          %v2977 = vadd.f32 %v2841, %v2952
          %v2978 = vadd.f32 %v2842, %v2951
          %v2979 = vadd.f32 %v2843, %v2955
          %v2980 = vadd.f32 %v2844, %v2957
          %v2981 = vadd.f32 %v2845, %v2956
          %v2982 = vlaneseq
          %v2983 = vshrl.u32 %v2982, 7
          %v2984 = vsub.s32 1, %v2983
          %v2985 = vrot.slane %v592, %v2984
          %v2986 = vmul.f32 %v2644, %v2985
          %v2987 = vmul.f32 %v2645, %v2985
          %v2988 = vmul.f32 %v2646, %v2985
          %v2989 = vmul.f32 %v2649, %v2985
          %v2990 = vmul.f32 %v2650, %v2985
          %v2991 = vmul.f32 %v2651, %v2985
          %v2992 = vmul.f32 %v2654, %v2985
          %v2993 = vmul.f32 %v2655, %v2985
          %v2994 = vmul.f32 %v2656, %v2985
          %v2995 = vmul.f32 %v2659, %v2985
          %v2996 = vmul.f32 %v2660, %v2985
          %v2997 = vmul.f32 %v2661, %v2985
          %v3010 = vrot.slane %v2986, 2
          %v3011 = vrot.slane %v2987, 2
          %v3012 = vsel %vm974, %v3010, %v3011
          %v3013 = vrot.slane %v2988, 2
          %v3014 = vsel %vm974, %v3011, %v3013
          %v3015 = vrot.slane %v2989, 2
          %v3016 = vrot.slane %v2990, 2
          %v3017 = vsel %vm974, %v3015, %v3016
          %v3018 = vrot.slane %v2991, 2
          %v3019 = vsel %vm974, %v3016, %v3018
          %v3020 = vrot.slane %v2992, 2
          %v3021 = vrot.slane %v2993, 2
          %v3022 = vsel %vm974, %v3020, %v3021
          %v3023 = vrot.slane %v2994, 2
          %v3024 = vsel %vm974, %v3021, %v3023
          %v3025 = vrot.slane %v2995, 2
          %v3026 = vrot.slane %v2996, 2
          %v3027 = vsel %vm974, %v3025, %v3026
          %v3028 = vrot.slane %v2997, 2
          %v3029 = vsel %vm974, %v3026, %v3028
          %v3038 = vadd.f32 %v2902, %v3012
          %v3039 = vadd.f32 %v2903, %v3014
          %v3040 = vadd.f32 %v2904, %v3017
          %v3041 = vadd.f32 %v2905, %v3019
          %v3042 = vadd.f32 %v2906, %v3022
          %v3043 = vadd.f32 %v2907, %v3024
          %v3044 = vadd.f32 %v2908, %v3027
          %v3045 = vadd.f32 %v2909, %v3029
          %s3046 = sadd.s32 %s601, 18
          %s3047 = smul.u32 %s3046, 48
          %s3048 = scalar_lea.vmem [#allocation2], %s3047
          %v3049 = vld [vmem:[%s3048 + $0x7] sm:$0xff]
          %v3050 = vld [vmem:[%s3048 + $0xf] sm:$0xff]
          %v3051 = vld [vmem:[%s3048 + $0x17] sm:$0xff]
          %v3052 = vld [vmem:[%s3048 + $0x1f] sm:$0xff]
          %v3053 = vld [vmem:[%s3048 + $0x27] sm:$0x3]
          %v3054 = vld [vmem:[%s3048 + $0x37] sm:$0xff]
          %v3055 = vld [vmem:[%s3048 + $0x3f] sm:$0xff]
          %v3056 = vld [vmem:[%s3048 + $0x47] sm:$0xff]
          %v3057 = vld [vmem:[%s3048 + $0x4f] sm:$0xff]
          %v3058 = vld [vmem:[%s3048 + $0x57] sm:$0x3]
          %v3059 = vld [vmem:[%s3048 + $0x67] sm:$0xff]
          %v3060 = vld [vmem:[%s3048 + $0x6f] sm:$0xff]
          %v3061 = vld [vmem:[%s3048 + $0x77] sm:$0xff]
          %v3062 = vld [vmem:[%s3048 + $0x7f] sm:$0xff]
          %v3063 = vld [vmem:[%s3048 + $0x87] sm:$0x3]
          %v3064 = vld [vmem:[%s3048 + $0x97] sm:$0xff]
          %v3065 = vld [vmem:[%s3048 + $0x9f] sm:$0xff]
          %v3066 = vld [vmem:[%s3048 + $0xa7] sm:$0xff]
          %v3067 = vld [vmem:[%s3048 + $0xaf] sm:$0xff]
          %v3068 = vld [vmem:[%s3048 + $0xb7] sm:$0x3]
          %v3069 = vlaneseq
          %v3070 = vshrl.u32 %v3069, 7
          %v3071 = vsub.s32 2, %v3070
          %v3072 = vrot.slane %v592, %v3071
          %v3073 = vmul.f32 %v3049, %v3072
          %v3074 = vmul.f32 %v3050, %v3072
          %v3075 = vmul.f32 %v3054, %v3072
          %v3076 = vmul.f32 %v3055, %v3072
          %v3077 = vmul.f32 %v3059, %v3072
          %v3078 = vmul.f32 %v3060, %v3072
          %v3079 = vmul.f32 %v3064, %v3072
          %v3080 = vmul.f32 %v3065, %v3072
          %v3081 = vadd.f32 %v3038, %v3073
          %v3082 = vadd.f32 %v3039, %v3074
          %v3083 = vadd.f32 %v3040, %v3075
          %v3084 = vadd.f32 %v3041, %v3076
          %v3085 = vadd.f32 %v3042, %v3077
          %v3086 = vadd.f32 %v3043, %v3078
          %v3087 = vadd.f32 %v3044, %v3079
          %v3088 = vadd.f32 %v3045, %v3080
          %v3089 = vlaneseq
          %v3090 = vshrl.u32 %v3089, 7
          %v3091 = vsub.s32 3, %v3090
          %v3092 = vrot.slane %v592, %v3091
          %v3093 = vmul.f32 %v3049, %v3092
          %v3094 = vmul.f32 %v3050, %v3092
          %v3095 = vmul.f32 %v3051, %v3092
          %v3096 = vmul.f32 %v3054, %v3092
          %v3097 = vmul.f32 %v3055, %v3092
          %v3098 = vmul.f32 %v3056, %v3092
          %v3099 = vmul.f32 %v3059, %v3092
          %v3100 = vmul.f32 %v3060, %v3092
          %v3101 = vmul.f32 %v3061, %v3092
          %v3102 = vmul.f32 %v3064, %v3092
          %v3103 = vmul.f32 %v3065, %v3092
          %v3104 = vmul.f32 %v3066, %v3092
          %v3105 = vadd.f32 %v2970, %v3093
          %v3106 = vadd.f32 %v2971, %v3094
          %v3107 = vadd.f32 %v2972, %v3095
          %v3108 = vadd.f32 %v2973, %v3096
          %v3109 = vadd.f32 %v2974, %v3097
          %v3110 = vadd.f32 %v2975, %v3098
          %v3111 = vadd.f32 %v2976, %v3099
          %v3112 = vadd.f32 %v2977, %v3100
          %v3113 = vadd.f32 %v2978, %v3101
          %v3114 = vadd.f32 %v2979, %v3102
          %v3115 = vadd.f32 %v2980, %v3103
          %v3116 = vadd.f32 %v2981, %v3104
          %v3117 = vlaneseq
          %v3118 = vshrl.u32 %v3117, 7
          %v3119 = vsub.s32 4, %v3118
          %v3120 = vrot.slane %v592, %v3119
          %v3121 = vmul.f32 %v3049, %v3120
          %v3122 = vmul.f32 %v3050, %v3120
          %v3123 = vmul.f32 %v3051, %v3120
          %v3124 = vmul.f32 %v3054, %v3120
          %v3125 = vmul.f32 %v3055, %v3120
          %v3126 = vmul.f32 %v3056, %v3120
          %v3127 = vmul.f32 %v3059, %v3120
          %v3128 = vmul.f32 %v3060, %v3120
          %v3129 = vmul.f32 %v3061, %v3120
          %v3130 = vmul.f32 %v3064, %v3120
          %v3131 = vmul.f32 %v3065, %v3120
          %v3132 = vmul.f32 %v3066, %v3120
          %v3145 = vrot.slane %v3121, 6
          %v3146 = vrot.slane %v3122, 6
          %v3147 = vsel %vm700, %v3145, %v3146
          %v3148 = vrot.slane %v3123, 6
          %v3149 = vsel %vm700, %v3146, %v3148
          %v3150 = vrot.slane %v3124, 6
          %v3151 = vrot.slane %v3125, 6
          %v3152 = vsel %vm700, %v3150, %v3151
          %v3153 = vrot.slane %v3126, 6
          %v3154 = vsel %vm700, %v3151, %v3153
          %v3155 = vrot.slane %v3127, 6
          %v3156 = vrot.slane %v3128, 6
          %v3157 = vsel %vm700, %v3155, %v3156
          %v3158 = vrot.slane %v3129, 6
          %v3159 = vsel %vm700, %v3156, %v3158
          %v3160 = vrot.slane %v3130, 6
          %v3161 = vrot.slane %v3131, 6
          %v3162 = vsel %vm700, %v3160, %v3161
          %v3163 = vrot.slane %v3132, 6
          %v3164 = vsel %vm700, %v3161, %v3163
          %v3173 = vadd.f32 %v3081, %v3147
          %v3174 = vadd.f32 %v3082, %v3149
          %v3175 = vadd.f32 %v3083, %v3152
          %v3176 = vadd.f32 %v3084, %v3154
          %v3177 = vadd.f32 %v3085, %v3157
          %v3178 = vadd.f32 %v3086, %v3159
          %v3179 = vadd.f32 %v3087, %v3162
          %v3180 = vadd.f32 %v3088, %v3164
          %v3181 = vlaneseq
          %v3182 = vshrl.u32 %v3181, 7
          %v3183 = vsub.s32 5, %v3182
          %v3184 = vrot.slane %v592, %v3183
          %v3185 = vmul.f32 %v3050, %v3184
          %v3186 = vmul.f32 %v3051, %v3184
          %v3187 = vmul.f32 %v3052, %v3184
          %v3188 = vmul.f32 %v3055, %v3184
          %v3189 = vmul.f32 %v3056, %v3184
          %v3190 = vmul.f32 %v3057, %v3184
          %v3191 = vmul.f32 %v3060, %v3184
          %v3192 = vmul.f32 %v3061, %v3184
          %v3193 = vmul.f32 %v3062, %v3184
          %v3194 = vmul.f32 %v3065, %v3184
          %v3195 = vmul.f32 %v3066, %v3184
          %v3196 = vmul.f32 %v3067, %v3184
          %v3209 = vrot.slane %v3185, 6
          %v3210 = vrot.slane %v3186, 6
          %v3211 = vsel %vm700, %v3209, %v3210
          %v3212 = vrot.slane %v3187, 6
          %v3213 = vsel %vm700, %v3210, %v3212
          %v3214 = vrot.slane %v3188, 6
          %v3215 = vrot.slane %v3189, 6
          %v3216 = vsel %vm700, %v3214, %v3215
          %v3217 = vrot.slane %v3190, 6
          %v3218 = vsel %vm700, %v3215, %v3217
          %v3219 = vrot.slane %v3191, 6
          %v3220 = vrot.slane %v3192, 6
          %v3221 = vsel %vm700, %v3219, %v3220
          %v3222 = vrot.slane %v3193, 6
          %v3223 = vsel %vm700, %v3220, %v3222
          %v3224 = vrot.slane %v3194, 6
          %v3225 = vrot.slane %v3195, 6
          %v3226 = vsel %vm700, %v3224, %v3225
          %v3227 = vrot.slane %v3196, 6
          %v3228 = vsel %vm700, %v3225, %v3227
          %v3241 = vadd.f32 %v3105, %v3209
          %v3242 = vadd.f32 %v3106, %v3211
          %v3243 = vadd.f32 %v3107, %v3213
          %v3244 = vadd.f32 %v3108, %v3214
          %v3245 = vadd.f32 %v3109, %v3216
          %v3246 = vadd.f32 %v3110, %v3218
          %v3247 = vadd.f32 %v3111, %v3219
          %v3248 = vadd.f32 %v3112, %v3221
          %v3249 = vadd.f32 %v3113, %v3223
          %v3250 = vadd.f32 %v3114, %v3224
          %v3251 = vadd.f32 %v3115, %v3226
          %v3252 = vadd.f32 %v3116, %v3228
          %v3253 = vlaneseq
          %v3254 = vshrl.u32 %v3253, 7
          %v3255 = vsub.s32 6, %v3254
          %v3256 = vrot.slane %v592, %v3255
          %v3257 = vmul.f32 %v3050, %v3256
          %v3258 = vmul.f32 %v3051, %v3256
          %v3259 = vmul.f32 %v3052, %v3256
          %v3260 = vmul.f32 %v3055, %v3256
          %v3261 = vmul.f32 %v3056, %v3256
          %v3262 = vmul.f32 %v3057, %v3256
          %v3263 = vmul.f32 %v3060, %v3256
          %v3264 = vmul.f32 %v3061, %v3256
          %v3265 = vmul.f32 %v3062, %v3256
          %v3266 = vmul.f32 %v3065, %v3256
          %v3267 = vmul.f32 %v3066, %v3256
          %v3268 = vmul.f32 %v3067, %v3256
          %v3281 = vrot.slane %v3257, 4
          %v3282 = vrot.slane %v3258, 4
          %v3283 = vsel %vm837, %v3281, %v3282
          %v3284 = vrot.slane %v3259, 4
          %v3285 = vsel %vm837, %v3282, %v3284
          %v3286 = vrot.slane %v3260, 4
          %v3287 = vrot.slane %v3261, 4
          %v3288 = vsel %vm837, %v3286, %v3287
          %v3289 = vrot.slane %v3262, 4
          %v3290 = vsel %vm837, %v3287, %v3289
          %v3291 = vrot.slane %v3263, 4
          %v3292 = vrot.slane %v3264, 4
          %v3293 = vsel %vm837, %v3291, %v3292
          %v3294 = vrot.slane %v3265, 4
          %v3295 = vsel %vm837, %v3292, %v3294
          %v3296 = vrot.slane %v3266, 4
          %v3297 = vrot.slane %v3267, 4
          %v3298 = vsel %vm837, %v3296, %v3297
          %v3299 = vrot.slane %v3268, 4
          %v3300 = vsel %vm837, %v3297, %v3299
          %v3309 = vadd.f32 %v3173, %v3283
          %v3310 = vadd.f32 %v3174, %v3285
          %v3311 = vadd.f32 %v3175, %v3288
          %v3312 = vadd.f32 %v3176, %v3290
          %v3313 = vadd.f32 %v3177, %v3293
          %v3314 = vadd.f32 %v3178, %v3295
          %v3315 = vadd.f32 %v3179, %v3298
          %v3316 = vadd.f32 %v3180, %v3300
          %v3317 = vlaneseq
          %v3318 = vshrl.u32 %v3317, 7
          %v3319 = vsub.s32 7, %v3318
          %v3320 = vrot.slane %v592, %v3319
          %v3321 = vmul.f32 %v3050, %v3320
          %v3322 = vmul.f32 %v3051, %v3320
          %v3323 = vmul.f32 %v3052, %v3320
          %v3324 = vmul.f32 %v3055, %v3320
          %v3325 = vmul.f32 %v3056, %v3320
          %v3326 = vmul.f32 %v3057, %v3320
          %v3327 = vmul.f32 %v3060, %v3320
          %v3328 = vmul.f32 %v3061, %v3320
          %v3329 = vmul.f32 %v3062, %v3320
          %v3330 = vmul.f32 %v3065, %v3320
          %v3331 = vmul.f32 %v3066, %v3320
          %v3332 = vmul.f32 %v3067, %v3320
          %v3345 = vrot.slane %v3321, 4
          %v3346 = vrot.slane %v3322, 4
          %v3347 = vsel %vm837, %v3345, %v3346
          %v3348 = vrot.slane %v3323, 4
          %v3349 = vsel %vm837, %v3346, %v3348
          %v3350 = vrot.slane %v3324, 4
          %v3351 = vrot.slane %v3325, 4
          %v3352 = vsel %vm837, %v3350, %v3351
          %v3353 = vrot.slane %v3326, 4
          %v3354 = vsel %vm837, %v3351, %v3353
          %v3355 = vrot.slane %v3327, 4
          %v3356 = vrot.slane %v3328, 4
          %v3357 = vsel %vm837, %v3355, %v3356
          %v3358 = vrot.slane %v3329, 4
          %v3359 = vsel %vm837, %v3356, %v3358
          %v3360 = vrot.slane %v3330, 4
          %v3361 = vrot.slane %v3331, 4
          %v3362 = vsel %vm837, %v3360, %v3361
          %v3363 = vrot.slane %v3332, 4
          %v3364 = vsel %vm837, %v3361, %v3363
          %v3377 = vadd.f32 %v3241, %v3347
          %v3378 = vadd.f32 %v3242, %v3349
          %v3379 = vadd.f32 %v3243, %v3348
          %v3380 = vadd.f32 %v3244, %v3352
          %v3381 = vadd.f32 %v3245, %v3354
          %v3382 = vadd.f32 %v3246, %v3353
          %v3383 = vadd.f32 %v3247, %v3357
          %v3384 = vadd.f32 %v3248, %v3359
          %v3385 = vadd.f32 %v3249, %v3358
          %v3386 = vadd.f32 %v3250, %v3362
          %v3387 = vadd.f32 %v3251, %v3364
          %v3388 = vadd.f32 %v3252, %v3363
          %v3389 = vlaneseq
          %v3390 = vshrl.u32 %v3389, 7
          %v3391 = vsub.s32 0, %v3390
          %v3392 = vrot.slane %v593, %v3391
          %v3393 = vmul.f32 %v3051, %v3392
          %v3394 = vmul.f32 %v3052, %v3392
          %v3395 = vmul.f32 %v3053, %v3392
          %v3396 = vmul.f32 %v3056, %v3392
          %v3397 = vmul.f32 %v3057, %v3392
          %v3398 = vmul.f32 %v3058, %v3392
          %v3399 = vmul.f32 %v3061, %v3392
          %v3400 = vmul.f32 %v3062, %v3392
          %v3401 = vmul.f32 %v3063, %v3392
          %v3402 = vmul.f32 %v3066, %v3392
          %v3403 = vmul.f32 %v3067, %v3392
          %v3404 = vmul.f32 %v3068, %v3392
          %v3417 = vrot.slane %v3393, 2
          %v3418 = vrot.slane %v3394, 2
          %v3419 = vsel %vm974, %v3417, %v3418
          %v3420 = vrot.slane %v3395, 2
          %v3421 = vsel %vm974, %v3418, %v3420
          %v3422 = vrot.slane %v3396, 2
          %v3423 = vrot.slane %v3397, 2
          %v3424 = vsel %vm974, %v3422, %v3423
          %v3425 = vrot.slane %v3398, 2
          %v3426 = vsel %vm974, %v3423, %v3425
          %v3427 = vrot.slane %v3399, 2
          %v3428 = vrot.slane %v3400, 2
          %v3429 = vsel %vm974, %v3427, %v3428
          %v3430 = vrot.slane %v3401, 2
          %v3431 = vsel %vm974, %v3428, %v3430
          %v3432 = vrot.slane %v3402, 2
          %v3433 = vrot.slane %v3403, 2
          %v3434 = vsel %vm974, %v3432, %v3433
          %v3435 = vrot.slane %v3404, 2
          %v3436 = vsel %vm974, %v3433, %v3435
          %v3445 = vadd.f32 %v3309, %v3419
          %v3446 = vadd.f32 %v3310, %v3421
          %v3447 = vadd.f32 %v3311, %v3424
          %v3448 = vadd.f32 %v3312, %v3426
          %v3449 = vadd.f32 %v3313, %v3429
          %v3450 = vadd.f32 %v3314, %v3431
          %v3451 = vadd.f32 %v3315, %v3434
          %v3452 = vadd.f32 %v3316, %v3436
          %vm3465 = vcmask 1044480
          %v3466 = vrot.slane %v3377, 3
          %v3467 = vrot.slane %v3378, 3
          %v3468 = vsel %vm3465, %v3466, %v3467
          %v3469 = vrot.slane %v3379, 3
          %v3470 = vsel %vm3465, %v3467, %v3469
          %v3471 = vrot.slane %v3380, 3
          %v3472 = vrot.slane %v3381, 3
          %v3473 = vsel %vm3465, %v3471, %v3472
          %v3474 = vrot.slane %v3382, 3
          %v3475 = vsel %vm3465, %v3472, %v3474
          %v3476 = vrot.slane %v3383, 3
          %v3477 = vrot.slane %v3384, 3
          %v3478 = vsel %vm3465, %v3476, %v3477
          %v3479 = vrot.slane %v3385, 3
          %v3480 = vsel %vm3465, %v3477, %v3479
          %v3481 = vrot.slane %v3386, 3
          %v3482 = vrot.slane %v3387, 3
          %v3483 = vsel %vm3465, %v3481, %v3482
          %v3484 = vrot.slane %v3388, 3
          %v3485 = vsel %vm3465, %v3482, %v3484
          %v3494 = vadd.f32 %v3445, %v3468
          %v3495 = vadd.f32 %v3446, %v3470
          %v3496 = vadd.f32 %v3447, %v3473
          %v3497 = vadd.f32 %v3448, %v3475
          %v3498 = vadd.f32 %v3449, %v3478
          %v3499 = vadd.f32 %v3450, %v3480
          %v3500 = vadd.f32 %v3451, %v3483
          %v3501 = vadd.f32 %v3452, %v3485
          %v3503 = vlaneseq
          %v3504 = vshrl.u32 %v3503, 7
          %v3505 = vsub.s32 0, %v3504
          %v3506 = vrot.slane %v594, %v3505
          %v3508 = vadd.f32 %v3494, %v3506
          %v3509 = vadd.f32 %v3495, %v3506
          %v3510 = vadd.f32 %v3496, %v3506
          %v3511 = vadd.f32 %v3497, %v3506
          %v3512 = vadd.f32 %v3498, %v3506
          %v3513 = vadd.f32 %v3499, %v3506
          %v3514 = vadd.f32 %v3500, %v3506
          %v3515 = vadd.f32 %v3501, %v3506
          %s3516 = smul.u32 %s601, 16
          %s3517 = scalar_lea.vmem %s247, %s3516 [#allocation8]
          %3518 = vst [vmem:[%s3517] sm:$0xff] %v3508
          %3519 = vst [vmem:[%s3517 + $0x8] sm:$0xff] %v3509
          %3520 = vst [vmem:[%s3517 + $0x10] sm:$0xff] %v3510
          %3521 = vst [vmem:[%s3517 + $0x18] sm:$0xff] %v3511
          %3522 = vst [vmem:[%s3517 + $0x20] sm:$0xff] %v3512
          %3523 = vst [vmem:[%s3517 + $0x28] sm:$0xff] %v3513
          %3524 = vst [vmem:[%s3517 + $0x30] sm:$0xff] %v3514
          %3525 = vst [vmem:[%s3517 + $0x38] sm:$0xff] %v3515
        $region61: #{tpu_custom_call.1} parent=31 // loop_footer
          %s600 = sadd.s32 1, %s596
        $region62: #{tpu_custom_call.1} parent=31 // loop_footer_branch
          %595 = sbr.rel target = $region58
        $region63: #{tpu_custom_call.1} parent=31 // loop_exit
          _
        %s3526 = sand.u32 %s132, 1
        %s3527 = scalar_lea.sflag [#allocation5], %s3526
        %s3528 = sand.u32 %s132, 1
        %s3529 = smul.addr %s3528, 256
        %s3530 = scalar_lea.vmem [#allocation8], %s3529
        // Predicated region
        $region64: #{tpu_custom_call.1} parent=31 // pred_check
          %p3531 = pneg %p142
        $region65: #{tpu_custom_call.1} parent=31 // pred_check_branch
          %3533 = sbr.rel (%p3531) target = $region67
        $region66: #{tpu_custom_call.1} parent=31 // pred_region
          %s3534 = smul.u32 16, %s28
          %s3536 = ssub.s32 4096, 4096
          %3537 = vsyncadd %s3527, %s3536
          %s3538 = smul.addr %s3534, 2
          %s3539 = sadd.s32 %s27, %s3538
          %s3540 = smul.addr %s26, 32
          %s3541 = sadd.s32 %s3539, %s3540
          %s3542 = smul.addr %s3541, 128
          %s3543 = scalar_lea.hbm %s3, %s3542
          %s3544 = sshll.u32 %s3530, 4
          %s3545 = int_to_ptr.vmem [resolvable:$true] %s3544
          %3550 = dma.vmem_to_hbm [thread:$0]  %s3545, 4096, %s3543, %s3527, 128, 128, 8
        $region67: #{tpu_custom_call.1} parent=31 // pred_fallthru
          _
      $region32: #{tpu_custom_call.1} parent=5 // pred_fallthru
        _
      %p3551 = scmp.le.s32.totalorder 2, %s16
      // Predicated region
      $region68: #{tpu_custom_call.1} parent=5 // pred_check
        %p3552 = pneg %p3551
      $region69: #{tpu_custom_call.1} parent=5 // pred_check_branch
        %3554 = sbr.rel (%p3552) target = $region71
      $region70: #{tpu_custom_call.1} parent=5 // pred_region
        %s3555 = ssub.s32 %s16, 2
        // Predicated region
        $region72: #{tpu_custom_call.1} parent=70 // pred_check
          %p3556 = pneg %p148
        $region73: #{tpu_custom_call.1} parent=70 // pred_check_branch
          %3558 = sbr.rel (%p3556) target = $region75
        $region74: #{tpu_custom_call.1} parent=70 // pred_region
          %s3559 = sand.u32 %s133, 1
          %s3560 = scalar_lea.sflag [#allocation5], %s3559
          %s3561 = sand.u32 %s133, 1
          %s3562 = smul.addr %s3561, 256
          %s3563 = scalar_lea.vmem [#allocation8], %s3562
          %3564 = dma.done %s3560, 4096
        $region75: #{tpu_custom_call.1} parent=70 // pred_fallthru
          _
      $region71: #{tpu_custom_call.1} parent=5 // pred_fallthru
        _
    $region6: #{tpu_custom_call.1} parent=1 // loop_footer
      %s20 = sadd.s32 1, %s16
    $region7: #{tpu_custom_call.1} parent=1 // loop_footer_branch
      %15 = sbr.rel target = $region3
    $region8: #{tpu_custom_call.1} parent=1 // loop_exit
      _
    %3565 = vsyncpa [#allocation4], 1
    %s3566 = scalar_lea.sflag [#allocation4], 1
    %3567 = vsyncpa %s3566, 1
    %3568 = vsyncpa [#allocation7], 1
    %3569 = vsyncpa [#allocation5], 1
    %s3570 = scalar_lea.sflag [#allocation5], 1
    %3571 = vsyncpa %s3570, 1

</llo_original>
